<compile_context>
chip_gen: v7x
topology: tpu7x:2x2x1
jax: 0.10.0
libtpu: 0.0.40
codegen_flags: <defaults>
</compile_context>

<pallas_src>
import math

import jax
import jax.numpy as jnp
from jax.experimental import pallas as pl
from jax.experimental.pallas import tpu as pltpu

N_IN = 784
N_HID = 500
N_HID_PAD = 512      # hidden width padded to a multiple of 128 lanes
N_OUT = 10
BN_EPS = 1e-5


# ----------------------------------------------------------------------------
# Kernel
# ----------------------------------------------------------------------------
def _dnn_kernel(
    x_ref,
    w1_ref, b1_ref,
    w2_ref, b2_ref,
    w3_ref, b3_ref,
    w4_ref, b4_ref,
    o_ref,
):
    """One batch-tile of the full forward pass.

    BatchNorm (eval) is already folded into the weights/biases, so each hidden
    layer is: bf16 matmul (f32 accumulation) + f32 bias + ReLU.
    """

    def fc_relu(h_bf16, w_ref, b_ref):
        y = jnp.dot(h_bf16, w_ref[...], preferred_element_type=jnp.float32)
        y = y + b_ref[...]
        return jnp.maximum(y, 0.0)

    x = x_ref[...].astype(jnp.bfloat16)
    h1 = fc_relu(x, w1_ref, b1_ref).astype(jnp.bfloat16)
    h2 = fc_relu(h1, w2_ref, b2_ref).astype(jnp.bfloat16)
    h3 = fc_relu(h2, w3_ref, b3_ref).astype(jnp.bfloat16)

    logits = jnp.dot(h3, w4_ref[...], preferred_element_type=jnp.float32) + b4_ref[...]

    # log_softmax(dim=-1) over the 10 real output lanes, in f32.
    m = jnp.max(logits, axis=-1, keepdims=True)
    shifted = logits - m
    lse = jnp.log(jnp.sum(jnp.exp(shifted), axis=-1, keepdims=True))
    o_ref[...] = shifted - lse


# ----------------------------------------------------------------------------
# Wrapper
# ----------------------------------------------------------------------------
def _round_up(x, m):
    return (x + m - 1) // m * m


def dnn_forward(x, folded, *, block_b=256):
    """x: [B, 784] float32 -> log-probabilities [B, 10] float32."""
    B = x.shape[0]
    # Batch tile: big enough to fill the MXU on big batches, but never larger
    # than the (sublane-rounded) batch itself.
    Bm = min(block_b, max(8, _round_up(B, 8)))
    B_pad = _round_up(B, Bm)
    if B_pad != B:
        x = jnp.pad(x, ((0, B_pad - B), (0, 0)))
    grid = (B_pad // Bm,)

    weight_args = (
        folded["w1"], folded["b1"],
        folded["w2"], folded["b2"],
        folded["w3"], folded["b3"],
        folded["w4"], folded["b4"],
    )

    def _resident_spec(a):
        # Full-array block, same block index for every grid step -> the weight
        # stays VMEM-resident across the batch grid.
        return pl.BlockSpec(a.shape, lambda i: (0,) * a.ndim)

    flops = 2 * B_pad * (
        N_IN * N_HID_PAD + N_HID_PAD * N_HID_PAD + N_HID_PAD * N_HID_PAD
        + N_HID_PAD * N_OUT
    )
    weight_bytes = sum(int(a.size) * a.dtype.itemsize for a in weight_args)
    bytes_accessed = (
        weight_bytes
        + int(x.size) * x.dtype.itemsize
        + B_pad * N_OUT * 4
    )
    cost = pl.CostEstimate(
        flops=flops,
        transcendentals=B_pad * (N_OUT + 1),
        bytes_accessed=bytes_accessed,
    )

    out = pl.pallas_call(
        _dnn_kernel,
        out_shape=jax.ShapeDtypeStruct((B_pad, N_OUT), jnp.float32),
        grid=grid,
        in_specs=[pl.BlockSpec((Bm, N_IN), lambda i: (i, 0))]
        + [_resident_spec(a) for a in weight_args],
        out_specs=pl.BlockSpec((Bm, N_OUT), lambda i: (i, 0)),
        compiler_params=pltpu.CompilerParams(
            dimension_semantics=("parallel",)),
        cost_estimate=cost,
    )(x, *weight_args)
    return out[:B]


# ----------------------------------------------------------------------------
# Parameter construction (mirrors the PyTorch module's init, eval mode)
# ----------------------------------------------------------------------------
def make_params(key):
    """Raw parameters mirroring the PyTorch module after init_weights()."""
    k1, k2, k3, k4 = jax.random.split(key, 4)

    def init_linear(k, n_in, n_out, pt_default=False):
        if pt_default:
            # fc4 is NOT passed through init_layer(); PyTorch default Linear:
            # U(-1/sqrt(fan_in), 1/sqrt(fan_in))
            scale = 1.0 / math.sqrt(n_in)
        else:
            std = math.sqrt(2.0 / n_in)
            scale = std * math.sqrt(3.0)
        # Stored transposed vs torch: [in, out], so y = x @ W + b.
        w = jax.random.uniform(k, (n_in, n_out), jnp.float32,
                               minval=-scale, maxval=scale)
        b = jnp.zeros((n_out,), jnp.float32)
        return w, b

    def bn(n):
        return dict(
            gamma=jnp.ones((n,), jnp.float32),   # init_bn: weight = 1
            beta=jnp.zeros((n,), jnp.float32),
            mean=jnp.zeros((n,), jnp.float32),   # running_mean
            var=jnp.ones((n,), jnp.float32),     # running_var
        )

    w1, b1 = init_linear(k1, N_IN, N_HID)
    w2, b2 = init_linear(k2, N_HID, N_HID)
    w3, b3 = init_linear(k3, N_HID, N_HID)
    w4, b4 = init_linear(k4, N_HID, N_OUT, pt_default=True)
    return dict(
        w1=w1, b1=b1, bn1=bn(N_HID),
        w2=w2, b2=b2, bn2=bn(N_HID),
        w3=w3, b3=b3, bn3=bn(N_HID),
        w4=w4, b4=b4,
    )


def fold_params(p):
    """Fold eval-mode BatchNorm into the preceding Linear, zero-pad the hidden
    width 500 -> 512, and cast weights to bf16 (folded biases stay f32)."""

    def fold(w, b, bn):
        scale = bn["gamma"] * jax.lax.rsqrt(bn["var"] + BN_EPS)   # [out]
        w_f = w * scale[None, :]
        b_f = (b - bn["mean"]) * scale + bn["beta"]
        return w_f, b_f

    def pad_cols(w, b, n_to):
        pad = n_to - w.shape[1]
        return jnp.pad(w, ((0, 0), (0, pad))), jnp.pad(b, ((0, pad),))

    def pad_rows(w, n_to):
        pad = n_to - w.shape[0]
        return jnp.pad(w, ((0, pad), (0, 0)))

    w1, b1 = fold(p["w1"], p["b1"], p["bn1"])
    w1, b1 = pad_cols(w1, b1, N_HID_PAD)

    w2, b2 = fold(p["w2"], p["b2"], p["bn2"])
    w2, b2 = pad_cols(w2, b2, N_HID_PAD)
    w2 = pad_rows(w2, N_HID_PAD)

    w3, b3 = fold(p["w3"], p["b3"], p["bn3"])
    w3, b3 = pad_cols(w3, b3, N_HID_PAD)
    w3 = pad_rows(w3, N_HID_PAD)

    w4 = pad_rows(p["w4"], N_HID_PAD)     # output stays at 10 lanes (no pad)
    b4 = p["b4"]

    bf16 = lambda a: a.astype(jnp.bfloat16)
    return dict(
        w1=bf16(w1), b1=b1.reshape(1, -1),
        w2=bf16(w2), b2=b2.reshape(1, -1),
        w3=bf16(w3), b3=b3.reshape(1, -1),
        w4=bf16(w4), b4=b4.reshape(1, -1),
    )


# ----------------------------------------------------------------------------
# References
# ----------------------------------------------------------------------------
def _reference_folded(x, f):
    """Pure-JAX mirror of the kernel math (bf16 weights/activations, f32 acc)."""
    def fc_relu(h, w, b):
        y = jnp.dot(h.astype(jnp.bfloat16), w,
                    preferred_element_type=jnp.float32) + b
        return jnp.maximum(y, 0.0)

    h1 = fc_relu(x, f["w1"], f["b1"])
    h2 = fc_relu(h1, f["w2"], f["b2"])
    h3 = fc_relu(h2, f["w3"], f["b3"])
    logits = jnp.dot(h3.astype(jnp.bfloat16), f["w4"],
                     preferred_element_type=jnp.float32) + f["b4"]
    return jax.nn.log_softmax(logits, axis=-1)


def _reference_unfolded(x, p):
    """f32, un-folded BN reference — checks BN-fold semantics end to end."""
    def blk(h, w, b, bn):
        y = h @ w + b
        y = (y - bn["mean"]) * jax.lax.rsqrt(bn["var"] + BN_EPS) * bn["gamma"] + bn["beta"]
        return jnp.maximum(y, 0.0)

    h1 = blk(x, p["w1"], p["b1"], p["bn1"])
    h2 = blk(h1, p["w2"], p["b2"], p["bn2"])
    h3 = blk(h2, p["w3"], p["b3"], p["bn3"])
    logits = h3 @ p["w4"] + p["b4"]
    return jax.nn.log_softmax(logits, axis=-1)


# ----------------------------------------------------------------------------
if __name__ == "__main__":
    key = jax.random.PRNGKey(0)
    kp, kx = jax.random.split(key)

    params = make_params(kp)
    folded = fold_params(params)

    batch = 16
    x = jax.random.normal(kx, (batch, N_IN), jnp.float32)

    # block_b=8 -> 2 grid steps at this small batch; weights stay VMEM-resident
    # across steps (index_map returns block (0, 0) every iteration).
    out = dnn_forward(x, folded, block_b=8)
    out = jax.block_until_ready(out)
    assert out.shape == (batch, N_OUT)

    # Tight check: kernel vs. a pure-JAX mirror of the same bf16/f32 math.
    ref_f = _reference_folded(x, folded)
    assert jnp.allclose(out, ref_f, atol=2e-3, rtol=2e-3), \
        "mismatch vs folded bf16 reference"

    # Loose semantic check: kernel vs. the original f32 Linear+BN(eval) path.
    ref_u = _reference_unfolded(x, params)
    assert jnp.allclose(out, ref_u, atol=1e-1, rtol=1e-1), \
        "mismatch vs unfolded f32 reference"

    print("KERNEL_OK")
</pallas_src>

<mosaic_0001>
module attributes {stable_mosaic.version = 11 : i64} {
  func.func @_dnn_kernel(%arg0: i32, %arg1: memref<8x784xf32, #tpu.memory_space<vmem>>, %arg2: memref<784x512xbf16, #tpu.memory_space<vmem>>, %arg3: memref<1x512xf32, #tpu.memory_space<vmem>>, %arg4: memref<512x512xbf16, #tpu.memory_space<vmem>>, %arg5: memref<1x512xf32, #tpu.memory_space<vmem>>, %arg6: memref<512x512xbf16, #tpu.memory_space<vmem>>, %arg7: memref<1x512xf32, #tpu.memory_space<vmem>>, %arg8: memref<512x10xbf16, #tpu.memory_space<vmem>>, %arg9: memref<1x10xf32, #tpu.memory_space<vmem>>, %arg10: memref<8x10xf32, #tpu.memory_space<vmem>>) attributes {dimension_semantics = [#tpu.dimension_semantics<parallel>], iteration_bounds = array<i64: 2>, scalar_prefetch = 0 : i64, scratch_operands = 0 : i64, tpu.core_type = #tpu.core_type<tc>, window_params = [{transform_indices = @transform_0, window_bounds = array<i64: 8, 784>}, {pipeline_mode = #tpu.pipeline_mode<synchronous>, transform_indices = @transform_1, window_bounds = array<i64: 784, 512>}, {pipeline_mode = #tpu.pipeline_mode<synchronous>, transform_indices = @transform_2, window_bounds = array<i64: 1, 512>}, {pipeline_mode = #tpu.pipeline_mode<synchronous>, transform_indices = @transform_3, window_bounds = array<i64: 512, 512>}, {pipeline_mode = #tpu.pipeline_mode<synchronous>, transform_indices = @transform_4, window_bounds = array<i64: 1, 512>}, {pipeline_mode = #tpu.pipeline_mode<synchronous>, transform_indices = @transform_5, window_bounds = array<i64: 512, 512>}, {pipeline_mode = #tpu.pipeline_mode<synchronous>, transform_indices = @transform_6, window_bounds = array<i64: 1, 512>}, {pipeline_mode = #tpu.pipeline_mode<synchronous>, transform_indices = @transform_7, window_bounds = array<i64: 512, 10>}, {pipeline_mode = #tpu.pipeline_mode<synchronous>, transform_indices = @transform_8, window_bounds = array<i64: 1, 10>}, {transform_indices = @transform_9, window_bounds = array<i64: 8, 10>}]} {
    %c0 = arith.constant 0 : index
    %c0_0 = arith.constant 0 : index
    %0 = vector.load %arg1[%c0, %c0_0] : memref<8x784xf32, #tpu.memory_space<vmem>>, vector<8x784xf32>
    %1 = arith.truncf %0 : vector<8x784xf32> to vector<8x784xbf16>
    %c0_1 = arith.constant 0 : index
    %c0_2 = arith.constant 0 : index
    %2 = vector.load %arg2[%c0_1, %c0_2] : memref<784x512xbf16, #tpu.memory_space<vmem>>, vector<784x512xbf16>
    %cst = arith.constant dense<0.000000e+00> : vector<8x512xf32>
    %3 = tpu.matmul %1, %2, %cst {dimension_numbers = #tpu.dot_dimension_numbers<[1], [0], [0], [1], [0, 0, 1, 1], [], []>} : vector<8x784xbf16>, vector<784x512xbf16>, vector<8x512xf32> -> vector<8x512xf32>
    %c0_3 = arith.constant 0 : index
    %c0_4 = arith.constant 0 : index
    %4 = vector.load %arg3[%c0_3, %c0_4] : memref<1x512xf32, #tpu.memory_space<vmem>>, vector<1x512xf32>
    %5 = vector.broadcast %4 : vector<1x512xf32> to vector<8x512xf32>
    %6 = arith.addf %3, %5 : vector<8x512xf32>
    %cst_5 = arith.constant 0.000000e+00 : f32
    %7 = vector.broadcast %cst_5 : f32 to vector<8x512xf32>
    %8 = arith.maximumf %6, %7 : vector<8x512xf32>
    %9 = arith.truncf %8 : vector<8x512xf32> to vector<8x512xbf16>
    %c0_6 = arith.constant 0 : index
    %c0_7 = arith.constant 0 : index
    %10 = vector.load %arg4[%c0_6, %c0_7] : memref<512x512xbf16, #tpu.memory_space<vmem>>, vector<512x512xbf16>
    %cst_8 = arith.constant dense<0.000000e+00> : vector<8x512xf32>
    %11 = tpu.matmul %9, %10, %cst_8 {dimension_numbers = #tpu.dot_dimension_numbers<[1], [0], [0], [1], [0, 0, 1, 1], [], []>} : vector<8x512xbf16>, vector<512x512xbf16>, vector<8x512xf32> -> vector<8x512xf32>
    %c0_9 = arith.constant 0 : index
    %c0_10 = arith.constant 0 : index
    %12 = vector.load %arg5[%c0_9, %c0_10] : memref<1x512xf32, #tpu.memory_space<vmem>>, vector<1x512xf32>
    %13 = vector.broadcast %12 : vector<1x512xf32> to vector<8x512xf32>
    %14 = arith.addf %11, %13 : vector<8x512xf32>
    %cst_11 = arith.constant 0.000000e+00 : f32
    %15 = vector.broadcast %cst_11 : f32 to vector<8x512xf32>
    %16 = arith.maximumf %14, %15 : vector<8x512xf32>
    %17 = arith.truncf %16 : vector<8x512xf32> to vector<8x512xbf16>
    %c0_12 = arith.constant 0 : index
    %c0_13 = arith.constant 0 : index
    %18 = vector.load %arg6[%c0_12, %c0_13] : memref<512x512xbf16, #tpu.memory_space<vmem>>, vector<512x512xbf16>
    %cst_14 = arith.constant dense<0.000000e+00> : vector<8x512xf32>
    %19 = tpu.matmul %17, %18, %cst_14 {dimension_numbers = #tpu.dot_dimension_numbers<[1], [0], [0], [1], [0, 0, 1, 1], [], []>} : vector<8x512xbf16>, vector<512x512xbf16>, vector<8x512xf32> -> vector<8x512xf32>
    %c0_15 = arith.constant 0 : index
    %c0_16 = arith.constant 0 : index
    %20 = vector.load %arg7[%c0_15, %c0_16] : memref<1x512xf32, #tpu.memory_space<vmem>>, vector<1x512xf32>
    %21 = vector.broadcast %20 : vector<1x512xf32> to vector<8x512xf32>
    %22 = arith.addf %19, %21 : vector<8x512xf32>
    %cst_17 = arith.constant 0.000000e+00 : f32
    %23 = vector.broadcast %cst_17 : f32 to vector<8x512xf32>
    %24 = arith.maximumf %22, %23 : vector<8x512xf32>
    %25 = arith.truncf %24 : vector<8x512xf32> to vector<8x512xbf16>
    %c0_18 = arith.constant 0 : index
    %c0_19 = arith.constant 0 : index
    %26 = vector.load %arg8[%c0_18, %c0_19] : memref<512x10xbf16, #tpu.memory_space<vmem>>, vector<512x10xbf16>
    %cst_20 = arith.constant dense<0.000000e+00> : vector<8x10xf32>
    %27 = tpu.matmul %25, %26, %cst_20 {dimension_numbers = #tpu.dot_dimension_numbers<[1], [0], [0], [1], [0, 0, 1, 1], [], []>} : vector<8x512xbf16>, vector<512x10xbf16>, vector<8x10xf32> -> vector<8x10xf32>
    %c0_21 = arith.constant 0 : index
    %c0_22 = arith.constant 0 : index
    %28 = vector.load %arg9[%c0_21, %c0_22] : memref<1x10xf32, #tpu.memory_space<vmem>>, vector<1x10xf32>
    %29 = vector.broadcast %28 : vector<1x10xf32> to vector<8x10xf32>
    %30 = arith.addf %27, %29 : vector<8x10xf32>
    %cst_23 = arith.constant dense<0xFF800000> : vector<8xf32>
    %31 = vector.multi_reduction <maximumf>, %30, %cst_23 [1] : vector<8x10xf32> to vector<8xf32>
    %32 = vector.shape_cast %31 : vector<8xf32> to vector<8x1xf32>
    %33 = vector.broadcast %32 : vector<8x1xf32> to vector<8x10xf32>
    %34 = arith.subf %30, %33 : vector<8x10xf32>
    %35 = math.exp %34 : vector<8x10xf32>
    %cst_24 = arith.constant dense<0.000000e+00> : vector<8xf32>
    %36 = vector.multi_reduction <add>, %35, %cst_24 [1] : vector<8x10xf32> to vector<8xf32>
    %37 = vector.shape_cast %36 : vector<8xf32> to vector<8x1xf32>
    %38 = math.log %37 : vector<8x1xf32>
    %39 = vector.broadcast %38 : vector<8x1xf32> to vector<8x10xf32>
    %40 = arith.subf %34, %39 : vector<8x10xf32>
    %c0_25 = arith.constant 0 : index
    %c0_26 = arith.constant 0 : index
    %41 = vector.load %arg10[%c0_25, %c0_26] : memref<8x10xf32, #tpu.memory_space<vmem>>, vector<8x10xf32>
    tpu.vector_store %arg10[%c0_25, %c0_26], %40 {strides = array<i32>} : memref<8x10xf32, #tpu.memory_space<vmem>>, vector<8x10xf32>,
    return
  }
  func.func @transform_0(%arg0: i32) -> (i32, i32) {
    %c0_i32 = arith.constant 0 : i32
    %c0_i32_0 = arith.constant 0 : i32
    return %arg0, %c0_i32 : i32, i32
  }
  func.func @transform_1(%arg0: i32) -> (i32, i32) {
    %c0_i32 = arith.constant 0 : i32
    %c0_i32_0 = arith.constant 0 : i32
    %c0_i32_1 = arith.constant 0 : i32
    return %c0_i32, %c0_i32_0 : i32, i32
  }
  func.func @transform_2(%arg0: i32) -> (i32, i32) {
    %c0_i32 = arith.constant 0 : i32
    %c0_i32_0 = arith.constant 0 : i32
    %c0_i32_1 = arith.constant 0 : i32
    return %c0_i32, %c0_i32_0 : i32, i32
  }
  func.func @transform_3(%arg0: i32) -> (i32, i32) {
    %c0_i32 = arith.constant 0 : i32
    %c0_i32_0 = arith.constant 0 : i32
    %c0_i32_1 = arith.constant 0 : i32
    return %c0_i32, %c0_i32_0 : i32, i32
  }
  func.func @transform_4(%arg0: i32) -> (i32, i32) {
    %c0_i32 = arith.constant 0 : i32
    %c0_i32_0 = arith.constant 0 : i32
    %c0_i32_1 = arith.constant 0 : i32
    return %c0_i32, %c0_i32_0 : i32, i32
  }
  func.func @transform_5(%arg0: i32) -> (i32, i32) {
    %c0_i32 = arith.constant 0 : i32
    %c0_i32_0 = arith.constant 0 : i32
    %c0_i32_1 = arith.constant 0 : i32
    return %c0_i32, %c0_i32_0 : i32, i32
  }
  func.func @transform_6(%arg0: i32) -> (i32, i32) {
    %c0_i32 = arith.constant 0 : i32
    %c0_i32_0 = arith.constant 0 : i32
    %c0_i32_1 = arith.constant 0 : i32
    return %c0_i32, %c0_i32_0 : i32, i32
  }
  func.func @transform_7(%arg0: i32) -> (i32, i32) {
    %c0_i32 = arith.constant 0 : i32
    %c0_i32_0 = arith.constant 0 : i32
    %c0_i32_1 = arith.constant 0 : i32
    return %c0_i32, %c0_i32_0 : i32, i32
  }
  func.func @transform_8(%arg0: i32) -> (i32, i32) {
    %c0_i32 = arith.constant 0 : i32
    %c0_i32_0 = arith.constant 0 : i32
    %c0_i32_1 = arith.constant 0 : i32
    return %c0_i32, %c0_i32_0 : i32, i32
  }
  func.func @transform_9(%arg0: i32) -> (i32, i32) {
    %c0_i32 = arith.constant 0 : i32
    %c0_i32_0 = arith.constant 0 : i32
    return %arg0, %c0_i32 : i32, i32
  }
}

</mosaic_0001>

<llo_original>
// kernel: tpu_custom_call.1
$region0: #{tpu_custom_call.1}
  #allocation0 [shape = 'u32[]', space=smem, size = 0x4, offset = 0x4, fixed_abs, tag = 'smem constant byte address 0x4 - core index']
  #allocation1 [shape = 'u32[144,128]{1,0:T(1,128)}', space=vmem, size = 0x12000, scoped, tag = 'internal scratch']
  %s0 = inlined_call_operand.vmem [shape: f32[16,784], index: 0, kind: input, shape index: {}]
  %s1 = inlined_call_operand.hbm [shape: bf16[784,512], index: 1, kind: input, shape index: {}]
  %s2 = inlined_call_operand.vmem [shape: f32[1,512], index: 2, kind: input, shape index: {}]
  %s3 = inlined_call_operand.hbm [shape: bf16[512,512], index: 3, kind: input, shape index: {}]
  %s4 = inlined_call_operand.vmem [shape: f32[1,512], index: 4, kind: input, shape index: {}]
  %s5 = inlined_call_operand.hbm [shape: bf16[512,512], index: 5, kind: input, shape index: {}]
  %s6 = inlined_call_operand.vmem [shape: f32[1,512], index: 6, kind: input, shape index: {}]
  %s7 = inlined_call_operand.vmem [shape: bf16[512,10], index: 7, kind: input, shape index: {}]
  %s8 = inlined_call_operand.vmem [shape: f32[1,10], index: 8, kind: input, shape index: {}]
  %s9 = inlined_call_operand.hbm [shape: f32[16,10], index: 9, kind: output, shape index: {}]
  %s10 = sld [smem:[#allocation0]]
  $region81: #{tpu_custom_call.1} parent=0
    _
  %s12 = ssub.s32 1, %s10
  %s13 = scalar_select 0, %s12, %s10
  $region1: #{tpu_custom_call.1} parent=0
    #allocation2 [shape = 'u8[802816]{0}', space=vmem, size = 0xc4000, scoped, tag = 'input window, operand 1, single buffered']
    #allocation3 [shape = 's32[2]{0}', space=sflag, size = 0x8, scoped, tag = 'scoped memory for tpu_custom_call.1']
    #allocation4 [shape = 's32[2]{0}', space=sflag, size = 0x8, scoped, tag = 'scoped memory for tpu_custom_call.1']
    #allocation5 [shape = 'u8[524288]{0}', space=vmem, size = 0x80000, scoped, tag = 'input window, operand 3, single buffered']
    #allocation6 [shape = 's32[1]{0}', space=sflag, size = 0x4, scoped, tag = 'scoped memory for tpu_custom_call.1']
    #allocation7 [shape = 'u8[524288]{0}', space=vmem, size = 0x80000, scoped, tag = 'input window, operand 5, single buffered']
    #allocation8 [shape = 'u8[8192]{0}', space=vmem, size = 0x2000, scoped, tag = 'output window, operand 0']
    %14 = vsyncpa [#allocation3], 0
    %15 = vsyncpa [#allocation6], 0
    %16 = vsyncpa [#allocation4], 0
    %s17 = scalar_lea.sflag [#allocation4], 1
    %18 = vsyncpa %s17, 0
    loop: start=0, step=1, limit=4
    $region2: #{tpu_custom_call.1} parent=1 // loop_pre_header
      _
    $region3: #{tpu_custom_call.1} parent=1 // loop_header
      %s20 = sphi 0, %s24
      %p21 = scmp.ge.s32.totalorder %s20, 4
      %s30 = sphi 0, %s32
      %s33 = sphi 0, %s30
      %s34 = sphi 0, %s33
      %s50 = sphi 0, %s34
      %s54 = sphi 0, %s54
      %s56 = sphi 0, %s54
      %s57 = sphi 0, %s56
      %s71 = sphi 0, %s57
      %s75 = sphi 0, %s75
      %s77 = sphi 0, %s75
      %s78 = sphi 0, %s77
      %s92 = sphi 0, %s78
      %s96 = sphi 0, %s96
      %s98 = sphi 0, %s96
      %s99 = sphi 0, %s98
      %s113 = sphi 0, %s99
      %s117 = sphi 0, %s117
      %s119 = sphi 0, %s117
      %s120 = sphi 0, %s119
      %s134 = sphi 0, %s120
      %s138 = sphi 0, %s138
      %s140 = sphi 0, %s138
      %s141 = sphi 0, %s140
      %s155 = sphi 0, %s141
      %s159 = sphi 0, %s159
      %s161 = sphi 0, %s159
      %s162 = sphi 0, %s161
      %s176 = sphi 0, %s162
      %s180 = sphi 0, %s180
      %s182 = sphi 0, %s180
      %s183 = sphi 0, %s182
      %s197 = sphi 0, %s183
      %s201 = sphi 0, %s201
      %s203 = sphi 0, %s201
      %s204 = sphi 0, %s203
      %s218 = sphi 0, %s204
      %s224 = sphi 0, %s226
      %s227 = sphi 0, %s224
      %s228 = sphi 0, %s227
      %s244 = sphi 0, %s228
    $region4: #{tpu_custom_call.1} parent=1 // loop_header_branch
      %23 = sbr.rel (%p21) target = $region8
    $region5: #{tpu_custom_call.1} parent=1 // loop_body
      %s25 = ssub.s32 %s20, 1
      %s26 = ssub.s32 %s20, 2
      %s27 = sadd.s32 %s20, 1
      %s28 = ssub.s32 %s20, %s27
      %p29 = scmp.eq.s32.totalorder %s28, 0
      %s31 = sadd.s32 %s30, 1
      %s32 = scalar_select %p29, %s30, %s31
      %p35 = pneg %p29
      %p36 = scmp.eq.s32.totalorder %s20, 1
      %p37 = por %p35, %p36
      %p38 = scmp.ne.s32.totalorder %s30, %s33
      %p39 = scmp.eq.s32.totalorder %s20, 0
      %p40 = por %p38, %p39
      %p41 = scmp.ne.s32.totalorder %s30, %s33
      %p42 = scmp.eq.s32.totalorder %s25, 1
      %p43 = por %p41, %p42
      %p44 = scmp.ne.s32.totalorder %s33, %s34
      %p45 = scmp.eq.s32.totalorder %s25, 0
      %p46 = por %p44, %p45
      %p47 = scmp.ne.s32.totalorder %s33, %s34
      %p48 = scmp.eq.s32.totalorder %s26, 1
      %p49 = por %p47, %p48
      %p51 = scmp.ne.s32.totalorder %s34, %s50
      %p52 = scmp.eq.s32.totalorder %s26, 0
      %p53 = por %p51, %p52
      %s55 = sadd.s32 %s54, 1
      %p58 = scmp.eq.s32.totalorder %s20, 1
      %p59 = scmp.ne.s32.totalorder %s54, %s56
      %p60 = scmp.eq.s32.totalorder %s20, 0
      %p61 = por %p59, %p60
      %p62 = scmp.ne.s32.totalorder %s54, %s56
      %p63 = scmp.eq.s32.totalorder %s25, 1
      %p64 = por %p62, %p63
      %p65 = scmp.ne.s32.totalorder %s56, %s57
      %p66 = scmp.eq.s32.totalorder %s25, 0
      %p67 = por %p65, %p66
      %p68 = scmp.ne.s32.totalorder %s56, %s57
      %p69 = scmp.eq.s32.totalorder %s26, 1
      %p70 = por %p68, %p69
      %p72 = scmp.ne.s32.totalorder %s57, %s71
      %p73 = scmp.eq.s32.totalorder %s26, 0
      %p74 = por %p72, %p73
      %s76 = sadd.s32 %s75, 1
      %p79 = scmp.eq.s32.totalorder %s20, 1
      %p80 = scmp.ne.s32.totalorder %s75, %s77
      %p81 = scmp.eq.s32.totalorder %s20, 0
      %p82 = por %p80, %p81
      %p83 = scmp.ne.s32.totalorder %s75, %s77
      %p84 = scmp.eq.s32.totalorder %s25, 1
      %p85 = por %p83, %p84
      %p86 = scmp.ne.s32.totalorder %s77, %s78
      %p87 = scmp.eq.s32.totalorder %s25, 0
      %p88 = por %p86, %p87
      %p89 = scmp.ne.s32.totalorder %s77, %s78
      %p90 = scmp.eq.s32.totalorder %s26, 1
      %p91 = por %p89, %p90
      %p93 = scmp.ne.s32.totalorder %s78, %s92
      %p94 = scmp.eq.s32.totalorder %s26, 0
      %p95 = por %p93, %p94
      %s97 = sadd.s32 %s96, 1
      %p100 = scmp.eq.s32.totalorder %s20, 1
      %p101 = scmp.ne.s32.totalorder %s96, %s98
      %p102 = scmp.eq.s32.totalorder %s20, 0
      %p103 = por %p101, %p102
      %p104 = scmp.ne.s32.totalorder %s96, %s98
      %p105 = scmp.eq.s32.totalorder %s25, 1
      %p106 = por %p104, %p105
      %p107 = scmp.ne.s32.totalorder %s98, %s99
      %p108 = scmp.eq.s32.totalorder %s25, 0
      %p109 = por %p107, %p108
      %p110 = scmp.ne.s32.totalorder %s98, %s99
      %p111 = scmp.eq.s32.totalorder %s26, 1
      %p112 = por %p110, %p111
      %p114 = scmp.ne.s32.totalorder %s99, %s113
      %p115 = scmp.eq.s32.totalorder %s26, 0
      %p116 = por %p114, %p115
      %s118 = sadd.s32 %s117, 1
      %p121 = scmp.eq.s32.totalorder %s20, 1
      %p122 = scmp.ne.s32.totalorder %s117, %s119
      %p123 = scmp.eq.s32.totalorder %s20, 0
      %p124 = por %p122, %p123
      %p125 = scmp.ne.s32.totalorder %s117, %s119
      %p126 = scmp.eq.s32.totalorder %s25, 1
      %p127 = por %p125, %p126
      %p128 = scmp.ne.s32.totalorder %s119, %s120
      %p129 = scmp.eq.s32.totalorder %s25, 0
      %p130 = por %p128, %p129
      %p131 = scmp.ne.s32.totalorder %s119, %s120
      %p132 = scmp.eq.s32.totalorder %s26, 1
      %p133 = por %p131, %p132
      %p135 = scmp.ne.s32.totalorder %s120, %s134
      %p136 = scmp.eq.s32.totalorder %s26, 0
      %p137 = por %p135, %p136
      %s139 = sadd.s32 %s138, 1
      %p142 = scmp.eq.s32.totalorder %s20, 1
      %p143 = scmp.ne.s32.totalorder %s138, %s140
      %p144 = scmp.eq.s32.totalorder %s20, 0
      %p145 = por %p143, %p144
      %p146 = scmp.ne.s32.totalorder %s138, %s140
      %p147 = scmp.eq.s32.totalorder %s25, 1
      %p148 = por %p146, %p147
      %p149 = scmp.ne.s32.totalorder %s140, %s141
      %p150 = scmp.eq.s32.totalorder %s25, 0
      %p151 = por %p149, %p150
      %p152 = scmp.ne.s32.totalorder %s140, %s141
      %p153 = scmp.eq.s32.totalorder %s26, 1
      %p154 = por %p152, %p153
      %p156 = scmp.ne.s32.totalorder %s141, %s155
      %p157 = scmp.eq.s32.totalorder %s26, 0
      %p158 = por %p156, %p157
      %s160 = sadd.s32 %s159, 1
      %p163 = scmp.eq.s32.totalorder %s20, 1
      %p164 = scmp.ne.s32.totalorder %s159, %s161
      %p165 = scmp.eq.s32.totalorder %s20, 0
      %p166 = por %p164, %p165
      %p167 = scmp.ne.s32.totalorder %s159, %s161
      %p168 = scmp.eq.s32.totalorder %s25, 1
      %p169 = por %p167, %p168
      %p170 = scmp.ne.s32.totalorder %s161, %s162
      %p171 = scmp.eq.s32.totalorder %s25, 0
      %p172 = por %p170, %p171
      %p173 = scmp.ne.s32.totalorder %s161, %s162
      %p174 = scmp.eq.s32.totalorder %s26, 1
      %p175 = por %p173, %p174
      %p177 = scmp.ne.s32.totalorder %s162, %s176
      %p178 = scmp.eq.s32.totalorder %s26, 0
      %p179 = por %p177, %p178
      %s181 = sadd.s32 %s180, 1
      %p184 = scmp.eq.s32.totalorder %s20, 1
      %p185 = scmp.ne.s32.totalorder %s180, %s182
      %p186 = scmp.eq.s32.totalorder %s20, 0
      %p187 = por %p185, %p186
      %p188 = scmp.ne.s32.totalorder %s180, %s182
      %p189 = scmp.eq.s32.totalorder %s25, 1
      %p190 = por %p188, %p189
      %p191 = scmp.ne.s32.totalorder %s182, %s183
      %p192 = scmp.eq.s32.totalorder %s25, 0
      %p193 = por %p191, %p192
      %p194 = scmp.ne.s32.totalorder %s182, %s183
      %p195 = scmp.eq.s32.totalorder %s26, 1
      %p196 = por %p194, %p195
      %p198 = scmp.ne.s32.totalorder %s183, %s197
      %p199 = scmp.eq.s32.totalorder %s26, 0
      %p200 = por %p198, %p199
      %s202 = sadd.s32 %s201, 1
      %p205 = scmp.eq.s32.totalorder %s20, 1
      %p206 = scmp.ne.s32.totalorder %s201, %s203
      %p207 = scmp.eq.s32.totalorder %s20, 0
      %p208 = por %p206, %p207
      %p209 = scmp.ne.s32.totalorder %s201, %s203
      %p210 = scmp.eq.s32.totalorder %s25, 1
      %p211 = por %p209, %p210
      %p212 = scmp.ne.s32.totalorder %s203, %s204
      %p213 = scmp.eq.s32.totalorder %s25, 0
      %p214 = por %p212, %p213
      %p215 = scmp.ne.s32.totalorder %s203, %s204
      %p216 = scmp.eq.s32.totalorder %s26, 1
      %p217 = por %p215, %p216
      %p219 = scmp.ne.s32.totalorder %s204, %s218
      %p220 = scmp.eq.s32.totalorder %s26, 0
      %p221 = por %p219, %p220
      %s222 = ssub.s32 %s20, %s27
      %p223 = scmp.eq.s32.totalorder %s222, 0
      %s225 = sadd.s32 %s224, 1
      %s226 = scalar_select %p223, %s224, %s225
      %p229 = pneg %p223
      %p230 = scmp.eq.s32.totalorder %s20, 1
      %p231 = por %p229, %p230
      %p232 = scmp.ne.s32.totalorder %s224, %s227
      %p233 = scmp.eq.s32.totalorder %s20, 0
      %p234 = por %p232, %p233
      %p235 = scmp.ne.s32.totalorder %s224, %s227
      %p236 = scmp.eq.s32.totalorder %s25, 1
      %p237 = por %p235, %p236
      %p238 = scmp.ne.s32.totalorder %s227, %s228
      %p239 = scmp.eq.s32.totalorder %s25, 0
      %p240 = por %p238, %p239
      %p241 = scmp.ne.s32.totalorder %s227, %s228
      %p242 = scmp.eq.s32.totalorder %s26, 1
      %p243 = por %p241, %p242
      %p245 = scmp.ne.s32.totalorder %s228, %s244
      %p246 = scmp.eq.s32.totalorder %s26, 0
      %p247 = por %p245, %p246
      %p248 = scmp.le.s32.totalorder 1, %s20
      %p249 = scmp.lt.s32.totalorder %s20, 3
      %p250 = pnand %p248, %p249
      %p251 = pneg %p250
      // Predicated region
      $region9: #{tpu_custom_call.1} parent=5 // pred_check
        _
      $region10: #{tpu_custom_call.1} parent=5 // pred_check_branch
        %253 = sbr.rel (%p250) target = $region12
      $region11: #{tpu_custom_call.1} parent=5 // pred_region
        %s254 = ssub.s32 %s20, 1
        // Predicated region
        $region13: #{tpu_custom_call.1} parent=11 // pred_check
          %p255 = pneg %p67
        $region14: #{tpu_custom_call.1} parent=11 // pred_check_branch
          %257 = sbr.rel (%p255) target = $region16
        $region15: #{tpu_custom_call.1} parent=11 // pred_region
          %s259 = ssub.s32 25088, 25088
          %260 = vsyncadd [#allocation3], %s259
          %s261 = sshll.u32 [#allocation2], 4
          %s262 = int_to_ptr.vmem [resolvable:$true] %s261
          %267 = dma.hbm_to_vmem [thread:$0]  %s1, 25088, %s262, [#allocation3], 256, 256, 16
        $region16: #{tpu_custom_call.1} parent=11 // pred_fallthru
          _
        // Predicated region
        $region17: #{tpu_custom_call.1} parent=11 // pred_check
          %p268 = pneg %p88
        $region18: #{tpu_custom_call.1} parent=11 // pred_check_branch
          %270 = sbr.rel (%p268) target = $region20
        $region19: #{tpu_custom_call.1} parent=11 // pred_region
          _
        $region20: #{tpu_custom_call.1} parent=11 // pred_fallthru
          _
        // Predicated region
        $region21: #{tpu_custom_call.1} parent=11 // pred_check
          %p271 = pneg %p109
        $region22: #{tpu_custom_call.1} parent=11 // pred_check_branch
          %273 = sbr.rel (%p271) target = $region24
        $region23: #{tpu_custom_call.1} parent=11 // pred_region
          %s275 = ssub.s32 16384, 16384
          %276 = vsyncadd [#allocation6], %s275
          %s277 = sshll.u32 [#allocation5], 4
          %s278 = int_to_ptr.vmem [resolvable:$true] %s277
          %283 = dma.hbm_to_vmem [thread:$0]  %s3, 16384, %s278, [#allocation6], 256, 256, 16
        $region24: #{tpu_custom_call.1} parent=11 // pred_fallthru
          _
        // Predicated region
        $region25: #{tpu_custom_call.1} parent=11 // pred_check
          %p284 = pneg %p130
        $region26: #{tpu_custom_call.1} parent=11 // pred_check_branch
          %286 = sbr.rel (%p284) target = $region28
        $region27: #{tpu_custom_call.1} parent=11 // pred_region
          _
        $region28: #{tpu_custom_call.1} parent=11 // pred_fallthru
          _
        // Predicated region
        $region29: #{tpu_custom_call.1} parent=11 // pred_check
          %p287 = pneg %p151
        $region30: #{tpu_custom_call.1} parent=11 // pred_check_branch
          %289 = sbr.rel (%p287) target = $region32
        $region31: #{tpu_custom_call.1} parent=11 // pred_region
          %s291 = ssub.s32 16384, 16384
          %292 = vsyncadd [#allocation6], %s291
          %s293 = sshll.u32 [#allocation7], 4
          %s294 = int_to_ptr.vmem [resolvable:$true] %s293
          %299 = dma.hbm_to_vmem [thread:$0]  %s5, 16384, %s294, [#allocation6], 256, 256, 16
        $region32: #{tpu_custom_call.1} parent=11 // pred_fallthru
          _
        // Predicated region
        $region33: #{tpu_custom_call.1} parent=11 // pred_check
          %p300 = pneg %p172
        $region34: #{tpu_custom_call.1} parent=11 // pred_check_branch
          %302 = sbr.rel (%p300) target = $region36
        $region35: #{tpu_custom_call.1} parent=11 // pred_region
          _
        $region36: #{tpu_custom_call.1} parent=11 // pred_fallthru
          _
        // Predicated region
        $region37: #{tpu_custom_call.1} parent=11 // pred_check
          %p303 = pneg %p193
        $region38: #{tpu_custom_call.1} parent=11 // pred_check_branch
          %305 = sbr.rel (%p303) target = $region40
        $region39: #{tpu_custom_call.1} parent=11 // pred_region
          _
        $region40: #{tpu_custom_call.1} parent=11 // pred_fallthru
          _
        // Predicated region
        $region41: #{tpu_custom_call.1} parent=11 // pred_check
          %p306 = pneg %p214
        $region42: #{tpu_custom_call.1} parent=11 // pred_check_branch
          %308 = sbr.rel (%p306) target = $region44
        $region43: #{tpu_custom_call.1} parent=11 // pred_region
          _
        $region44: #{tpu_custom_call.1} parent=11 // pred_fallthru
          _
      $region12: #{tpu_custom_call.1} parent=5 // pred_fallthru
        _
      %p309 = scmp.lt.s32.totalorder %s20, 2
      // Predicated region
      $region45: #{tpu_custom_call.1} parent=5 // pred_check
        %p310 = pneg %p309
      $region46: #{tpu_custom_call.1} parent=5 // pred_check_branch
        %312 = sbr.rel (%p310) target = $region48
      $region47: #{tpu_custom_call.1} parent=5 // pred_region
        // Predicated region
        $region49: #{tpu_custom_call.1} parent=47 // pred_check
          %p313 = pneg %p40
        $region50: #{tpu_custom_call.1} parent=47 // pred_check_branch
          %315 = sbr.rel (%p313) target = $region52
        $region51: #{tpu_custom_call.1} parent=47 // pred_region
          %p316 = scmp.lt.s32.totalorder %s20, 1
          %s317 = scalar_select %p316, %s20, 1
          %s318 = smul.addr %s317, 7
          %s319 = smul.addr %s318, 8
          %s320 = scalar_lea.vmem %s0, %s319
        $region52: #{tpu_custom_call.1} parent=47 // pred_fallthru
          _
      $region48: #{tpu_custom_call.1} parent=5 // pred_fallthru
        _
      %p321 = scmp.le.s32.totalorder 1, %s20
      %p322 = scmp.lt.s32.totalorder %s20, 3
      %p323 = pnand %p321, %p322
      %p324 = pneg %p323
      // Predicated region
      $region53: #{tpu_custom_call.1} parent=5 // pred_check
        _
      $region54: #{tpu_custom_call.1} parent=5 // pred_check_branch
        %326 = sbr.rel (%p323) target = $region56
      $region55: #{tpu_custom_call.1} parent=5 // pred_region
        %s327 = ssub.s32 %s20, 1
        // Predicated region
        $region57: #{tpu_custom_call.1} parent=55 // pred_check
          %p328 = pneg %p67
        $region58: #{tpu_custom_call.1} parent=55 // pred_check_branch
          %330 = sbr.rel (%p328) target = $region60
        $region59: #{tpu_custom_call.1} parent=55 // pred_region
          %331 = dma.done [#allocation3], 25088
        $region60: #{tpu_custom_call.1} parent=55 // pred_fallthru
          _
        // Predicated region
        $region61: #{tpu_custom_call.1} parent=55 // pred_check
          %p332 = pneg %p109
        $region62: #{tpu_custom_call.1} parent=55 // pred_check_branch
          %334 = sbr.rel (%p332) target = $region64
        $region63: #{tpu_custom_call.1} parent=55 // pred_region
          %335 = dma.done [#allocation6], 16384
        $region64: #{tpu_custom_call.1} parent=55 // pred_fallthru
          _
        // Predicated region
        $region65: #{tpu_custom_call.1} parent=55 // pred_check
          %p336 = pneg %p151
        $region66: #{tpu_custom_call.1} parent=55 // pred_check_branch
          %338 = sbr.rel (%p336) target = $region68
        $region67: #{tpu_custom_call.1} parent=55 // pred_region
          %339 = dma.done [#allocation6], 16384
        $region68: #{tpu_custom_call.1} parent=55 // pred_fallthru
          _
        %p340 = scmp.lt.s32.totalorder %s25, 1
        %s341 = scalar_select %p340, %s25, 1
        %s342 = smul.addr %s341, 7
        %s343 = smul.addr %s342, 8
        %s344 = scalar_lea.vmem %s0, %s343
        %p345 = pneg %p46
        %p346 = pneg %p43
        %p347 = pneg %p67
        %p348 = pneg %p64
        %p349 = pneg %p88
        %p350 = pneg %p85
        %p351 = pneg %p109
        %p352 = pneg %p106
        %p353 = pneg %p130
        %p354 = pneg %p127
        %p355 = pneg %p151
        %p356 = pneg %p148
        %p357 = pneg %p172
        %p358 = pneg %p169
        %p359 = pneg %p193
        %p360 = pneg %p190
        %p361 = pneg %p214
        %p362 = pneg %p211
        %p363 = pneg %p240
        %p364 = pneg %p237
        %s365 = sand.u32 %s227, 1
        %s366 = scalar_lea.sflag [#allocation4], %s365
        %s367 = sand.u32 %s227, 1
        %s368 = smul.addr %s367, 8
        %s369 = scalar_lea.vmem [#allocation8], %s368
        %p370 = scmp.lt.s32.totalorder %s25, 1
        %s371 = scalar_select %p370, %s25, 1
        %s372 = smul.addr %s371, 7
        %s373 = smul.addr %s372, 8
        %s374 = scalar_lea.vmem %s0, %s373
        %v376 = vld [vmem:[%s374] sm:$0xff]
        %v377 = vld [vmem:[%s374 + $0x8] sm:$0xff]
        %v378 = vld [vmem:[%s374 + $0x10] sm:$0xff]
        %v379 = vld [vmem:[%s374 + $0x18] sm:$0xff]
        %v380 = vld [vmem:[%s374 + $0x20] sm:$0xff]
        %v381 = vld [vmem:[%s374 + $0x28] sm:$0xff]
        %v382 = vld [vmem:[%s374 + $0x30] sm:$0xff]
        %v383 = vpack.c.bf16 %v376, %v376
        %v384 = vpack.c.bf16 %v377, %v377
        %v385 = vpack.c.bf16 %v378, %v378
        %v386 = vpack.c.bf16 %v379, %v379
        %v387 = vpack.c.bf16 %v380, %v380
        %v388 = vpack.c.bf16 %v381, %v381
        %v389 = vpack.c.bf16 %v382, %v382
        %v390 = vld [vmem:[#allocation2] sm:$0xff]
        %v391 = vld [vmem:[#allocation2 + $0x8] sm:$0xff]
        %v392 = vld [vmem:[#allocation2 + $0x10] sm:$0xff]
        %v393 = vld [vmem:[#allocation2 + $0x18] sm:$0xff]
        %v394 = vld [vmem:[#allocation2 + $0x20] sm:$0xff]
        %v395 = vld [vmem:[#allocation2 + $0x28] sm:$0xff]
        %v396 = vld [vmem:[#allocation2 + $0x30] sm:$0xff]
        %v397 = vld [vmem:[#allocation2 + $0x38] sm:$0xff]
        %v398 = vld [vmem:[#allocation2 + $0x40] sm:$0xff]
        %v399 = vld [vmem:[#allocation2 + $0x48] sm:$0xff]
        %v400 = vld [vmem:[#allocation2 + $0x50] sm:$0xff]
        %v401 = vld [vmem:[#allocation2 + $0x58] sm:$0xff]
        %v402 = vld [vmem:[#allocation2 + $0x60] sm:$0xff]
        %v403 = vld [vmem:[#allocation2 + $0x68] sm:$0xff]
        %v404 = vld [vmem:[#allocation2 + $0x70] sm:$0xff]
        %v405 = vld [vmem:[#allocation2 + $0x78] sm:$0xff]
        %v406 = vld [vmem:[#allocation2 + $0x80] sm:$0xff]
        %v407 = vld [vmem:[#allocation2 + $0x88] sm:$0xff]
        %v408 = vld [vmem:[#allocation2 + $0x90] sm:$0xff]
        %v409 = vld [vmem:[#allocation2 + $0x98] sm:$0xff]
        %v410 = vld [vmem:[#allocation2 + $0xa0] sm:$0xff]
        %v411 = vld [vmem:[#allocation2 + $0xa8] sm:$0xff]
        %v412 = vld [vmem:[#allocation2 + $0xb0] sm:$0xff]
        %v413 = vld [vmem:[#allocation2 + $0xb8] sm:$0xff]
        %v414 = vld [vmem:[#allocation2 + $0xc0] sm:$0xff]
        %v415 = vld [vmem:[#allocation2 + $0xc8] sm:$0xff]
        %v416 = vld [vmem:[#allocation2 + $0xd0] sm:$0xff]
        %v417 = vld [vmem:[#allocation2 + $0xd8] sm:$0xff]
        %v418 = vld [vmem:[#allocation2 + $0xe0] sm:$0xff]
        %v419 = vld [vmem:[#allocation2 + $0xe8] sm:$0xff]
        %v420 = vld [vmem:[#allocation2 + $0xf0] sm:$0xff]
        %v421 = vld [vmem:[#allocation2 + $0xf8] sm:$0xff]
        %v422 = vld [vmem:[#allocation2 + $0x100] sm:$0xff]
        %v423 = vld [vmem:[#allocation2 + $0x108] sm:$0xff]
        %v424 = vld [vmem:[#allocation2 + $0x110] sm:$0xff]
        %v425 = vld [vmem:[#allocation2 + $0x118] sm:$0xff]
        %v426 = vld [vmem:[#allocation2 + $0x120] sm:$0xff]
        %v427 = vld [vmem:[#allocation2 + $0x128] sm:$0xff]
        %v428 = vld [vmem:[#allocation2 + $0x130] sm:$0xff]
        %v429 = vld [vmem:[#allocation2 + $0x138] sm:$0xff]
        %v430 = vld [vmem:[#allocation2 + $0x140] sm:$0xff]
        %v431 = vld [vmem:[#allocation2 + $0x148] sm:$0xff]
        %v432 = vld [vmem:[#allocation2 + $0x150] sm:$0xff]
        %v433 = vld [vmem:[#allocation2 + $0x158] sm:$0xff]
        %v434 = vld [vmem:[#allocation2 + $0x160] sm:$0xff]
        %v435 = vld [vmem:[#allocation2 + $0x168] sm:$0xff]
        %v436 = vld [vmem:[#allocation2 + $0x170] sm:$0xff]
        %v437 = vld [vmem:[#allocation2 + $0x178] sm:$0xff]
        %v438 = vld [vmem:[#allocation2 + $0x180] sm:$0xff]
        %v439 = vld [vmem:[#allocation2 + $0x188] sm:$0xff]
        %v440 = vld [vmem:[#allocation2 + $0x190] sm:$0xff]
        %v441 = vld [vmem:[#allocation2 + $0x198] sm:$0xff]
        %v442 = vld [vmem:[#allocation2 + $0x1a0] sm:$0xff]
        %v443 = vld [vmem:[#allocation2 + $0x1a8] sm:$0xff]
        %v444 = vld [vmem:[#allocation2 + $0x1b0] sm:$0xff]
        %v445 = vld [vmem:[#allocation2 + $0x1b8] sm:$0xff]
        %v446 = vld [vmem:[#allocation2 + $0x1c0] sm:$0xff]
        %v447 = vld [vmem:[#allocation2 + $0x1c8] sm:$0xff]
        %v448 = vld [vmem:[#allocation2 + $0x1d0] sm:$0xff]
        %v449 = vld [vmem:[#allocation2 + $0x1d8] sm:$0xff]
        %v450 = vld [vmem:[#allocation2 + $0x1e0] sm:$0xff]
        %v451 = vld [vmem:[#allocation2 + $0x1e8] sm:$0xff]
        %v452 = vld [vmem:[#allocation2 + $0x1f0] sm:$0xff]
        %v453 = vld [vmem:[#allocation2 + $0x1f8] sm:$0xff]
        %v454 = vld [vmem:[#allocation2 + $0x200] sm:$0xff]
        %v455 = vld [vmem:[#allocation2 + $0x208] sm:$0xff]
        %v456 = vld [vmem:[#allocation2 + $0x210] sm:$0xff]
        %v457 = vld [vmem:[#allocation2 + $0x218] sm:$0xff]
        %v458 = vld [vmem:[#allocation2 + $0x220] sm:$0xff]
        %v459 = vld [vmem:[#allocation2 + $0x228] sm:$0xff]
        %v460 = vld [vmem:[#allocation2 + $0x230] sm:$0xff]
        %v461 = vld [vmem:[#allocation2 + $0x238] sm:$0xff]
        %v462 = vld [vmem:[#allocation2 + $0x240] sm:$0xff]
        %v463 = vld [vmem:[#allocation2 + $0x248] sm:$0xff]
        %v464 = vld [vmem:[#allocation2 + $0x250] sm:$0xff]
        %v465 = vld [vmem:[#allocation2 + $0x258] sm:$0xff]
        %v466 = vld [vmem:[#allocation2 + $0x260] sm:$0xff]
        %v467 = vld [vmem:[#allocation2 + $0x268] sm:$0xff]
        %v468 = vld [vmem:[#allocation2 + $0x270] sm:$0xff]
        %v469 = vld [vmem:[#allocation2 + $0x278] sm:$0xff]
        %v470 = vld [vmem:[#allocation2 + $0x280] sm:$0xff]
        %v471 = vld [vmem:[#allocation2 + $0x288] sm:$0xff]
        %v472 = vld [vmem:[#allocation2 + $0x290] sm:$0xff]
        %v473 = vld [vmem:[#allocation2 + $0x298] sm:$0xff]
        %v474 = vld [vmem:[#allocation2 + $0x2a0] sm:$0xff]
        %v475 = vld [vmem:[#allocation2 + $0x2a8] sm:$0xff]
        %v476 = vld [vmem:[#allocation2 + $0x2b0] sm:$0xff]
        %v477 = vld [vmem:[#allocation2 + $0x2b8] sm:$0xff]
        %v478 = vld [vmem:[#allocation2 + $0x2c0] sm:$0xff]
        %v479 = vld [vmem:[#allocation2 + $0x2c8] sm:$0xff]
        %v480 = vld [vmem:[#allocation2 + $0x2d0] sm:$0xff]
        %v481 = vld [vmem:[#allocation2 + $0x2d8] sm:$0xff]
        %v482 = vld [vmem:[#allocation2 + $0x2e0] sm:$0xff]
        %v483 = vld [vmem:[#allocation2 + $0x2e8] sm:$0xff]
        %v484 = vld [vmem:[#allocation2 + $0x2f0] sm:$0xff]
        %v485 = vld [vmem:[#allocation2 + $0x2f8] sm:$0xff]
        %v486 = vld [vmem:[#allocation2 + $0x300] sm:$0xff]
        %v487 = vld [vmem:[#allocation2 + $0x308] sm:$0xff]
        %v488 = vld [vmem:[#allocation2 + $0x310] sm:$0xff]
        %v489 = vld [vmem:[#allocation2 + $0x318] sm:$0xff]
        %v490 = vld [vmem:[#allocation2 + $0x320] sm:$0xff]
        %v491 = vld [vmem:[#allocation2 + $0x328] sm:$0xff]
        %v492 = vld [vmem:[#allocation2 + $0x330] sm:$0xff]
        %v493 = vld [vmem:[#allocation2 + $0x338] sm:$0xff]
        %v494 = vld [vmem:[#allocation2 + $0x340] sm:$0xff]
        %v495 = vld [vmem:[#allocation2 + $0x348] sm:$0xff]
        %v496 = vld [vmem:[#allocation2 + $0x350] sm:$0xff]
        %v497 = vld [vmem:[#allocation2 + $0x358] sm:$0xff]
        %v498 = vld [vmem:[#allocation2 + $0x360] sm:$0xff]
        %v499 = vld [vmem:[#allocation2 + $0x368] sm:$0xff]
        %v500 = vld [vmem:[#allocation2 + $0x370] sm:$0xff]
        %v501 = vld [vmem:[#allocation2 + $0x378] sm:$0xff]
        %v502 = vld [vmem:[#allocation2 + $0x380] sm:$0xff]
        %v503 = vld [vmem:[#allocation2 + $0x388] sm:$0xff]
        %v504 = vld [vmem:[#allocation2 + $0x390] sm:$0xff]
        %v505 = vld [vmem:[#allocation2 + $0x398] sm:$0xff]
        %v506 = vld [vmem:[#allocation2 + $0x3a0] sm:$0xff]
        %v507 = vld [vmem:[#allocation2 + $0x3a8] sm:$0xff]
        %v508 = vld [vmem:[#allocation2 + $0x3b0] sm:$0xff]
        %v509 = vld [vmem:[#allocation2 + $0x3b8] sm:$0xff]
        %v510 = vld [vmem:[#allocation2 + $0x3c0] sm:$0xff]
        %v511 = vld [vmem:[#allocation2 + $0x3c8] sm:$0xff]
        %v512 = vld [vmem:[#allocation2 + $0x3d0] sm:$0xff]
        %v513 = vld [vmem:[#allocation2 + $0x3d8] sm:$0xff]
        %v514 = vld [vmem:[#allocation2 + $0x3e0] sm:$0xff]
        %v515 = vld [vmem:[#allocation2 + $0x3e8] sm:$0xff]
        %v516 = vld [vmem:[#allocation2 + $0x3f0] sm:$0xff]
        %v517 = vld [vmem:[#allocation2 + $0x3f8] sm:$0xff]
        %v518 = vld [vmem:[#allocation2 + $0x400] sm:$0xff]
        %v519 = vld [vmem:[#allocation2 + $0x408] sm:$0xff]
        %v520 = vld [vmem:[#allocation2 + $0x410] sm:$0xff]
        %v521 = vld [vmem:[#allocation2 + $0x418] sm:$0xff]
        %v522 = vld [vmem:[#allocation2 + $0x420] sm:$0xff]
        %v523 = vld [vmem:[#allocation2 + $0x428] sm:$0xff]
        %v524 = vld [vmem:[#allocation2 + $0x430] sm:$0xff]
        %v525 = vld [vmem:[#allocation2 + $0x438] sm:$0xff]
        %v526 = vld [vmem:[#allocation2 + $0x440] sm:$0xff]
        %v527 = vld [vmem:[#allocation2 + $0x448] sm:$0xff]
        %v528 = vld [vmem:[#allocation2 + $0x450] sm:$0xff]
        %v529 = vld [vmem:[#allocation2 + $0x458] sm:$0xff]
        %v530 = vld [vmem:[#allocation2 + $0x460] sm:$0xff]
        %v531 = vld [vmem:[#allocation2 + $0x468] sm:$0xff]
        %v532 = vld [vmem:[#allocation2 + $0x470] sm:$0xff]
        %v533 = vld [vmem:[#allocation2 + $0x478] sm:$0xff]
        %v534 = vld [vmem:[#allocation2 + $0x480] sm:$0xff]
        %v535 = vld [vmem:[#allocation2 + $0x488] sm:$0xff]
        %v536 = vld [vmem:[#allocation2 + $0x490] sm:$0xff]
        %v537 = vld [vmem:[#allocation2 + $0x498] sm:$0xff]
        %v538 = vld [vmem:[#allocation2 + $0x4a0] sm:$0xff]
        %v539 = vld [vmem:[#allocation2 + $0x4a8] sm:$0xff]
        %v540 = vld [vmem:[#allocation2 + $0x4b0] sm:$0xff]
        %v541 = vld [vmem:[#allocation2 + $0x4b8] sm:$0xff]
        %v542 = vld [vmem:[#allocation2 + $0x4c0] sm:$0xff]
        %v543 = vld [vmem:[#allocation2 + $0x4c8] sm:$0xff]
        %v544 = vld [vmem:[#allocation2 + $0x4d0] sm:$0xff]
        %v545 = vld [vmem:[#allocation2 + $0x4d8] sm:$0xff]
        %v546 = vld [vmem:[#allocation2 + $0x4e0] sm:$0xff]
        %v547 = vld [vmem:[#allocation2 + $0x4e8] sm:$0xff]
        %v548 = vld [vmem:[#allocation2 + $0x4f0] sm:$0xff]
        %v549 = vld [vmem:[#allocation2 + $0x4f8] sm:$0xff]
        %v550 = vld [vmem:[#allocation2 + $0x500] sm:$0xff]
        %v551 = vld [vmem:[#allocation2 + $0x508] sm:$0xff]
        %v552 = vld [vmem:[#allocation2 + $0x510] sm:$0xff]
        %v553 = vld [vmem:[#allocation2 + $0x518] sm:$0xff]
        %v554 = vld [vmem:[#allocation2 + $0x520] sm:$0xff]
        %v555 = vld [vmem:[#allocation2 + $0x528] sm:$0xff]
        %v556 = vld [vmem:[#allocation2 + $0x530] sm:$0xff]
        %v557 = vld [vmem:[#allocation2 + $0x538] sm:$0xff]
        %v558 = vld [vmem:[#allocation2 + $0x540] sm:$0xff]
        %v559 = vld [vmem:[#allocation2 + $0x548] sm:$0xff]
        %v560 = vld [vmem:[#allocation2 + $0x550] sm:$0xff]
        %v561 = vld [vmem:[#allocation2 + $0x558] sm:$0xff]
        %v562 = vld [vmem:[#allocation2 + $0x560] sm:$0xff]
        %v563 = vld [vmem:[#allocation2 + $0x568] sm:$0xff]
        %v564 = vld [vmem:[#allocation2 + $0x570] sm:$0xff]
        %v565 = vld [vmem:[#allocation2 + $0x578] sm:$0xff]
        %v566 = vld [vmem:[#allocation2 + $0x580] sm:$0xff]
        %v567 = vld [vmem:[#allocation2 + $0x588] sm:$0xff]
        %v568 = vld [vmem:[#allocation2 + $0x590] sm:$0xff]
        %v569 = vld [vmem:[#allocation2 + $0x598] sm:$0xff]
        %v570 = vld [vmem:[#allocation2 + $0x5a0] sm:$0xff]
        %v571 = vld [vmem:[#allocation2 + $0x5a8] sm:$0xff]
        %v572 = vld [vmem:[#allocation2 + $0x5b0] sm:$0xff]
        %v573 = vld [vmem:[#allocation2 + $0x5b8] sm:$0xff]
        %v574 = vld [vmem:[#allocation2 + $0x5c0] sm:$0xff]
        %v575 = vld [vmem:[#allocation2 + $0x5c8] sm:$0xff]
        %v576 = vld [vmem:[#allocation2 + $0x5d0] sm:$0xff]
        %v577 = vld [vmem:[#allocation2 + $0x5d8] sm:$0xff]
        %v578 = vld [vmem:[#allocation2 + $0x5e0] sm:$0xff]
        %v579 = vld [vmem:[#allocation2 + $0x5e8] sm:$0xff]
        %v580 = vld [vmem:[#allocation2 + $0x5f0] sm:$0xff]
        %v581 = vld [vmem:[#allocation2 + $0x5f8] sm:$0xff]
        %v582 = vld [vmem:[#allocation2 + $0x600] sm:$0xff]
        %v583 = vld [vmem:[#allocation2 + $0x608] sm:$0xff]
        %v584 = vld [vmem:[#allocation2 + $0x610] sm:$0xff]
        %v585 = vld [vmem:[#allocation2 + $0x618] sm:$0xff]
        %v586 = vld [vmem:[%s2] sm:$0xf]
        %v588 = vlaneseq
        %v589 = vshrl.u32 %v588, 7
        %v590 = vsub.s32 0, %v589
        %v591 = vrot.slane %v586, %v590
        %v592 = vlaneseq
        %v593 = vshrl.u32 %v592, 7
        %v594 = vsub.s32 1, %v593
        %v595 = vrot.slane %v586, %v594
        %v596 = vlaneseq
        %v597 = vshrl.u32 %v596, 7
        %v598 = vsub.s32 2, %v597
        %v599 = vrot.slane %v586, %v598
        %v600 = vlaneseq
        %v601 = vshrl.u32 %v600, 7
        %v602 = vsub.s32 3, %v601
        %v603 = vrot.slane %v586, %v602
        %v804 = vunpack.c.l.b16 %v390
        %v805 = vunpack.c.h.b16 %v390
        %v806 = vunpack.c.l.b16 %v391
        %v807 = vunpack.c.h.b16 %v391
        %v808 = vunpack.c.l.b16 %v392
        %v809 = vunpack.c.h.b16 %v392
        %v810 = vunpack.c.l.b16 %v393
        %v811 = vunpack.c.h.b16 %v393
        %v812 = vunpack.c.l.b16 %v394
        %v813 = vunpack.c.h.b16 %v394
        %v814 = vunpack.c.l.b16 %v395
        %v815 = vunpack.c.h.b16 %v395
        %v816 = vunpack.c.l.b16 %v396
        %v817 = vunpack.c.h.b16 %v396
        %v818 = vunpack.c.l.b16 %v397
        %v819 = vunpack.c.h.b16 %v397
        %v820 = vunpack.c.l.b16 %v398
        %v821 = vunpack.c.h.b16 %v398
        %v822 = vunpack.c.l.b16 %v399
        %v823 = vunpack.c.h.b16 %v399
        %v824 = vunpack.c.l.b16 %v400
        %v825 = vunpack.c.h.b16 %v400
        %v826 = vunpack.c.l.b16 %v401
        %v827 = vunpack.c.h.b16 %v401
        %v828 = vunpack.c.l.b16 %v402
        %v829 = vunpack.c.h.b16 %v402
        %v830 = vunpack.c.l.b16 %v403
        %v831 = vunpack.c.h.b16 %v403
        %v832 = vunpack.c.l.b16 %v404
        %v833 = vunpack.c.h.b16 %v404
        %v834 = vunpack.c.l.b16 %v405
        %v835 = vunpack.c.h.b16 %v405
        %v836 = vunpack.c.l.b16 %v406
        %v837 = vunpack.c.h.b16 %v406
        %v838 = vunpack.c.l.b16 %v407
        %v839 = vunpack.c.h.b16 %v407
        %v840 = vunpack.c.l.b16 %v408
        %v841 = vunpack.c.h.b16 %v408
        %v842 = vunpack.c.l.b16 %v409
        %v843 = vunpack.c.h.b16 %v409
        %v844 = vunpack.c.l.b16 %v410
        %v845 = vunpack.c.h.b16 %v410
        %v846 = vunpack.c.l.b16 %v411
        %v847 = vunpack.c.h.b16 %v411
        %v848 = vunpack.c.l.b16 %v412
        %v849 = vunpack.c.h.b16 %v412
        %v850 = vunpack.c.l.b16 %v413
        %v851 = vunpack.c.h.b16 %v413
        %v852 = vunpack.c.l.b16 %v414
        %v853 = vunpack.c.h.b16 %v414
        %v854 = vunpack.c.l.b16 %v415
        %v855 = vunpack.c.h.b16 %v415
        %v856 = vunpack.c.l.b16 %v416
        %v857 = vunpack.c.h.b16 %v416
        %v858 = vunpack.c.l.b16 %v417
        %v859 = vunpack.c.h.b16 %v417
        %v860 = vunpack.c.l.b16 %v418
        %v861 = vunpack.c.h.b16 %v418
        %v862 = vunpack.c.l.b16 %v419
        %v863 = vunpack.c.h.b16 %v419
        %v864 = vunpack.c.l.b16 %v420
        %v865 = vunpack.c.h.b16 %v420
        %v866 = vunpack.c.l.b16 %v421
        %v867 = vunpack.c.h.b16 %v421
        %v868 = vunpack.c.l.b16 %v422
        %v869 = vunpack.c.h.b16 %v422
        %v870 = vunpack.c.l.b16 %v423
        %v871 = vunpack.c.h.b16 %v423
        %v872 = vunpack.c.l.b16 %v424
        %v873 = vunpack.c.h.b16 %v424
        %v874 = vunpack.c.l.b16 %v425
        %v875 = vunpack.c.h.b16 %v425
        %v876 = vunpack.c.l.b16 %v426
        %v877 = vunpack.c.h.b16 %v426
        %v878 = vunpack.c.l.b16 %v427
        %v879 = vunpack.c.h.b16 %v427
        %v880 = vunpack.c.l.b16 %v428
        %v881 = vunpack.c.h.b16 %v428
        %v882 = vunpack.c.l.b16 %v429
        %v883 = vunpack.c.h.b16 %v429
        %v884 = vunpack.c.l.b16 %v430
        %v885 = vunpack.c.h.b16 %v430
        %v886 = vunpack.c.l.b16 %v431
        %v887 = vunpack.c.h.b16 %v431
        %v888 = vunpack.c.l.b16 %v432
        %v889 = vunpack.c.h.b16 %v432
        %v890 = vunpack.c.l.b16 %v433
        %v891 = vunpack.c.h.b16 %v433
        %v892 = vunpack.c.l.b16 %v434
        %v893 = vunpack.c.h.b16 %v434
        %v894 = vunpack.c.l.b16 %v435
        %v895 = vunpack.c.h.b16 %v435
        %v896 = vunpack.c.l.b16 %v436
        %v897 = vunpack.c.h.b16 %v436
        %v898 = vunpack.c.l.b16 %v437
        %v899 = vunpack.c.h.b16 %v437
        %v900 = vunpack.c.l.b16 %v438
        %v901 = vunpack.c.h.b16 %v438
        %v902 = vunpack.c.l.b16 %v439
        %v903 = vunpack.c.h.b16 %v439
        %v904 = vunpack.c.l.b16 %v440
        %v905 = vunpack.c.h.b16 %v440
        %v906 = vunpack.c.l.b16 %v441
        %v907 = vunpack.c.h.b16 %v441
        %v908 = vunpack.c.l.b16 %v442
        %v909 = vunpack.c.h.b16 %v442
        %v910 = vunpack.c.l.b16 %v443
        %v911 = vunpack.c.h.b16 %v443
        %v912 = vunpack.c.l.b16 %v444
        %v913 = vunpack.c.h.b16 %v444
        %v914 = vunpack.c.l.b16 %v445
        %v915 = vunpack.c.h.b16 %v445
        %v916 = vunpack.c.l.b16 %v446
        %v917 = vunpack.c.h.b16 %v446
        %v918 = vunpack.c.l.b16 %v447
        %v919 = vunpack.c.h.b16 %v447
        %v920 = vunpack.c.l.b16 %v448
        %v921 = vunpack.c.h.b16 %v448
        %v922 = vunpack.c.l.b16 %v449
        %v923 = vunpack.c.h.b16 %v449
        %v924 = vunpack.c.l.b16 %v450
        %v925 = vunpack.c.h.b16 %v450
        %v926 = vunpack.c.l.b16 %v451
        %v927 = vunpack.c.h.b16 %v451
        %v928 = vunpack.c.l.b16 %v452
        %v929 = vunpack.c.h.b16 %v452
        %v930 = vunpack.c.l.b16 %v453
        %v931 = vunpack.c.h.b16 %v453
        %v932 = vunpack.c.l.b16 %v454
        %v933 = vunpack.c.h.b16 %v454
        %v934 = vunpack.c.l.b16 %v455
        %v935 = vunpack.c.h.b16 %v455
        %v936 = vunpack.c.l.b16 %v456
        %v937 = vunpack.c.h.b16 %v456
        %v938 = vunpack.c.l.b16 %v457
        %v939 = vunpack.c.h.b16 %v457
        %v940 = vunpack.c.l.b16 %v458
        %v941 = vunpack.c.h.b16 %v458
        %v942 = vunpack.c.l.b16 %v459
        %v943 = vunpack.c.h.b16 %v459
        %v944 = vunpack.c.l.b16 %v460
        %v945 = vunpack.c.h.b16 %v460
        %v946 = vunpack.c.l.b16 %v461
        %v947 = vunpack.c.h.b16 %v461
        %v948 = vunpack.c.l.b16 %v462
        %v949 = vunpack.c.h.b16 %v462
        %v950 = vunpack.c.l.b16 %v463
        %v951 = vunpack.c.h.b16 %v463
        %v952 = vunpack.c.l.b16 %v464
        %v953 = vunpack.c.h.b16 %v464
        %v954 = vunpack.c.l.b16 %v465
        %v955 = vunpack.c.h.b16 %v465
        %v956 = vunpack.c.l.b16 %v466
        %v957 = vunpack.c.h.b16 %v466
        %v958 = vunpack.c.l.b16 %v467
        %v959 = vunpack.c.h.b16 %v467
        %v960 = vunpack.c.l.b16 %v468
        %v961 = vunpack.c.h.b16 %v468
        %v962 = vunpack.c.l.b16 %v469
        %v963 = vunpack.c.h.b16 %v469
        %v964 = vunpack.c.l.b16 %v470
        %v965 = vunpack.c.h.b16 %v470
        %v966 = vunpack.c.l.b16 %v471
        %v967 = vunpack.c.h.b16 %v471
        %v968 = vunpack.c.l.b16 %v472
        %v969 = vunpack.c.h.b16 %v472
        %v970 = vunpack.c.l.b16 %v473
        %v971 = vunpack.c.h.b16 %v473
        %v972 = vunpack.c.l.b16 %v474
        %v973 = vunpack.c.h.b16 %v474
        %v974 = vunpack.c.l.b16 %v475
        %v975 = vunpack.c.h.b16 %v475
        %v976 = vunpack.c.l.b16 %v476
        %v977 = vunpack.c.h.b16 %v476
        %v978 = vunpack.c.l.b16 %v477
        %v979 = vunpack.c.h.b16 %v477
        %v980 = vunpack.c.l.b16 %v478
        %v981 = vunpack.c.h.b16 %v478
        %v982 = vunpack.c.l.b16 %v479
        %v983 = vunpack.c.h.b16 %v479
        %v984 = vunpack.c.l.b16 %v480
        %v985 = vunpack.c.h.b16 %v480
        %v986 = vunpack.c.l.b16 %v481
        %v987 = vunpack.c.h.b16 %v481
        %v988 = vunpack.c.l.b16 %v482
        %v989 = vunpack.c.h.b16 %v482
        %v990 = vunpack.c.l.b16 %v483
        %v991 = vunpack.c.h.b16 %v483
        %v992 = vunpack.c.l.b16 %v484
        %v993 = vunpack.c.h.b16 %v484
        %v994 = vunpack.c.l.b16 %v485
        %v995 = vunpack.c.h.b16 %v485
        %v996 = vunpack.c.l.b16 %v486
        %v997 = vunpack.c.h.b16 %v486
        %v998 = vunpack.c.l.b16 %v487
        %v999 = vunpack.c.h.b16 %v487
        %v1000 = vunpack.c.l.b16 %v488
        %v1001 = vunpack.c.h.b16 %v488
        %v1002 = vunpack.c.l.b16 %v489
        %v1003 = vunpack.c.h.b16 %v489
        %v1004 = vunpack.c.l.b16 %v490
        %v1005 = vunpack.c.h.b16 %v490
        %v1006 = vunpack.c.l.b16 %v491
        %v1007 = vunpack.c.h.b16 %v491
        %v1008 = vunpack.c.l.b16 %v492
        %v1009 = vunpack.c.h.b16 %v492
        %v1010 = vunpack.c.l.b16 %v493
        %v1011 = vunpack.c.h.b16 %v493
        %v1012 = vunpack.c.l.b16 %v494
        %v1013 = vunpack.c.h.b16 %v494
        %v1014 = vunpack.c.l.b16 %v495
        %v1015 = vunpack.c.h.b16 %v495
        %v1016 = vunpack.c.l.b16 %v496
        %v1017 = vunpack.c.h.b16 %v496
        %v1018 = vunpack.c.l.b16 %v497
        %v1019 = vunpack.c.h.b16 %v497
        %v1020 = vunpack.c.l.b16 %v498
        %v1021 = vunpack.c.h.b16 %v498
        %v1022 = vunpack.c.l.b16 %v499
        %v1023 = vunpack.c.h.b16 %v499
        %v1024 = vunpack.c.l.b16 %v500
        %v1025 = vunpack.c.h.b16 %v500
        %v1026 = vunpack.c.l.b16 %v501
        %v1027 = vunpack.c.h.b16 %v501
        %v1028 = vunpack.c.l.b16 %v502
        %v1029 = vunpack.c.h.b16 %v502
        %v1030 = vunpack.c.l.b16 %v503
        %v1031 = vunpack.c.h.b16 %v503
        %v1032 = vunpack.c.l.b16 %v504
        %v1033 = vunpack.c.h.b16 %v504
        %v1034 = vunpack.c.l.b16 %v505
        %v1035 = vunpack.c.h.b16 %v505
        %v1036 = vunpack.c.l.b16 %v506
        %v1037 = vunpack.c.h.b16 %v506
        %v1038 = vunpack.c.l.b16 %v507
        %v1039 = vunpack.c.h.b16 %v507
        %v1040 = vunpack.c.l.b16 %v508
        %v1041 = vunpack.c.h.b16 %v508
        %v1042 = vunpack.c.l.b16 %v509
        %v1043 = vunpack.c.h.b16 %v509
        %v1044 = vunpack.c.l.b16 %v510
        %v1045 = vunpack.c.h.b16 %v510
        %v1046 = vunpack.c.l.b16 %v511
        %v1047 = vunpack.c.h.b16 %v511
        %v1048 = vunpack.c.l.b16 %v512
        %v1049 = vunpack.c.h.b16 %v512
        %v1050 = vunpack.c.l.b16 %v513
        %v1051 = vunpack.c.h.b16 %v513
        %v1052 = vunpack.c.l.b16 %v514
        %v1053 = vunpack.c.h.b16 %v514
        %v1054 = vunpack.c.l.b16 %v515
        %v1055 = vunpack.c.h.b16 %v515
        %v1056 = vunpack.c.l.b16 %v516
        %v1057 = vunpack.c.h.b16 %v516
        %v1058 = vunpack.c.l.b16 %v517
        %v1059 = vunpack.c.h.b16 %v517
        %v1060 = vunpack.c.l.b16 %v518
        %v1061 = vunpack.c.h.b16 %v518
        %v1062 = vunpack.c.l.b16 %v519
        %v1063 = vunpack.c.h.b16 %v519
        %v1064 = vunpack.c.l.b16 %v520
        %v1065 = vunpack.c.h.b16 %v520
        %v1066 = vunpack.c.l.b16 %v521
        %v1067 = vunpack.c.h.b16 %v521
        %v1068 = vunpack.c.l.b16 %v522
        %v1069 = vunpack.c.h.b16 %v522
        %v1070 = vunpack.c.l.b16 %v523
        %v1071 = vunpack.c.h.b16 %v523
        %v1072 = vunpack.c.l.b16 %v524
        %v1073 = vunpack.c.h.b16 %v524
        %v1074 = vunpack.c.l.b16 %v525
        %v1075 = vunpack.c.h.b16 %v525
        %v1076 = vunpack.c.l.b16 %v526
        %v1077 = vunpack.c.h.b16 %v526
        %v1078 = vunpack.c.l.b16 %v527
        %v1079 = vunpack.c.h.b16 %v527
        %v1080 = vunpack.c.l.b16 %v528
        %v1081 = vunpack.c.h.b16 %v528
        %v1082 = vunpack.c.l.b16 %v529
        %v1083 = vunpack.c.h.b16 %v529
        %v1084 = vunpack.c.l.b16 %v530
        %v1085 = vunpack.c.h.b16 %v530
        %v1086 = vunpack.c.l.b16 %v531
        %v1087 = vunpack.c.h.b16 %v531
        %v1088 = vunpack.c.l.b16 %v532
        %v1089 = vunpack.c.h.b16 %v532
        %v1090 = vunpack.c.l.b16 %v533
        %v1091 = vunpack.c.h.b16 %v533
        %v1092 = vunpack.c.l.b16 %v534
        %v1093 = vunpack.c.h.b16 %v534
        %v1094 = vunpack.c.l.b16 %v535
        %v1095 = vunpack.c.h.b16 %v535
        %v1096 = vunpack.c.l.b16 %v536
        %v1097 = vunpack.c.h.b16 %v536
        %v1098 = vunpack.c.l.b16 %v537
        %v1099 = vunpack.c.h.b16 %v537
        %v1100 = vunpack.c.l.b16 %v538
        %v1101 = vunpack.c.h.b16 %v538
        %v1102 = vunpack.c.l.b16 %v539
        %v1103 = vunpack.c.h.b16 %v539
        %v1104 = vunpack.c.l.b16 %v540
        %v1105 = vunpack.c.h.b16 %v540
        %v1106 = vunpack.c.l.b16 %v541
        %v1107 = vunpack.c.h.b16 %v541
        %v1108 = vunpack.c.l.b16 %v542
        %v1109 = vunpack.c.h.b16 %v542
        %v1110 = vunpack.c.l.b16 %v543
        %v1111 = vunpack.c.h.b16 %v543
        %v1112 = vunpack.c.l.b16 %v544
        %v1113 = vunpack.c.h.b16 %v544
        %v1114 = vunpack.c.l.b16 %v545
        %v1115 = vunpack.c.h.b16 %v545
        %v1116 = vunpack.c.l.b16 %v546
        %v1117 = vunpack.c.h.b16 %v546
        %v1118 = vunpack.c.l.b16 %v547
        %v1119 = vunpack.c.h.b16 %v547
        %v1120 = vunpack.c.l.b16 %v548
        %v1121 = vunpack.c.h.b16 %v548
        %v1122 = vunpack.c.l.b16 %v549
        %v1123 = vunpack.c.h.b16 %v549
        %v1124 = vunpack.c.l.b16 %v550
        %v1125 = vunpack.c.h.b16 %v550
        %v1126 = vunpack.c.l.b16 %v551
        %v1127 = vunpack.c.h.b16 %v551
        %v1128 = vunpack.c.l.b16 %v552
        %v1129 = vunpack.c.h.b16 %v552
        %v1130 = vunpack.c.l.b16 %v553
        %v1131 = vunpack.c.h.b16 %v553
        %v1132 = vunpack.c.l.b16 %v554
        %v1133 = vunpack.c.h.b16 %v554
        %v1134 = vunpack.c.l.b16 %v555
        %v1135 = vunpack.c.h.b16 %v555
        %v1136 = vunpack.c.l.b16 %v556
        %v1137 = vunpack.c.h.b16 %v556
        %v1138 = vunpack.c.l.b16 %v557
        %v1139 = vunpack.c.h.b16 %v557
        %v1140 = vunpack.c.l.b16 %v558
        %v1141 = vunpack.c.h.b16 %v558
        %v1142 = vunpack.c.l.b16 %v559
        %v1143 = vunpack.c.h.b16 %v559
        %v1144 = vunpack.c.l.b16 %v560
        %v1145 = vunpack.c.h.b16 %v560
        %v1146 = vunpack.c.l.b16 %v561
        %v1147 = vunpack.c.h.b16 %v561
        %v1148 = vunpack.c.l.b16 %v562
        %v1149 = vunpack.c.h.b16 %v562
        %v1150 = vunpack.c.l.b16 %v563
        %v1151 = vunpack.c.h.b16 %v563
        %v1152 = vunpack.c.l.b16 %v564
        %v1153 = vunpack.c.h.b16 %v564
        %v1154 = vunpack.c.l.b16 %v565
        %v1155 = vunpack.c.h.b16 %v565
        %v1156 = vunpack.c.l.b16 %v566
        %v1157 = vunpack.c.h.b16 %v566
        %v1158 = vunpack.c.l.b16 %v567
        %v1159 = vunpack.c.h.b16 %v567
        %v1160 = vunpack.c.l.b16 %v568
        %v1161 = vunpack.c.h.b16 %v568
        %v1162 = vunpack.c.l.b16 %v569
        %v1163 = vunpack.c.h.b16 %v569
        %v1164 = vunpack.c.l.b16 %v570
        %v1165 = vunpack.c.h.b16 %v570
        %v1166 = vunpack.c.l.b16 %v571
        %v1167 = vunpack.c.h.b16 %v571
        %v1168 = vunpack.c.l.b16 %v572
        %v1169 = vunpack.c.h.b16 %v572
        %v1170 = vunpack.c.l.b16 %v573
        %v1171 = vunpack.c.h.b16 %v573
        %v1172 = vunpack.c.l.b16 %v574
        %v1173 = vunpack.c.h.b16 %v574
        %v1174 = vunpack.c.l.b16 %v575
        %v1175 = vunpack.c.h.b16 %v575
        %v1176 = vunpack.c.l.b16 %v576
        %v1177 = vunpack.c.h.b16 %v576
        %v1178 = vunpack.c.l.b16 %v577
        %v1179 = vunpack.c.h.b16 %v577
        %v1180 = vunpack.c.l.b16 %v578
        %v1181 = vunpack.c.h.b16 %v578
        %v1182 = vunpack.c.l.b16 %v579
        %v1183 = vunpack.c.h.b16 %v579
        %v1184 = vunpack.c.l.b16 %v580
        %v1185 = vunpack.c.h.b16 %v580
        %v1186 = vunpack.c.l.b16 %v581
        %v1187 = vunpack.c.h.b16 %v581
        %v1188 = vunpack.c.l.b16 %v582
        %v1189 = vunpack.c.h.b16 %v582
        %v1190 = vunpack.c.l.b16 %v583
        %v1191 = vunpack.c.h.b16 %v583
        %v1192 = vunpack.c.l.b16 %v584
        %v1193 = vunpack.c.h.b16 %v584
        %v1194 = vunpack.c.l.b16 %v585
        %v1195 = vunpack.c.h.b16 %v585
        %v1196 = vpack.c.b16 %v808, %v804
        %v1197 = vpack.c.b16 %v809, %v805
        %v1198 = vpack.c.b16 %v810, %v806
        %v1199 = vpack.c.b16 %v811, %v807
        %v1200 = vpack.c.b16 %v816, %v812
        %v1201 = vpack.c.b16 %v817, %v813
        %v1202 = vpack.c.b16 %v818, %v814
        %v1203 = vpack.c.b16 %v819, %v815
        %v1204 = vpack.c.b16 %v824, %v820
        %v1205 = vpack.c.b16 %v825, %v821
        %v1206 = vpack.c.b16 %v826, %v822
        %v1207 = vpack.c.b16 %v827, %v823
        %v1208 = vpack.c.b16 %v832, %v828
        %v1209 = vpack.c.b16 %v833, %v829
        %v1210 = vpack.c.b16 %v834, %v830
        %v1211 = vpack.c.b16 %v835, %v831
        %v1212 = vpack.c.b16 %v840, %v836
        %v1213 = vpack.c.b16 %v841, %v837
        %v1214 = vpack.c.b16 %v842, %v838
        %v1215 = vpack.c.b16 %v843, %v839
        %v1216 = vpack.c.b16 %v848, %v844
        %v1217 = vpack.c.b16 %v849, %v845
        %v1218 = vpack.c.b16 %v850, %v846
        %v1219 = vpack.c.b16 %v851, %v847
        %v1220 = vpack.c.b16 %v856, %v852
        %v1221 = vpack.c.b16 %v857, %v853
        %v1222 = vpack.c.b16 %v858, %v854
        %v1223 = vpack.c.b16 %v859, %v855
        %v1224 = vpack.c.b16 %v864, %v860
        %v1225 = vpack.c.b16 %v865, %v861
        %v1226 = vpack.c.b16 %v866, %v862
        %v1227 = vpack.c.b16 %v867, %v863
        %v1228 = vpack.c.b16 %v872, %v868
        %v1229 = vpack.c.b16 %v873, %v869
        %v1230 = vpack.c.b16 %v874, %v870
        %v1231 = vpack.c.b16 %v875, %v871
        %v1232 = vpack.c.b16 %v880, %v876
        %v1233 = vpack.c.b16 %v881, %v877
        %v1234 = vpack.c.b16 %v882, %v878
        %v1235 = vpack.c.b16 %v883, %v879
        %v1236 = vpack.c.b16 %v888, %v884
        %v1237 = vpack.c.b16 %v889, %v885
        %v1238 = vpack.c.b16 %v890, %v886
        %v1239 = vpack.c.b16 %v891, %v887
        %v1240 = vpack.c.b16 %v896, %v892
        %v1241 = vpack.c.b16 %v897, %v893
        %v1242 = vpack.c.b16 %v898, %v894
        %v1243 = vpack.c.b16 %v899, %v895
        %v1244 = vpack.c.b16 %v904, %v900
        %v1245 = vpack.c.b16 %v905, %v901
        %v1246 = vpack.c.b16 %v906, %v902
        %v1247 = vpack.c.b16 %v907, %v903
        %v1248 = vpack.c.b16 %v912, %v908
        %v1249 = vpack.c.b16 %v913, %v909
        %v1250 = vpack.c.b16 %v914, %v910
        %v1251 = vpack.c.b16 %v915, %v911
        %v1252 = vpack.c.b16 %v920, %v916
        %v1253 = vpack.c.b16 %v921, %v917
        %v1254 = vpack.c.b16 %v922, %v918
        %v1255 = vpack.c.b16 %v923, %v919
        %v1256 = vpack.c.b16 %v928, %v924
        %v1257 = vpack.c.b16 %v929, %v925
        %v1258 = vpack.c.b16 %v930, %v926
        %v1259 = vpack.c.b16 %v931, %v927
        %v1260 = vpack.c.b16 %v936, %v932
        %v1261 = vpack.c.b16 %v937, %v933
        %v1262 = vpack.c.b16 %v938, %v934
        %v1263 = vpack.c.b16 %v939, %v935
        %v1264 = vpack.c.b16 %v944, %v940
        %v1265 = vpack.c.b16 %v945, %v941
        %v1266 = vpack.c.b16 %v946, %v942
        %v1267 = vpack.c.b16 %v947, %v943
        %v1268 = vpack.c.b16 %v952, %v948
        %v1269 = vpack.c.b16 %v953, %v949
        %v1270 = vpack.c.b16 %v954, %v950
        %v1271 = vpack.c.b16 %v955, %v951
        %v1272 = vpack.c.b16 %v960, %v956
        %v1273 = vpack.c.b16 %v961, %v957
        %v1274 = vpack.c.b16 %v962, %v958
        %v1275 = vpack.c.b16 %v963, %v959
        %v1276 = vpack.c.b16 %v968, %v964
        %v1277 = vpack.c.b16 %v969, %v965
        %v1278 = vpack.c.b16 %v970, %v966
        %v1279 = vpack.c.b16 %v971, %v967
        %v1280 = vpack.c.b16 %v976, %v972
        %v1281 = vpack.c.b16 %v977, %v973
        %v1282 = vpack.c.b16 %v978, %v974
        %v1283 = vpack.c.b16 %v979, %v975
        %v1284 = vpack.c.b16 %v984, %v980
        %v1285 = vpack.c.b16 %v985, %v981
        %v1286 = vpack.c.b16 %v986, %v982
        %v1287 = vpack.c.b16 %v987, %v983
        %v1288 = vpack.c.b16 %v992, %v988
        %v1289 = vpack.c.b16 %v993, %v989
        %v1290 = vpack.c.b16 %v994, %v990
        %v1291 = vpack.c.b16 %v995, %v991
        %v1292 = vpack.c.b16 %v1000, %v996
        %v1293 = vpack.c.b16 %v1001, %v997
        %v1294 = vpack.c.b16 %v1002, %v998
        %v1295 = vpack.c.b16 %v1003, %v999
        %v1296 = vpack.c.b16 %v1008, %v1004
        %v1297 = vpack.c.b16 %v1009, %v1005
        %v1298 = vpack.c.b16 %v1010, %v1006
        %v1299 = vpack.c.b16 %v1011, %v1007
        %v1300 = vpack.c.b16 %v1016, %v1012
        %v1301 = vpack.c.b16 %v1017, %v1013
        %v1302 = vpack.c.b16 %v1018, %v1014
        %v1303 = vpack.c.b16 %v1019, %v1015
        %v1304 = vpack.c.b16 %v1024, %v1020
        %v1305 = vpack.c.b16 %v1025, %v1021
        %v1306 = vpack.c.b16 %v1026, %v1022
        %v1307 = vpack.c.b16 %v1027, %v1023
        %v1308 = vpack.c.b16 %v1032, %v1028
        %v1309 = vpack.c.b16 %v1033, %v1029
        %v1310 = vpack.c.b16 %v1034, %v1030
        %v1311 = vpack.c.b16 %v1035, %v1031
        %v1312 = vpack.c.b16 %v1040, %v1036
        %v1313 = vpack.c.b16 %v1041, %v1037
        %v1314 = vpack.c.b16 %v1042, %v1038
        %v1315 = vpack.c.b16 %v1043, %v1039
        %v1316 = vpack.c.b16 %v1048, %v1044
        %v1317 = vpack.c.b16 %v1049, %v1045
        %v1318 = vpack.c.b16 %v1050, %v1046
        %v1319 = vpack.c.b16 %v1051, %v1047
        %v1320 = vpack.c.b16 %v1056, %v1052
        %v1321 = vpack.c.b16 %v1057, %v1053
        %v1322 = vpack.c.b16 %v1058, %v1054
        %v1323 = vpack.c.b16 %v1059, %v1055
        %v1324 = vpack.c.b16 %v1064, %v1060
        %v1325 = vpack.c.b16 %v1065, %v1061
        %v1326 = vpack.c.b16 %v1066, %v1062
        %v1327 = vpack.c.b16 %v1067, %v1063
        %v1328 = vpack.c.b16 %v1072, %v1068
        %v1329 = vpack.c.b16 %v1073, %v1069
        %v1330 = vpack.c.b16 %v1074, %v1070
        %v1331 = vpack.c.b16 %v1075, %v1071
        %v1332 = vpack.c.b16 %v1080, %v1076
        %v1333 = vpack.c.b16 %v1081, %v1077
        %v1334 = vpack.c.b16 %v1082, %v1078
        %v1335 = vpack.c.b16 %v1083, %v1079
        %v1336 = vpack.c.b16 %v1088, %v1084
        %v1337 = vpack.c.b16 %v1089, %v1085
        %v1338 = vpack.c.b16 %v1090, %v1086
        %v1339 = vpack.c.b16 %v1091, %v1087
        %v1340 = vpack.c.b16 %v1096, %v1092
        %v1341 = vpack.c.b16 %v1097, %v1093
        %v1342 = vpack.c.b16 %v1098, %v1094
        %v1343 = vpack.c.b16 %v1099, %v1095
        %v1344 = vpack.c.b16 %v1104, %v1100
        %v1345 = vpack.c.b16 %v1105, %v1101
        %v1346 = vpack.c.b16 %v1106, %v1102
        %v1347 = vpack.c.b16 %v1107, %v1103
        %v1348 = vpack.c.b16 %v1112, %v1108
        %v1349 = vpack.c.b16 %v1113, %v1109
        %v1350 = vpack.c.b16 %v1114, %v1110
        %v1351 = vpack.c.b16 %v1115, %v1111
        %v1352 = vpack.c.b16 %v1120, %v1116
        %v1353 = vpack.c.b16 %v1121, %v1117
        %v1354 = vpack.c.b16 %v1122, %v1118
        %v1355 = vpack.c.b16 %v1123, %v1119
        %v1356 = vpack.c.b16 %v1128, %v1124
        %v1357 = vpack.c.b16 %v1129, %v1125
        %v1358 = vpack.c.b16 %v1130, %v1126
        %v1359 = vpack.c.b16 %v1131, %v1127
        %v1360 = vpack.c.b16 %v1136, %v1132
        %v1361 = vpack.c.b16 %v1137, %v1133
        %v1362 = vpack.c.b16 %v1138, %v1134
        %v1363 = vpack.c.b16 %v1139, %v1135
        %v1364 = vpack.c.b16 %v1144, %v1140
        %v1365 = vpack.c.b16 %v1145, %v1141
        %v1366 = vpack.c.b16 %v1146, %v1142
        %v1367 = vpack.c.b16 %v1147, %v1143
        %v1368 = vpack.c.b16 %v1152, %v1148
        %v1369 = vpack.c.b16 %v1153, %v1149
        %v1370 = vpack.c.b16 %v1154, %v1150
        %v1371 = vpack.c.b16 %v1155, %v1151
        %v1372 = vpack.c.b16 %v1160, %v1156
        %v1373 = vpack.c.b16 %v1161, %v1157
        %v1374 = vpack.c.b16 %v1162, %v1158
        %v1375 = vpack.c.b16 %v1163, %v1159
        %v1376 = vpack.c.b16 %v1168, %v1164
        %v1377 = vpack.c.b16 %v1169, %v1165
        %v1378 = vpack.c.b16 %v1170, %v1166
        %v1379 = vpack.c.b16 %v1171, %v1167
        %v1380 = vpack.c.b16 %v1176, %v1172
        %v1381 = vpack.c.b16 %v1177, %v1173
        %v1382 = vpack.c.b16 %v1178, %v1174
        %v1383 = vpack.c.b16 %v1179, %v1175
        %v1384 = vpack.c.b16 %v1184, %v1180
        %v1385 = vpack.c.b16 %v1185, %v1181
        %v1386 = vpack.c.b16 %v1186, %v1182
        %v1387 = vpack.c.b16 %v1187, %v1183
        %v1388 = vpack.c.b16 %v1192, %v1188
        %v1389 = vpack.c.b16 %v1193, %v1189
        %v1390 = vpack.c.b16 %v1194, %v1190
        %v1391 = vpack.c.b16 %v1195, %v1191
        %vm1588 = vcmask 130048
        %v1590 = vsel %vm1588, %v389, 0
        %1592 = vmatprep.subr.bf16.mxu0 %v1197
        %1593 = vmatpush1.bf16.msra.mxu0 %v1196
        %1594 = vmatprep.subr.bf16.mxu0 %v1201
        %1595 = vmatpush1.bf16.msra.mxu0 %v1200
        %1596 = vmatprep.subr.bf16.mxu0 %v1205
        %1597 = vmatpush1.bf16.msra.mxu0 %v1204
        %1598 = vmatprep.subr.bf16.mxu0 %v1209
        %1599 = vmatpush1.bf16.msra.mxu0 %v1208
        %1600 = vmatprep.subr.bf16.mxu0 %v1213
        %1601 = vmatpush1.bf16.msra.mxu0 %v1212
        %1602 = vmatprep.subr.bf16.mxu0 %v1217
        %1603 = vmatpush1.bf16.msra.mxu0 %v1216
        %1604 = vmatprep.subr.bf16.mxu0 %v1221
        %1605 = vmatpush1.bf16.msra.mxu0 %v1220
        %1606 = vmatprep.subr.bf16.mxu0 %v1225
        %1607 = vmatpush1.bf16.msra.mxu0 %v1224
        %1608 = vmatprep.subr.bf16.mxu0 %v1229
        %1609 = vmatpush1.bf16.msra.mxu0 %v1228
        %1610 = vmatprep.subr.bf16.mxu0 %v1233
        %1611 = vmatpush1.bf16.msra.mxu0 %v1232
        %1612 = vmatprep.subr.bf16.mxu0 %v1237
        %1613 = vmatpush1.bf16.msra.mxu0 %v1236
        %1614 = vmatprep.subr.bf16.mxu0 %v1241
        %1615 = vmatpush1.bf16.msra.mxu0 %v1240
        %1616 = vmatprep.subr.bf16.mxu0 %v1245
        %1617 = vmatpush1.bf16.msra.mxu0 %v1244
        %1618 = vmatprep.subr.bf16.mxu0 %v1249
        %1619 = vmatpush1.bf16.msra.mxu0 %v1248
        %1620 = vmatprep.subr.bf16.mxu0 %v1253
        %1621 = vmatpush1.bf16.msra.mxu0 %v1252
        %1622 = vmatprep.subr.bf16.mxu0 %v1257
        %1623 = vmatpush1.bf16.msra.mxu0 %v1256
        %1624 = vmatprep.mubr.bf16.mxu0 %v384
        %1625 = vmatmul.mubr.bf16.gmra.mrb[0].mxu0 %v383
        %v1626 = vpop.f32.mrb[0].mxu0
        %v1627 = vadd.f32 %v591, %v1626
        %v1628 = vpop.f32.mrb[0].mxu0
        %v1629 = vadd.f32 %v595, %v1628
        %v1630 = vpop.f32.mrb[0].mxu0
        %v1631 = vpop.f32.mrb[0].mxu0
        %1632 = vdwg.mxu0
        %1633 = vmatprep.subr.bf16.mxu0 %v1261
        %1634 = vmatpush1.bf16.msra.mxu0 %v1260
        %1635 = vmatprep.subr.bf16.mxu0 %v1265
        %1636 = vmatpush1.bf16.msra.mxu0 %v1264
        %1637 = vmatprep.subr.bf16.mxu0 %v1269
        %1638 = vmatpush1.bf16.msra.mxu0 %v1268
        %1639 = vmatprep.subr.bf16.mxu0 %v1273
        %1640 = vmatpush1.bf16.msra.mxu0 %v1272
        %1641 = vmatprep.subr.bf16.mxu0 %v1277
        %1642 = vmatpush1.bf16.msra.mxu0 %v1276
        %1643 = vmatprep.subr.bf16.mxu0 %v1281
        %1644 = vmatpush1.bf16.msra.mxu0 %v1280
        %1645 = vmatprep.subr.bf16.mxu0 %v1285
        %1646 = vmatpush1.bf16.msra.mxu0 %v1284
        %1647 = vmatprep.subr.bf16.mxu0 %v1289
        %1648 = vmatpush1.bf16.msra.mxu0 %v1288
        %1649 = vmatprep.subr.bf16.mxu0 %v1293
        %1650 = vmatpush1.bf16.msra.mxu0 %v1292
        %1651 = vmatprep.subr.bf16.mxu0 %v1297
        %1652 = vmatpush1.bf16.msra.mxu0 %v1296
        %1653 = vmatprep.subr.bf16.mxu0 %v1301
        %1654 = vmatpush1.bf16.msra.mxu0 %v1300
        %1655 = vmatprep.subr.bf16.mxu0 %v1305
        %1656 = vmatpush1.bf16.msra.mxu0 %v1304
        %1657 = vmatprep.subr.bf16.mxu0 %v1309
        %1658 = vmatpush1.bf16.msra.mxu0 %v1308
        %1659 = vmatprep.subr.bf16.mxu0 %v1313
        %1660 = vmatpush1.bf16.msra.mxu0 %v1312
        %1661 = vmatprep.subr.bf16.mxu0 %v1317
        %1662 = vmatpush1.bf16.msra.mxu0 %v1316
        %1663 = vmatprep.subr.bf16.mxu0 %v1321
        %1664 = vmatpush1.bf16.msra.mxu0 %v1320
        %1665 = vmatprep.mubr.bf16.mxu0 %v386
        %1666 = vmatmul.mubr.bf16.gmra.mrb[0].mxu0 %v385
        %v1667 = vpop.f32.mrb[0].mxu0
        %v1668 = vadd.f32 %v1627, %v1667
        %v1669 = vpop.f32.mrb[0].mxu0
        %v1670 = vadd.f32 %v1629, %v1669
        %v1671 = vpop.f32.mrb[0].mxu0
        %v1672 = vpop.f32.mrb[0].mxu0
        %1673 = vdwg.mxu0
        %1674 = vmatprep.subr.bf16.mxu0 %v1325
        %1675 = vmatpush1.bf16.msra.mxu0 %v1324
        %1676 = vmatprep.subr.bf16.mxu0 %v1329
        %1677 = vmatpush1.bf16.msra.mxu0 %v1328
        %1678 = vmatprep.subr.bf16.mxu0 %v1333
        %1679 = vmatpush1.bf16.msra.mxu0 %v1332
        %1680 = vmatprep.subr.bf16.mxu0 %v1337
        %1681 = vmatpush1.bf16.msra.mxu0 %v1336
        %1682 = vmatprep.subr.bf16.mxu0 %v1341
        %1683 = vmatpush1.bf16.msra.mxu0 %v1340
        %1684 = vmatprep.subr.bf16.mxu0 %v1345
        %1685 = vmatpush1.bf16.msra.mxu0 %v1344
        %1686 = vmatprep.subr.bf16.mxu0 %v1349
        %1687 = vmatpush1.bf16.msra.mxu0 %v1348
        %1688 = vmatprep.subr.bf16.mxu0 %v1353
        %1689 = vmatpush1.bf16.msra.mxu0 %v1352
        %1690 = vmatprep.subr.bf16.mxu0 %v1357
        %1691 = vmatpush1.bf16.msra.mxu0 %v1356
        %1692 = vmatprep.subr.bf16.mxu0 %v1361
        %1693 = vmatpush1.bf16.msra.mxu0 %v1360
        %1694 = vmatprep.subr.bf16.mxu0 %v1365
        %1695 = vmatpush1.bf16.msra.mxu0 %v1364
        %1696 = vmatprep.subr.bf16.mxu0 %v1369
        %1697 = vmatpush1.bf16.msra.mxu0 %v1368
        %1698 = vmatprep.subr.bf16.mxu0 %v1373
        %1699 = vmatpush1.bf16.msra.mxu0 %v1372
        %1700 = vmatprep.subr.bf16.mxu0 %v1377
        %1701 = vmatpush1.bf16.msra.mxu0 %v1376
        %1702 = vmatprep.subr.bf16.mxu0 %v1381
        %1703 = vmatpush1.bf16.msra.mxu0 %v1380
        %1704 = vmatprep.subr.bf16.mxu0 %v1385
        %1705 = vmatpush1.bf16.msra.mxu0 %v1384
        %1706 = vmatprep.mubr.bf16.mxu0 %v388
        %1707 = vmatmul.mubr.bf16.gmra.mrb[0].mxu0 %v387
        %v1708 = vpop.f32.mrb[0].mxu0
        %v1709 = vadd.f32 %v1668, %v1708
        %v1710 = vpop.f32.mrb[0].mxu0
        %v1711 = vadd.f32 %v1670, %v1710
        %v1712 = vpop.f32.mrb[0].mxu0
        %v1713 = vpop.f32.mrb[0].mxu0
        %1714 = vdwg.mxu0
        %1715 = vmatprep.subr.bf16.mxu0 %v1389
        %1716 = vmatpush1.bf16.msra.mxu0 %v1388
        %1717 = vmatprep.subr.bf16.mxu0 0
        %1718 = vmatpush1.bf16.msra.mxu0 0
        %1719 = vmatprep.subr.bf16.mxu0 0
        %1720 = vmatpush1.bf16.msra.mxu0 0
        %1721 = vmatprep.subr.bf16.mxu0 0
        %1722 = vmatpush1.bf16.msra.mxu0 0
        %1723 = vmatprep.subr.bf16.mxu0 0
        %1724 = vmatpush1.bf16.msra.mxu0 0
        %1725 = vmatprep.subr.bf16.mxu0 0
        %1726 = vmatpush1.bf16.msra.mxu0 0
        %1727 = vmatprep.subr.bf16.mxu0 0
        %1728 = vmatpush1.bf16.msra.mxu0 0
        %1729 = vmatprep.subr.bf16.mxu0 0
        %1730 = vmatpush1.bf16.msra.mxu0 0
        %1731 = vmatprep.subr.bf16.mxu0 0
        %1732 = vmatpush1.bf16.msra.mxu0 0
        %1733 = vmatprep.subr.bf16.mxu0 0
        %1734 = vmatpush1.bf16.msra.mxu0 0
        %1735 = vmatprep.subr.bf16.mxu0 0
        %1736 = vmatpush1.bf16.msra.mxu0 0
        %1737 = vmatprep.subr.bf16.mxu0 0
        %1738 = vmatpush1.bf16.msra.mxu0 0
        %1739 = vmatprep.subr.bf16.mxu0 0
        %1740 = vmatpush1.bf16.msra.mxu0 0
        %1741 = vmatprep.subr.bf16.mxu0 0
        %1742 = vmatpush1.bf16.msra.mxu0 0
        %1743 = vmatprep.subr.bf16.mxu0 0
        %1744 = vmatpush1.bf16.msra.mxu0 0
        %1745 = vmatprep.subr.bf16.mxu0 0
        %1746 = vmatpush1.bf16.msra.mxu0 0
        %1747 = vmatprep.mubr.bf16.mxu0 0
        %1748 = vmatmul.mubr.bf16.gmra.mrb[0].mxu0 %v1590
        %v1749 = vpop.f32.mrb[0].mxu0
        %v1750 = vadd.f32 %v1709, %v1749
        %v1751 = vpop.f32.mrb[0].mxu0
        %v1752 = vadd.f32 %v1711, %v1751
        %v1753 = vpop.f32.mrb[0].mxu0
        %v1754 = vpop.f32.mrb[0].mxu0
        %1755 = vdwg.mxu0
        %1756 = vmatprep.subr.bf16.mxu0 %v1199
        %1757 = vmatpush1.bf16.msra.mxu0 %v1198
        %1758 = vmatprep.subr.bf16.mxu0 %v1203
        %1759 = vmatpush1.bf16.msra.mxu0 %v1202
        %1760 = vmatprep.subr.bf16.mxu0 %v1207
        %1761 = vmatpush1.bf16.msra.mxu0 %v1206
        %1762 = vmatprep.subr.bf16.mxu0 %v1211
        %1763 = vmatpush1.bf16.msra.mxu0 %v1210
        %1764 = vmatprep.subr.bf16.mxu0 %v1215
        %1765 = vmatpush1.bf16.msra.mxu0 %v1214
        %1766 = vmatprep.subr.bf16.mxu0 %v1219
        %1767 = vmatpush1.bf16.msra.mxu0 %v1218
        %1768 = vmatprep.subr.bf16.mxu0 %v1223
        %1769 = vmatpush1.bf16.msra.mxu0 %v1222
        %1770 = vmatprep.subr.bf16.mxu0 %v1227
        %1771 = vmatpush1.bf16.msra.mxu0 %v1226
        %1772 = vmatprep.subr.bf16.mxu0 %v1231
        %1773 = vmatpush1.bf16.msra.mxu0 %v1230
        %1774 = vmatprep.subr.bf16.mxu0 %v1235
        %1775 = vmatpush1.bf16.msra.mxu0 %v1234
        %1776 = vmatprep.subr.bf16.mxu0 %v1239
        %1777 = vmatpush1.bf16.msra.mxu0 %v1238
        %1778 = vmatprep.subr.bf16.mxu0 %v1243
        %1779 = vmatpush1.bf16.msra.mxu0 %v1242
        %1780 = vmatprep.subr.bf16.mxu0 %v1247
        %1781 = vmatpush1.bf16.msra.mxu0 %v1246
        %1782 = vmatprep.subr.bf16.mxu0 %v1251
        %1783 = vmatpush1.bf16.msra.mxu0 %v1250
        %1784 = vmatprep.subr.bf16.mxu0 %v1255
        %1785 = vmatpush1.bf16.msra.mxu0 %v1254
        %1786 = vmatprep.subr.bf16.mxu0 %v1259
        %1787 = vmatpush1.bf16.msra.mxu0 %v1258
        %1788 = vmatprep.mubr.bf16.mxu0 %v384
        %1789 = vmatmul.mubr.bf16.gmra.mrb[0].mxu0 %v383
        %v1790 = vpop.f32.mrb[0].mxu0
        %v1791 = vadd.f32 %v599, %v1790
        %v1792 = vpop.f32.mrb[0].mxu0
        %v1793 = vadd.f32 %v603, %v1792
        %v1794 = vpop.f32.mrb[0].mxu0
        %v1795 = vpop.f32.mrb[0].mxu0
        %1796 = vdwg.mxu0
        %1797 = vmatprep.subr.bf16.mxu0 %v1263
        %1798 = vmatpush1.bf16.msra.mxu0 %v1262
        %1799 = vmatprep.subr.bf16.mxu0 %v1267
        %1800 = vmatpush1.bf16.msra.mxu0 %v1266
        %1801 = vmatprep.subr.bf16.mxu0 %v1271
        %1802 = vmatpush1.bf16.msra.mxu0 %v1270
        %1803 = vmatprep.subr.bf16.mxu0 %v1275
        %1804 = vmatpush1.bf16.msra.mxu0 %v1274
        %1805 = vmatprep.subr.bf16.mxu0 %v1279
        %1806 = vmatpush1.bf16.msra.mxu0 %v1278
        %1807 = vmatprep.subr.bf16.mxu0 %v1283
        %1808 = vmatpush1.bf16.msra.mxu0 %v1282
        %1809 = vmatprep.subr.bf16.mxu0 %v1287
        %1810 = vmatpush1.bf16.msra.mxu0 %v1286
        %1811 = vmatprep.subr.bf16.mxu0 %v1291
        %1812 = vmatpush1.bf16.msra.mxu0 %v1290
        %1813 = vmatprep.subr.bf16.mxu0 %v1295
        %1814 = vmatpush1.bf16.msra.mxu0 %v1294
        %1815 = vmatprep.subr.bf16.mxu0 %v1299
        %1816 = vmatpush1.bf16.msra.mxu0 %v1298
        %1817 = vmatprep.subr.bf16.mxu0 %v1303
        %1818 = vmatpush1.bf16.msra.mxu0 %v1302
        %1819 = vmatprep.subr.bf16.mxu0 %v1307
        %1820 = vmatpush1.bf16.msra.mxu0 %v1306
        %1821 = vmatprep.subr.bf16.mxu0 %v1311
        %1822 = vmatpush1.bf16.msra.mxu0 %v1310
        %1823 = vmatprep.subr.bf16.mxu0 %v1315
        %1824 = vmatpush1.bf16.msra.mxu0 %v1314
        %1825 = vmatprep.subr.bf16.mxu0 %v1319
        %1826 = vmatpush1.bf16.msra.mxu0 %v1318
        %1827 = vmatprep.subr.bf16.mxu0 %v1323
        %1828 = vmatpush1.bf16.msra.mxu0 %v1322
        %1829 = vmatprep.mubr.bf16.mxu0 %v386
        %1830 = vmatmul.mubr.bf16.gmra.mrb[0].mxu0 %v385
        %v1831 = vpop.f32.mrb[0].mxu0
        %v1832 = vadd.f32 %v1791, %v1831
        %v1833 = vpop.f32.mrb[0].mxu0
        %v1834 = vadd.f32 %v1793, %v1833
        %v1835 = vpop.f32.mrb[0].mxu0
        %v1836 = vpop.f32.mrb[0].mxu0
        %1837 = vdwg.mxu0
        %1838 = vmatprep.subr.bf16.mxu0 %v1327
        %1839 = vmatpush1.bf16.msra.mxu0 %v1326
        %1840 = vmatprep.subr.bf16.mxu0 %v1331
        %1841 = vmatpush1.bf16.msra.mxu0 %v1330
        %1842 = vmatprep.subr.bf16.mxu0 %v1335
        %1843 = vmatpush1.bf16.msra.mxu0 %v1334
        %1844 = vmatprep.subr.bf16.mxu0 %v1339
        %1845 = vmatpush1.bf16.msra.mxu0 %v1338
        %1846 = vmatprep.subr.bf16.mxu0 %v1343
        %1847 = vmatpush1.bf16.msra.mxu0 %v1342
        %1848 = vmatprep.subr.bf16.mxu0 %v1347
        %1849 = vmatpush1.bf16.msra.mxu0 %v1346
        %1850 = vmatprep.subr.bf16.mxu0 %v1351
        %1851 = vmatpush1.bf16.msra.mxu0 %v1350
        %1852 = vmatprep.subr.bf16.mxu0 %v1355
        %1853 = vmatpush1.bf16.msra.mxu0 %v1354
        %1854 = vmatprep.subr.bf16.mxu0 %v1359
        %1855 = vmatpush1.bf16.msra.mxu0 %v1358
        %1856 = vmatprep.subr.bf16.mxu0 %v1363
        %1857 = vmatpush1.bf16.msra.mxu0 %v1362
        %1858 = vmatprep.subr.bf16.mxu0 %v1367
        %1859 = vmatpush1.bf16.msra.mxu0 %v1366
        %1860 = vmatprep.subr.bf16.mxu0 %v1371
        %1861 = vmatpush1.bf16.msra.mxu0 %v1370
        %1862 = vmatprep.subr.bf16.mxu0 %v1375
        %1863 = vmatpush1.bf16.msra.mxu0 %v1374
        %1864 = vmatprep.subr.bf16.mxu0 %v1379
        %1865 = vmatpush1.bf16.msra.mxu0 %v1378
        %1866 = vmatprep.subr.bf16.mxu0 %v1383
        %1867 = vmatpush1.bf16.msra.mxu0 %v1382
        %1868 = vmatprep.subr.bf16.mxu0 %v1387
        %1869 = vmatpush1.bf16.msra.mxu0 %v1386
        %1870 = vmatprep.mubr.bf16.mxu0 %v388
        %1871 = vmatmul.mubr.bf16.gmra.mrb[0].mxu0 %v387
        %v1872 = vpop.f32.mrb[0].mxu0
        %v1873 = vadd.f32 %v1832, %v1872
        %v1874 = vpop.f32.mrb[0].mxu0
        %v1875 = vadd.f32 %v1834, %v1874
        %v1876 = vpop.f32.mrb[0].mxu0
        %v1877 = vpop.f32.mrb[0].mxu0
        %1878 = vdwg.mxu0
        %1879 = vmatprep.subr.bf16.mxu0 %v1391
        %1880 = vmatpush1.bf16.msra.mxu0 %v1390
        %1881 = vmatprep.subr.bf16.mxu0 0
        %1882 = vmatpush1.bf16.msra.mxu0 0
        %1883 = vmatprep.subr.bf16.mxu0 0
        %1884 = vmatpush1.bf16.msra.mxu0 0
        %1885 = vmatprep.subr.bf16.mxu0 0
        %1886 = vmatpush1.bf16.msra.mxu0 0
        %1887 = vmatprep.subr.bf16.mxu0 0
        %1888 = vmatpush1.bf16.msra.mxu0 0
        %1889 = vmatprep.subr.bf16.mxu0 0
        %1890 = vmatpush1.bf16.msra.mxu0 0
        %1891 = vmatprep.subr.bf16.mxu0 0
        %1892 = vmatpush1.bf16.msra.mxu0 0
        %1893 = vmatprep.subr.bf16.mxu0 0
        %1894 = vmatpush1.bf16.msra.mxu0 0
        %1895 = vmatprep.subr.bf16.mxu0 0
        %1896 = vmatpush1.bf16.msra.mxu0 0
        %1897 = vmatprep.subr.bf16.mxu0 0
        %1898 = vmatpush1.bf16.msra.mxu0 0
        %1899 = vmatprep.subr.bf16.mxu0 0
        %1900 = vmatpush1.bf16.msra.mxu0 0
        %1901 = vmatprep.subr.bf16.mxu0 0
        %1902 = vmatpush1.bf16.msra.mxu0 0
        %1903 = vmatprep.subr.bf16.mxu0 0
        %1904 = vmatpush1.bf16.msra.mxu0 0
        %1905 = vmatprep.subr.bf16.mxu0 0
        %1906 = vmatpush1.bf16.msra.mxu0 0
        %1907 = vmatprep.subr.bf16.mxu0 0
        %1908 = vmatpush1.bf16.msra.mxu0 0
        %1909 = vmatprep.subr.bf16.mxu0 0
        %1910 = vmatpush1.bf16.msra.mxu0 0
        %1911 = vmatprep.mubr.bf16.mxu0 0
        %1912 = vmatmul.mubr.bf16.gmra.mrb[0].mxu0 %v1590
        %v1913 = vpop.f32.mrb[0].mxu0
        %v1914 = vadd.f32 %v1873, %v1913
        %v1915 = vpop.f32.mrb[0].mxu0
        %v1916 = vadd.f32 %v1875, %v1915
        %v1917 = vpop.f32.mrb[0].mxu0
        %v1918 = vpop.f32.mrb[0].mxu0
        %1919 = vdwg.mxu0
        %v1920 = vmax.f32 %v1750, 0.0
        %v1921 = vmax.f32 %v1752, 0.0
        %v1922 = vmax.f32 %v1914, 0.0
        %v1923 = vmax.f32 %v1916, 0.0
        %v1924 = vpack.c.bf16 %v1920, %v1920
        %v1925 = vpack.c.bf16 %v1921, %v1921
        %v1926 = vpack.c.bf16 %v1922, %v1922
        %v1927 = vpack.c.bf16 %v1923, %v1923
        %v1928 = vld [vmem:[#allocation5] sm:$0xff]
        %v1929 = vld [vmem:[#allocation5 + $0x8] sm:$0xff]
        %v1930 = vld [vmem:[#allocation5 + $0x10] sm:$0xff]
        %v1931 = vld [vmem:[#allocation5 + $0x18] sm:$0xff]
        %v1932 = vld [vmem:[#allocation5 + $0x20] sm:$0xff]
        %v1933 = vld [vmem:[#allocation5 + $0x28] sm:$0xff]
        %v1934 = vld [vmem:[#allocation5 + $0x30] sm:$0xff]
        %v1935 = vld [vmem:[#allocation5 + $0x38] sm:$0xff]
        %v1936 = vld [vmem:[#allocation5 + $0x40] sm:$0xff]
        %v1937 = vld [vmem:[#allocation5 + $0x48] sm:$0xff]
        %v1938 = vld [vmem:[#allocation5 + $0x50] sm:$0xff]
        %v1939 = vld [vmem:[#allocation5 + $0x58] sm:$0xff]
        %v1940 = vld [vmem:[#allocation5 + $0x60] sm:$0xff]
        %v1941 = vld [vmem:[#allocation5 + $0x68] sm:$0xff]
        %v1942 = vld [vmem:[#allocation5 + $0x70] sm:$0xff]
        %v1943 = vld [vmem:[#allocation5 + $0x78] sm:$0xff]
        %v1944 = vld [vmem:[#allocation5 + $0x80] sm:$0xff]
        %v1945 = vld [vmem:[#allocation5 + $0x88] sm:$0xff]
        %v1946 = vld [vmem:[#allocation5 + $0x90] sm:$0xff]
        %v1947 = vld [vmem:[#allocation5 + $0x98] sm:$0xff]
        %v1948 = vld [vmem:[#allocation5 + $0xa0] sm:$0xff]
        %v1949 = vld [vmem:[#allocation5 + $0xa8] sm:$0xff]
        %v1950 = vld [vmem:[#allocation5 + $0xb0] sm:$0xff]
        %v1951 = vld [vmem:[#allocation5 + $0xb8] sm:$0xff]
        %v1952 = vld [vmem:[#allocation5 + $0xc0] sm:$0xff]
        %v1953 = vld [vmem:[#allocation5 + $0xc8] sm:$0xff]
        %v1954 = vld [vmem:[#allocation5 + $0xd0] sm:$0xff]
        %v1955 = vld [vmem:[#allocation5 + $0xd8] sm:$0xff]
        %v1956 = vld [vmem:[#allocation5 + $0xe0] sm:$0xff]
        %v1957 = vld [vmem:[#allocation5 + $0xe8] sm:$0xff]
        %v1958 = vld [vmem:[#allocation5 + $0xf0] sm:$0xff]
        %v1959 = vld [vmem:[#allocation5 + $0xf8] sm:$0xff]
        %v1960 = vld [vmem:[#allocation5 + $0x100] sm:$0xff]
        %v1961 = vld [vmem:[#allocation5 + $0x108] sm:$0xff]
        %v1962 = vld [vmem:[#allocation5 + $0x110] sm:$0xff]
        %v1963 = vld [vmem:[#allocation5 + $0x118] sm:$0xff]
        %v1964 = vld [vmem:[#allocation5 + $0x120] sm:$0xff]
        %v1965 = vld [vmem:[#allocation5 + $0x128] sm:$0xff]
        %v1966 = vld [vmem:[#allocation5 + $0x130] sm:$0xff]
        %v1967 = vld [vmem:[#allocation5 + $0x138] sm:$0xff]
        %v1968 = vld [vmem:[#allocation5 + $0x140] sm:$0xff]
        %v1969 = vld [vmem:[#allocation5 + $0x148] sm:$0xff]
        %v1970 = vld [vmem:[#allocation5 + $0x150] sm:$0xff]
        %v1971 = vld [vmem:[#allocation5 + $0x158] sm:$0xff]
        %v1972 = vld [vmem:[#allocation5 + $0x160] sm:$0xff]
        %v1973 = vld [vmem:[#allocation5 + $0x168] sm:$0xff]
        %v1974 = vld [vmem:[#allocation5 + $0x170] sm:$0xff]
        %v1975 = vld [vmem:[#allocation5 + $0x178] sm:$0xff]
        %v1976 = vld [vmem:[#allocation5 + $0x180] sm:$0xff]
        %v1977 = vld [vmem:[#allocation5 + $0x188] sm:$0xff]
        %v1978 = vld [vmem:[#allocation5 + $0x190] sm:$0xff]
        %v1979 = vld [vmem:[#allocation5 + $0x198] sm:$0xff]
        %v1980 = vld [vmem:[#allocation5 + $0x1a0] sm:$0xff]
        %v1981 = vld [vmem:[#allocation5 + $0x1a8] sm:$0xff]
        %v1982 = vld [vmem:[#allocation5 + $0x1b0] sm:$0xff]
        %v1983 = vld [vmem:[#allocation5 + $0x1b8] sm:$0xff]
        %v1984 = vld [vmem:[#allocation5 + $0x1c0] sm:$0xff]
        %v1985 = vld [vmem:[#allocation5 + $0x1c8] sm:$0xff]
        %v1986 = vld [vmem:[#allocation5 + $0x1d0] sm:$0xff]
        %v1987 = vld [vmem:[#allocation5 + $0x1d8] sm:$0xff]
        %v1988 = vld [vmem:[#allocation5 + $0x1e0] sm:$0xff]
        %v1989 = vld [vmem:[#allocation5 + $0x1e8] sm:$0xff]
        %v1990 = vld [vmem:[#allocation5 + $0x1f0] sm:$0xff]
        %v1991 = vld [vmem:[#allocation5 + $0x1f8] sm:$0xff]
        %v1992 = vld [vmem:[#allocation5 + $0x200] sm:$0xff]
        %v1993 = vld [vmem:[#allocation5 + $0x208] sm:$0xff]
        %v1994 = vld [vmem:[#allocation5 + $0x210] sm:$0xff]
        %v1995 = vld [vmem:[#allocation5 + $0x218] sm:$0xff]
        %v1996 = vld [vmem:[#allocation5 + $0x220] sm:$0xff]
        %v1997 = vld [vmem:[#allocation5 + $0x228] sm:$0xff]
        %v1998 = vld [vmem:[#allocation5 + $0x230] sm:$0xff]
        %v1999 = vld [vmem:[#allocation5 + $0x238] sm:$0xff]
        %v2000 = vld [vmem:[#allocation5 + $0x240] sm:$0xff]
        %v2001 = vld [vmem:[#allocation5 + $0x248] sm:$0xff]
        %v2002 = vld [vmem:[#allocation5 + $0x250] sm:$0xff]
        %v2003 = vld [vmem:[#allocation5 + $0x258] sm:$0xff]
        %v2004 = vld [vmem:[#allocation5 + $0x260] sm:$0xff]
        %v2005 = vld [vmem:[#allocation5 + $0x268] sm:$0xff]
        %v2006 = vld [vmem:[#allocation5 + $0x270] sm:$0xff]
        %v2007 = vld [vmem:[#allocation5 + $0x278] sm:$0xff]
        %v2008 = vld [vmem:[#allocation5 + $0x280] sm:$0xff]
        %v2009 = vld [vmem:[#allocation5 + $0x288] sm:$0xff]
        %v2010 = vld [vmem:[#allocation5 + $0x290] sm:$0xff]
        %v2011 = vld [vmem:[#allocation5 + $0x298] sm:$0xff]
        %v2012 = vld [vmem:[#allocation5 + $0x2a0] sm:$0xff]
        %v2013 = vld [vmem:[#allocation5 + $0x2a8] sm:$0xff]
        %v2014 = vld [vmem:[#allocation5 + $0x2b0] sm:$0xff]
        %v2015 = vld [vmem:[#allocation5 + $0x2b8] sm:$0xff]
        %v2016 = vld [vmem:[#allocation5 + $0x2c0] sm:$0xff]
        %v2017 = vld [vmem:[#allocation5 + $0x2c8] sm:$0xff]
        %v2018 = vld [vmem:[#allocation5 + $0x2d0] sm:$0xff]
        %v2019 = vld [vmem:[#allocation5 + $0x2d8] sm:$0xff]
        %v2020 = vld [vmem:[#allocation5 + $0x2e0] sm:$0xff]
        %v2021 = vld [vmem:[#allocation5 + $0x2e8] sm:$0xff]
        %v2022 = vld [vmem:[#allocation5 + $0x2f0] sm:$0xff]
        %v2023 = vld [vmem:[#allocation5 + $0x2f8] sm:$0xff]
        %v2024 = vld [vmem:[#allocation5 + $0x300] sm:$0xff]
        %v2025 = vld [vmem:[#allocation5 + $0x308] sm:$0xff]
        %v2026 = vld [vmem:[#allocation5 + $0x310] sm:$0xff]
        %v2027 = vld [vmem:[#allocation5 + $0x318] sm:$0xff]
        %v2028 = vld [vmem:[#allocation5 + $0x320] sm:$0xff]
        %v2029 = vld [vmem:[#allocation5 + $0x328] sm:$0xff]
        %v2030 = vld [vmem:[#allocation5 + $0x330] sm:$0xff]
        %v2031 = vld [vmem:[#allocation5 + $0x338] sm:$0xff]
        %v2032 = vld [vmem:[#allocation5 + $0x340] sm:$0xff]
        %v2033 = vld [vmem:[#allocation5 + $0x348] sm:$0xff]
        %v2034 = vld [vmem:[#allocation5 + $0x350] sm:$0xff]
        %v2035 = vld [vmem:[#allocation5 + $0x358] sm:$0xff]
        %v2036 = vld [vmem:[#allocation5 + $0x360] sm:$0xff]
        %v2037 = vld [vmem:[#allocation5 + $0x368] sm:$0xff]
        %v2038 = vld [vmem:[#allocation5 + $0x370] sm:$0xff]
        %v2039 = vld [vmem:[#allocation5 + $0x378] sm:$0xff]
        %v2040 = vld [vmem:[#allocation5 + $0x380] sm:$0xff]
        %v2041 = vld [vmem:[#allocation5 + $0x388] sm:$0xff]
        %v2042 = vld [vmem:[#allocation5 + $0x390] sm:$0xff]
        %v2043 = vld [vmem:[#allocation5 + $0x398] sm:$0xff]
        %v2044 = vld [vmem:[#allocation5 + $0x3a0] sm:$0xff]
        %v2045 = vld [vmem:[#allocation5 + $0x3a8] sm:$0xff]
        %v2046 = vld [vmem:[#allocation5 + $0x3b0] sm:$0xff]
        %v2047 = vld [vmem:[#allocation5 + $0x3b8] sm:$0xff]
        %v2048 = vld [vmem:[#allocation5 + $0x3c0] sm:$0xff]
        %v2049 = vld [vmem:[#allocation5 + $0x3c8] sm:$0xff]
        %v2050 = vld [vmem:[#allocation5 + $0x3d0] sm:$0xff]
        %v2051 = vld [vmem:[#allocation5 + $0x3d8] sm:$0xff]
        %v2052 = vld [vmem:[#allocation5 + $0x3e0] sm:$0xff]
        %v2053 = vld [vmem:[#allocation5 + $0x3e8] sm:$0xff]
        %v2054 = vld [vmem:[#allocation5 + $0x3f0] sm:$0xff]
        %v2055 = vld [vmem:[#allocation5 + $0x3f8] sm:$0xff]
        %v2056 = vld [vmem:[%s4] sm:$0xf]
        %v2058 = vlaneseq
        %v2059 = vshrl.u32 %v2058, 7
        %v2060 = vsub.s32 0, %v2059
        %v2061 = vrot.slane %v2056, %v2060
        %v2062 = vlaneseq
        %v2063 = vshrl.u32 %v2062, 7
        %v2064 = vsub.s32 1, %v2063
        %v2065 = vrot.slane %v2056, %v2064
        %v2066 = vlaneseq
        %v2067 = vshrl.u32 %v2066, 7
        %v2068 = vsub.s32 2, %v2067
        %v2069 = vrot.slane %v2056, %v2068
        %v2070 = vlaneseq
        %v2071 = vshrl.u32 %v2070, 7
        %v2072 = vsub.s32 3, %v2071
        %v2073 = vrot.slane %v2056, %v2072
        %v2206 = vunpack.c.l.b16 %v1928
        %v2207 = vunpack.c.h.b16 %v1928
        %v2208 = vunpack.c.l.b16 %v1929
        %v2209 = vunpack.c.h.b16 %v1929
        %v2210 = vunpack.c.l.b16 %v1930
        %v2211 = vunpack.c.h.b16 %v1930
        %v2212 = vunpack.c.l.b16 %v1931
        %v2213 = vunpack.c.h.b16 %v1931
        %v2214 = vunpack.c.l.b16 %v1932
        %v2215 = vunpack.c.h.b16 %v1932
        %v2216 = vunpack.c.l.b16 %v1933
        %v2217 = vunpack.c.h.b16 %v1933
        %v2218 = vunpack.c.l.b16 %v1934
        %v2219 = vunpack.c.h.b16 %v1934
        %v2220 = vunpack.c.l.b16 %v1935
        %v2221 = vunpack.c.h.b16 %v1935
        %v2222 = vunpack.c.l.b16 %v1936
        %v2223 = vunpack.c.h.b16 %v1936
        %v2224 = vunpack.c.l.b16 %v1937
        %v2225 = vunpack.c.h.b16 %v1937
        %v2226 = vunpack.c.l.b16 %v1938
        %v2227 = vunpack.c.h.b16 %v1938
        %v2228 = vunpack.c.l.b16 %v1939
        %v2229 = vunpack.c.h.b16 %v1939
        %v2230 = vunpack.c.l.b16 %v1940
        %v2231 = vunpack.c.h.b16 %v1940
        %v2232 = vunpack.c.l.b16 %v1941
        %v2233 = vunpack.c.h.b16 %v1941
        %v2234 = vunpack.c.l.b16 %v1942
        %v2235 = vunpack.c.h.b16 %v1942
        %v2236 = vunpack.c.l.b16 %v1943
        %v2237 = vunpack.c.h.b16 %v1943
        %v2238 = vunpack.c.l.b16 %v1944
        %v2239 = vunpack.c.h.b16 %v1944
        %v2240 = vunpack.c.l.b16 %v1945
        %v2241 = vunpack.c.h.b16 %v1945
        %v2242 = vunpack.c.l.b16 %v1946
        %v2243 = vunpack.c.h.b16 %v1946
        %v2244 = vunpack.c.l.b16 %v1947
        %v2245 = vunpack.c.h.b16 %v1947
        %v2246 = vunpack.c.l.b16 %v1948
        %v2247 = vunpack.c.h.b16 %v1948
        %v2248 = vunpack.c.l.b16 %v1949
        %v2249 = vunpack.c.h.b16 %v1949
        %v2250 = vunpack.c.l.b16 %v1950
        %v2251 = vunpack.c.h.b16 %v1950
        %v2252 = vunpack.c.l.b16 %v1951
        %v2253 = vunpack.c.h.b16 %v1951
        %v2254 = vunpack.c.l.b16 %v1952
        %v2255 = vunpack.c.h.b16 %v1952
        %v2256 = vunpack.c.l.b16 %v1953
        %v2257 = vunpack.c.h.b16 %v1953
        %v2258 = vunpack.c.l.b16 %v1954
        %v2259 = vunpack.c.h.b16 %v1954
        %v2260 = vunpack.c.l.b16 %v1955
        %v2261 = vunpack.c.h.b16 %v1955
        %v2262 = vunpack.c.l.b16 %v1956
        %v2263 = vunpack.c.h.b16 %v1956
        %v2264 = vunpack.c.l.b16 %v1957
        %v2265 = vunpack.c.h.b16 %v1957
        %v2266 = vunpack.c.l.b16 %v1958
        %v2267 = vunpack.c.h.b16 %v1958
        %v2268 = vunpack.c.l.b16 %v1959
        %v2269 = vunpack.c.h.b16 %v1959
        %v2270 = vunpack.c.l.b16 %v1960
        %v2271 = vunpack.c.h.b16 %v1960
        %v2272 = vunpack.c.l.b16 %v1961
        %v2273 = vunpack.c.h.b16 %v1961
        %v2274 = vunpack.c.l.b16 %v1962
        %v2275 = vunpack.c.h.b16 %v1962
        %v2276 = vunpack.c.l.b16 %v1963
        %v2277 = vunpack.c.h.b16 %v1963
        %v2278 = vunpack.c.l.b16 %v1964
        %v2279 = vunpack.c.h.b16 %v1964
        %v2280 = vunpack.c.l.b16 %v1965
        %v2281 = vunpack.c.h.b16 %v1965
        %v2282 = vunpack.c.l.b16 %v1966
        %v2283 = vunpack.c.h.b16 %v1966
        %v2284 = vunpack.c.l.b16 %v1967
        %v2285 = vunpack.c.h.b16 %v1967
        %v2286 = vunpack.c.l.b16 %v1968
        %v2287 = vunpack.c.h.b16 %v1968
        %v2288 = vunpack.c.l.b16 %v1969
        %v2289 = vunpack.c.h.b16 %v1969
        %v2290 = vunpack.c.l.b16 %v1970
        %v2291 = vunpack.c.h.b16 %v1970
        %v2292 = vunpack.c.l.b16 %v1971
        %v2293 = vunpack.c.h.b16 %v1971
        %v2294 = vunpack.c.l.b16 %v1972
        %v2295 = vunpack.c.h.b16 %v1972
        %v2296 = vunpack.c.l.b16 %v1973
        %v2297 = vunpack.c.h.b16 %v1973
        %v2298 = vunpack.c.l.b16 %v1974
        %v2299 = vunpack.c.h.b16 %v1974
        %v2300 = vunpack.c.l.b16 %v1975
        %v2301 = vunpack.c.h.b16 %v1975
        %v2302 = vunpack.c.l.b16 %v1976
        %v2303 = vunpack.c.h.b16 %v1976
        %v2304 = vunpack.c.l.b16 %v1977
        %v2305 = vunpack.c.h.b16 %v1977
        %v2306 = vunpack.c.l.b16 %v1978
        %v2307 = vunpack.c.h.b16 %v1978
        %v2308 = vunpack.c.l.b16 %v1979
        %v2309 = vunpack.c.h.b16 %v1979
        %v2310 = vunpack.c.l.b16 %v1980
        %v2311 = vunpack.c.h.b16 %v1980
        %v2312 = vunpack.c.l.b16 %v1981
        %v2313 = vunpack.c.h.b16 %v1981
        %v2314 = vunpack.c.l.b16 %v1982
        %v2315 = vunpack.c.h.b16 %v1982
        %v2316 = vunpack.c.l.b16 %v1983
        %v2317 = vunpack.c.h.b16 %v1983
        %v2318 = vunpack.c.l.b16 %v1984
        %v2319 = vunpack.c.h.b16 %v1984
        %v2320 = vunpack.c.l.b16 %v1985
        %v2321 = vunpack.c.h.b16 %v1985
        %v2322 = vunpack.c.l.b16 %v1986
        %v2323 = vunpack.c.h.b16 %v1986
        %v2324 = vunpack.c.l.b16 %v1987
        %v2325 = vunpack.c.h.b16 %v1987
        %v2326 = vunpack.c.l.b16 %v1988
        %v2327 = vunpack.c.h.b16 %v1988
        %v2328 = vunpack.c.l.b16 %v1989
        %v2329 = vunpack.c.h.b16 %v1989
        %v2330 = vunpack.c.l.b16 %v1990
        %v2331 = vunpack.c.h.b16 %v1990
        %v2332 = vunpack.c.l.b16 %v1991
        %v2333 = vunpack.c.h.b16 %v1991
        %v2334 = vunpack.c.l.b16 %v1992
        %v2335 = vunpack.c.h.b16 %v1992
        %v2336 = vunpack.c.l.b16 %v1993
        %v2337 = vunpack.c.h.b16 %v1993
        %v2338 = vunpack.c.l.b16 %v1994
        %v2339 = vunpack.c.h.b16 %v1994
        %v2340 = vunpack.c.l.b16 %v1995
        %v2341 = vunpack.c.h.b16 %v1995
        %v2342 = vunpack.c.l.b16 %v1996
        %v2343 = vunpack.c.h.b16 %v1996
        %v2344 = vunpack.c.l.b16 %v1997
        %v2345 = vunpack.c.h.b16 %v1997
        %v2346 = vunpack.c.l.b16 %v1998
        %v2347 = vunpack.c.h.b16 %v1998
        %v2348 = vunpack.c.l.b16 %v1999
        %v2349 = vunpack.c.h.b16 %v1999
        %v2350 = vunpack.c.l.b16 %v2000
        %v2351 = vunpack.c.h.b16 %v2000
        %v2352 = vunpack.c.l.b16 %v2001
        %v2353 = vunpack.c.h.b16 %v2001
        %v2354 = vunpack.c.l.b16 %v2002
        %v2355 = vunpack.c.h.b16 %v2002
        %v2356 = vunpack.c.l.b16 %v2003
        %v2357 = vunpack.c.h.b16 %v2003
        %v2358 = vunpack.c.l.b16 %v2004
        %v2359 = vunpack.c.h.b16 %v2004
        %v2360 = vunpack.c.l.b16 %v2005
        %v2361 = vunpack.c.h.b16 %v2005
        %v2362 = vunpack.c.l.b16 %v2006
        %v2363 = vunpack.c.h.b16 %v2006
        %v2364 = vunpack.c.l.b16 %v2007
        %v2365 = vunpack.c.h.b16 %v2007
        %v2366 = vunpack.c.l.b16 %v2008
        %v2367 = vunpack.c.h.b16 %v2008
        %v2368 = vunpack.c.l.b16 %v2009
        %v2369 = vunpack.c.h.b16 %v2009
        %v2370 = vunpack.c.l.b16 %v2010
        %v2371 = vunpack.c.h.b16 %v2010
        %v2372 = vunpack.c.l.b16 %v2011
        %v2373 = vunpack.c.h.b16 %v2011
        %v2374 = vunpack.c.l.b16 %v2012
        %v2375 = vunpack.c.h.b16 %v2012
        %v2376 = vunpack.c.l.b16 %v2013
        %v2377 = vunpack.c.h.b16 %v2013
        %v2378 = vunpack.c.l.b16 %v2014
        %v2379 = vunpack.c.h.b16 %v2014
        %v2380 = vunpack.c.l.b16 %v2015
        %v2381 = vunpack.c.h.b16 %v2015
        %v2382 = vunpack.c.l.b16 %v2016
        %v2383 = vunpack.c.h.b16 %v2016
        %v2384 = vunpack.c.l.b16 %v2017
        %v2385 = vunpack.c.h.b16 %v2017
        %v2386 = vunpack.c.l.b16 %v2018
        %v2387 = vunpack.c.h.b16 %v2018
        %v2388 = vunpack.c.l.b16 %v2019
        %v2389 = vunpack.c.h.b16 %v2019
        %v2390 = vunpack.c.l.b16 %v2020
        %v2391 = vunpack.c.h.b16 %v2020
        %v2392 = vunpack.c.l.b16 %v2021
        %v2393 = vunpack.c.h.b16 %v2021
        %v2394 = vunpack.c.l.b16 %v2022
        %v2395 = vunpack.c.h.b16 %v2022
        %v2396 = vunpack.c.l.b16 %v2023
        %v2397 = vunpack.c.h.b16 %v2023
        %v2398 = vunpack.c.l.b16 %v2024
        %v2399 = vunpack.c.h.b16 %v2024
        %v2400 = vunpack.c.l.b16 %v2025
        %v2401 = vunpack.c.h.b16 %v2025
        %v2402 = vunpack.c.l.b16 %v2026
        %v2403 = vunpack.c.h.b16 %v2026
        %v2404 = vunpack.c.l.b16 %v2027
        %v2405 = vunpack.c.h.b16 %v2027
        %v2406 = vunpack.c.l.b16 %v2028
        %v2407 = vunpack.c.h.b16 %v2028
        %v2408 = vunpack.c.l.b16 %v2029
        %v2409 = vunpack.c.h.b16 %v2029
        %v2410 = vunpack.c.l.b16 %v2030
        %v2411 = vunpack.c.h.b16 %v2030
        %v2412 = vunpack.c.l.b16 %v2031
        %v2413 = vunpack.c.h.b16 %v2031
        %v2414 = vunpack.c.l.b16 %v2032
        %v2415 = vunpack.c.h.b16 %v2032
        %v2416 = vunpack.c.l.b16 %v2033
        %v2417 = vunpack.c.h.b16 %v2033
        %v2418 = vunpack.c.l.b16 %v2034
        %v2419 = vunpack.c.h.b16 %v2034
        %v2420 = vunpack.c.l.b16 %v2035
        %v2421 = vunpack.c.h.b16 %v2035
        %v2422 = vunpack.c.l.b16 %v2036
        %v2423 = vunpack.c.h.b16 %v2036
        %v2424 = vunpack.c.l.b16 %v2037
        %v2425 = vunpack.c.h.b16 %v2037
        %v2426 = vunpack.c.l.b16 %v2038
        %v2427 = vunpack.c.h.b16 %v2038
        %v2428 = vunpack.c.l.b16 %v2039
        %v2429 = vunpack.c.h.b16 %v2039
        %v2430 = vunpack.c.l.b16 %v2040
        %v2431 = vunpack.c.h.b16 %v2040
        %v2432 = vunpack.c.l.b16 %v2041
        %v2433 = vunpack.c.h.b16 %v2041
        %v2434 = vunpack.c.l.b16 %v2042
        %v2435 = vunpack.c.h.b16 %v2042
        %v2436 = vunpack.c.l.b16 %v2043
        %v2437 = vunpack.c.h.b16 %v2043
        %v2438 = vunpack.c.l.b16 %v2044
        %v2439 = vunpack.c.h.b16 %v2044
        %v2440 = vunpack.c.l.b16 %v2045
        %v2441 = vunpack.c.h.b16 %v2045
        %v2442 = vunpack.c.l.b16 %v2046
        %v2443 = vunpack.c.h.b16 %v2046
        %v2444 = vunpack.c.l.b16 %v2047
        %v2445 = vunpack.c.h.b16 %v2047
        %v2446 = vunpack.c.l.b16 %v2048
        %v2447 = vunpack.c.h.b16 %v2048
        %v2448 = vunpack.c.l.b16 %v2049
        %v2449 = vunpack.c.h.b16 %v2049
        %v2450 = vunpack.c.l.b16 %v2050
        %v2451 = vunpack.c.h.b16 %v2050
        %v2452 = vunpack.c.l.b16 %v2051
        %v2453 = vunpack.c.h.b16 %v2051
        %v2454 = vunpack.c.l.b16 %v2052
        %v2455 = vunpack.c.h.b16 %v2052
        %v2456 = vunpack.c.l.b16 %v2053
        %v2457 = vunpack.c.h.b16 %v2053
        %v2458 = vunpack.c.l.b16 %v2054
        %v2459 = vunpack.c.h.b16 %v2054
        %v2460 = vunpack.c.l.b16 %v2055
        %v2461 = vunpack.c.h.b16 %v2055
        %v2462 = vpack.c.b16 %v2210, %v2206
        %v2463 = vpack.c.b16 %v2211, %v2207
        %v2464 = vpack.c.b16 %v2212, %v2208
        %v2465 = vpack.c.b16 %v2213, %v2209
        %v2466 = vpack.c.b16 %v2218, %v2214
        %v2467 = vpack.c.b16 %v2219, %v2215
        %v2468 = vpack.c.b16 %v2220, %v2216
        %v2469 = vpack.c.b16 %v2221, %v2217
        %v2470 = vpack.c.b16 %v2226, %v2222
        %v2471 = vpack.c.b16 %v2227, %v2223
        %v2472 = vpack.c.b16 %v2228, %v2224
        %v2473 = vpack.c.b16 %v2229, %v2225
        %v2474 = vpack.c.b16 %v2234, %v2230
        %v2475 = vpack.c.b16 %v2235, %v2231
        %v2476 = vpack.c.b16 %v2236, %v2232
        %v2477 = vpack.c.b16 %v2237, %v2233
        %v2478 = vpack.c.b16 %v2242, %v2238
        %v2479 = vpack.c.b16 %v2243, %v2239
        %v2480 = vpack.c.b16 %v2244, %v2240
        %v2481 = vpack.c.b16 %v2245, %v2241
        %v2482 = vpack.c.b16 %v2250, %v2246
        %v2483 = vpack.c.b16 %v2251, %v2247
        %v2484 = vpack.c.b16 %v2252, %v2248
        %v2485 = vpack.c.b16 %v2253, %v2249
        %v2486 = vpack.c.b16 %v2258, %v2254
        %v2487 = vpack.c.b16 %v2259, %v2255
        %v2488 = vpack.c.b16 %v2260, %v2256
        %v2489 = vpack.c.b16 %v2261, %v2257
        %v2490 = vpack.c.b16 %v2266, %v2262
        %v2491 = vpack.c.b16 %v2267, %v2263
        %v2492 = vpack.c.b16 %v2268, %v2264
        %v2493 = vpack.c.b16 %v2269, %v2265
        %v2494 = vpack.c.b16 %v2274, %v2270
        %v2495 = vpack.c.b16 %v2275, %v2271
        %v2496 = vpack.c.b16 %v2276, %v2272
        %v2497 = vpack.c.b16 %v2277, %v2273
        %v2498 = vpack.c.b16 %v2282, %v2278
        %v2499 = vpack.c.b16 %v2283, %v2279
        %v2500 = vpack.c.b16 %v2284, %v2280
        %v2501 = vpack.c.b16 %v2285, %v2281
        %v2502 = vpack.c.b16 %v2290, %v2286
        %v2503 = vpack.c.b16 %v2291, %v2287
        %v2504 = vpack.c.b16 %v2292, %v2288
        %v2505 = vpack.c.b16 %v2293, %v2289
        %v2506 = vpack.c.b16 %v2298, %v2294
        %v2507 = vpack.c.b16 %v2299, %v2295
        %v2508 = vpack.c.b16 %v2300, %v2296
        %v2509 = vpack.c.b16 %v2301, %v2297
        %v2510 = vpack.c.b16 %v2306, %v2302
        %v2511 = vpack.c.b16 %v2307, %v2303
        %v2512 = vpack.c.b16 %v2308, %v2304
        %v2513 = vpack.c.b16 %v2309, %v2305
        %v2514 = vpack.c.b16 %v2314, %v2310
        %v2515 = vpack.c.b16 %v2315, %v2311
        %v2516 = vpack.c.b16 %v2316, %v2312
        %v2517 = vpack.c.b16 %v2317, %v2313
        %v2518 = vpack.c.b16 %v2322, %v2318
        %v2519 = vpack.c.b16 %v2323, %v2319
        %v2520 = vpack.c.b16 %v2324, %v2320
        %v2521 = vpack.c.b16 %v2325, %v2321
        %v2522 = vpack.c.b16 %v2330, %v2326
        %v2523 = vpack.c.b16 %v2331, %v2327
        %v2524 = vpack.c.b16 %v2332, %v2328
        %v2525 = vpack.c.b16 %v2333, %v2329
        %v2526 = vpack.c.b16 %v2338, %v2334
        %v2527 = vpack.c.b16 %v2339, %v2335
        %v2528 = vpack.c.b16 %v2340, %v2336
        %v2529 = vpack.c.b16 %v2341, %v2337
        %v2530 = vpack.c.b16 %v2346, %v2342
        %v2531 = vpack.c.b16 %v2347, %v2343
        %v2532 = vpack.c.b16 %v2348, %v2344
        %v2533 = vpack.c.b16 %v2349, %v2345
        %v2534 = vpack.c.b16 %v2354, %v2350
        %v2535 = vpack.c.b16 %v2355, %v2351
        %v2536 = vpack.c.b16 %v2356, %v2352
        %v2537 = vpack.c.b16 %v2357, %v2353
        %v2538 = vpack.c.b16 %v2362, %v2358
        %v2539 = vpack.c.b16 %v2363, %v2359
        %v2540 = vpack.c.b16 %v2364, %v2360
        %v2541 = vpack.c.b16 %v2365, %v2361
        %v2542 = vpack.c.b16 %v2370, %v2366
        %v2543 = vpack.c.b16 %v2371, %v2367
        %v2544 = vpack.c.b16 %v2372, %v2368
        %v2545 = vpack.c.b16 %v2373, %v2369
        %v2546 = vpack.c.b16 %v2378, %v2374
        %v2547 = vpack.c.b16 %v2379, %v2375
        %v2548 = vpack.c.b16 %v2380, %v2376
        %v2549 = vpack.c.b16 %v2381, %v2377
        %v2550 = vpack.c.b16 %v2386, %v2382
        %v2551 = vpack.c.b16 %v2387, %v2383
        %v2552 = vpack.c.b16 %v2388, %v2384
        %v2553 = vpack.c.b16 %v2389, %v2385
        %v2554 = vpack.c.b16 %v2394, %v2390
        %v2555 = vpack.c.b16 %v2395, %v2391
        %v2556 = vpack.c.b16 %v2396, %v2392
        %v2557 = vpack.c.b16 %v2397, %v2393
        %v2558 = vpack.c.b16 %v2402, %v2398
        %v2559 = vpack.c.b16 %v2403, %v2399
        %v2560 = vpack.c.b16 %v2404, %v2400
        %v2561 = vpack.c.b16 %v2405, %v2401
        %v2562 = vpack.c.b16 %v2410, %v2406
        %v2563 = vpack.c.b16 %v2411, %v2407
        %v2564 = vpack.c.b16 %v2412, %v2408
        %v2565 = vpack.c.b16 %v2413, %v2409
        %v2566 = vpack.c.b16 %v2418, %v2414
        %v2567 = vpack.c.b16 %v2419, %v2415
        %v2568 = vpack.c.b16 %v2420, %v2416
        %v2569 = vpack.c.b16 %v2421, %v2417
        %v2570 = vpack.c.b16 %v2426, %v2422
        %v2571 = vpack.c.b16 %v2427, %v2423
        %v2572 = vpack.c.b16 %v2428, %v2424
        %v2573 = vpack.c.b16 %v2429, %v2425
        %v2574 = vpack.c.b16 %v2434, %v2430
        %v2575 = vpack.c.b16 %v2435, %v2431
        %v2576 = vpack.c.b16 %v2436, %v2432
        %v2577 = vpack.c.b16 %v2437, %v2433
        %v2578 = vpack.c.b16 %v2442, %v2438
        %v2579 = vpack.c.b16 %v2443, %v2439
        %v2580 = vpack.c.b16 %v2444, %v2440
        %v2581 = vpack.c.b16 %v2445, %v2441
        %v2582 = vpack.c.b16 %v2450, %v2446
        %v2583 = vpack.c.b16 %v2451, %v2447
        %v2584 = vpack.c.b16 %v2452, %v2448
        %v2585 = vpack.c.b16 %v2453, %v2449
        %v2586 = vpack.c.b16 %v2458, %v2454
        %v2587 = vpack.c.b16 %v2459, %v2455
        %v2588 = vpack.c.b16 %v2460, %v2456
        %v2589 = vpack.c.b16 %v2461, %v2457
        %2718 = vmatprep.subr.bf16.mxu0 %v2463
        %2719 = vmatpush1.bf16.msra.mxu0 %v2462
        %2720 = vmatprep.subr.bf16.mxu0 %v2467
        %2721 = vmatpush1.bf16.msra.mxu0 %v2466
        %2722 = vmatprep.subr.bf16.mxu0 %v2471
        %2723 = vmatpush1.bf16.msra.mxu0 %v2470
        %2724 = vmatprep.subr.bf16.mxu0 %v2475
        %2725 = vmatpush1.bf16.msra.mxu0 %v2474
        %2726 = vmatprep.subr.bf16.mxu0 %v2479
        %2727 = vmatpush1.bf16.msra.mxu0 %v2478
        %2728 = vmatprep.subr.bf16.mxu0 %v2483
        %2729 = vmatpush1.bf16.msra.mxu0 %v2482
        %2730 = vmatprep.subr.bf16.mxu0 %v2487
        %2731 = vmatpush1.bf16.msra.mxu0 %v2486
        %2732 = vmatprep.subr.bf16.mxu0 %v2491
        %2733 = vmatpush1.bf16.msra.mxu0 %v2490
        %2734 = vmatprep.subr.bf16.mxu0 %v2495
        %2735 = vmatpush1.bf16.msra.mxu0 %v2494
        %2736 = vmatprep.subr.bf16.mxu0 %v2499
        %2737 = vmatpush1.bf16.msra.mxu0 %v2498
        %2738 = vmatprep.subr.bf16.mxu0 %v2503
        %2739 = vmatpush1.bf16.msra.mxu0 %v2502
        %2740 = vmatprep.subr.bf16.mxu0 %v2507
        %2741 = vmatpush1.bf16.msra.mxu0 %v2506
        %2742 = vmatprep.subr.bf16.mxu0 %v2511
        %2743 = vmatpush1.bf16.msra.mxu0 %v2510
        %2744 = vmatprep.subr.bf16.mxu0 %v2515
        %2745 = vmatpush1.bf16.msra.mxu0 %v2514
        %2746 = vmatprep.subr.bf16.mxu0 %v2519
        %2747 = vmatpush1.bf16.msra.mxu0 %v2518
        %2748 = vmatprep.subr.bf16.mxu0 %v2523
        %2749 = vmatpush1.bf16.msra.mxu0 %v2522
        %2750 = vmatprep.mubr.bf16.mxu0 %v1925
        %2751 = vmatmul.mubr.bf16.gmra.mrb[0].mxu0 %v1924
        %v2752 = vpop.f32.mrb[0].mxu0
        %v2753 = vadd.f32 %v2061, %v2752
        %v2754 = vpop.f32.mrb[0].mxu0
        %v2755 = vadd.f32 %v2065, %v2754
        %v2756 = vpop.f32.mrb[0].mxu0
        %v2757 = vpop.f32.mrb[0].mxu0
        %2758 = vdwg.mxu0
        %2759 = vmatprep.subr.bf16.mxu0 %v2527
        %2760 = vmatpush1.bf16.msra.mxu0 %v2526
        %2761 = vmatprep.subr.bf16.mxu0 %v2531
        %2762 = vmatpush1.bf16.msra.mxu0 %v2530
        %2763 = vmatprep.subr.bf16.mxu0 %v2535
        %2764 = vmatpush1.bf16.msra.mxu0 %v2534
        %2765 = vmatprep.subr.bf16.mxu0 %v2539
        %2766 = vmatpush1.bf16.msra.mxu0 %v2538
        %2767 = vmatprep.subr.bf16.mxu0 %v2543
        %2768 = vmatpush1.bf16.msra.mxu0 %v2542
        %2769 = vmatprep.subr.bf16.mxu0 %v2547
        %2770 = vmatpush1.bf16.msra.mxu0 %v2546
        %2771 = vmatprep.subr.bf16.mxu0 %v2551
        %2772 = vmatpush1.bf16.msra.mxu0 %v2550
        %2773 = vmatprep.subr.bf16.mxu0 %v2555
        %2774 = vmatpush1.bf16.msra.mxu0 %v2554
        %2775 = vmatprep.subr.bf16.mxu0 %v2559
        %2776 = vmatpush1.bf16.msra.mxu0 %v2558
        %2777 = vmatprep.subr.bf16.mxu0 %v2563
        %2778 = vmatpush1.bf16.msra.mxu0 %v2562
        %2779 = vmatprep.subr.bf16.mxu0 %v2567
        %2780 = vmatpush1.bf16.msra.mxu0 %v2566
        %2781 = vmatprep.subr.bf16.mxu0 %v2571
        %2782 = vmatpush1.bf16.msra.mxu0 %v2570
        %2783 = vmatprep.subr.bf16.mxu0 %v2575
        %2784 = vmatpush1.bf16.msra.mxu0 %v2574
        %2785 = vmatprep.subr.bf16.mxu0 %v2579
        %2786 = vmatpush1.bf16.msra.mxu0 %v2578
        %2787 = vmatprep.subr.bf16.mxu0 %v2583
        %2788 = vmatpush1.bf16.msra.mxu0 %v2582
        %2789 = vmatprep.subr.bf16.mxu0 %v2587
        %2790 = vmatpush1.bf16.msra.mxu0 %v2586
        %2791 = vmatprep.mubr.bf16.mxu0 %v1927
        %2792 = vmatmul.mubr.bf16.gmra.mrb[0].mxu0 %v1926
        %v2793 = vpop.f32.mrb[0].mxu0
        %v2794 = vadd.f32 %v2753, %v2793
        %v2795 = vpop.f32.mrb[0].mxu0
        %v2796 = vadd.f32 %v2755, %v2795
        %v2797 = vpop.f32.mrb[0].mxu0
        %v2798 = vpop.f32.mrb[0].mxu0
        %2799 = vdwg.mxu0
        %2800 = vmatprep.subr.bf16.mxu0 %v2465
        %2801 = vmatpush1.bf16.msra.mxu0 %v2464
        %2802 = vmatprep.subr.bf16.mxu0 %v2469
        %2803 = vmatpush1.bf16.msra.mxu0 %v2468
        %2804 = vmatprep.subr.bf16.mxu0 %v2473
        %2805 = vmatpush1.bf16.msra.mxu0 %v2472
        %2806 = vmatprep.subr.bf16.mxu0 %v2477
        %2807 = vmatpush1.bf16.msra.mxu0 %v2476
        %2808 = vmatprep.subr.bf16.mxu0 %v2481
        %2809 = vmatpush1.bf16.msra.mxu0 %v2480
        %2810 = vmatprep.subr.bf16.mxu0 %v2485
        %2811 = vmatpush1.bf16.msra.mxu0 %v2484
        %2812 = vmatprep.subr.bf16.mxu0 %v2489
        %2813 = vmatpush1.bf16.msra.mxu0 %v2488
        %2814 = vmatprep.subr.bf16.mxu0 %v2493
        %2815 = vmatpush1.bf16.msra.mxu0 %v2492
        %2816 = vmatprep.subr.bf16.mxu0 %v2497
        %2817 = vmatpush1.bf16.msra.mxu0 %v2496
        %2818 = vmatprep.subr.bf16.mxu0 %v2501
        %2819 = vmatpush1.bf16.msra.mxu0 %v2500
        %2820 = vmatprep.subr.bf16.mxu0 %v2505
        %2821 = vmatpush1.bf16.msra.mxu0 %v2504
        %2822 = vmatprep.subr.bf16.mxu0 %v2509
        %2823 = vmatpush1.bf16.msra.mxu0 %v2508
        %2824 = vmatprep.subr.bf16.mxu0 %v2513
        %2825 = vmatpush1.bf16.msra.mxu0 %v2512
        %2826 = vmatprep.subr.bf16.mxu0 %v2517
        %2827 = vmatpush1.bf16.msra.mxu0 %v2516
        %2828 = vmatprep.subr.bf16.mxu0 %v2521
        %2829 = vmatpush1.bf16.msra.mxu0 %v2520
        %2830 = vmatprep.subr.bf16.mxu0 %v2525
        %2831 = vmatpush1.bf16.msra.mxu0 %v2524
        %2832 = vmatprep.mubr.bf16.mxu0 %v1925
        %2833 = vmatmul.mubr.bf16.gmra.mrb[0].mxu0 %v1924
        %v2834 = vpop.f32.mrb[0].mxu0
        %v2835 = vadd.f32 %v2069, %v2834
        %v2836 = vpop.f32.mrb[0].mxu0
        %v2837 = vadd.f32 %v2073, %v2836
        %v2838 = vpop.f32.mrb[0].mxu0
        %v2839 = vpop.f32.mrb[0].mxu0
        %2840 = vdwg.mxu0
        %2841 = vmatprep.subr.bf16.mxu0 %v2529
        %2842 = vmatpush1.bf16.msra.mxu0 %v2528
        %2843 = vmatprep.subr.bf16.mxu0 %v2533
        %2844 = vmatpush1.bf16.msra.mxu0 %v2532
        %2845 = vmatprep.subr.bf16.mxu0 %v2537
        %2846 = vmatpush1.bf16.msra.mxu0 %v2536
        %2847 = vmatprep.subr.bf16.mxu0 %v2541
        %2848 = vmatpush1.bf16.msra.mxu0 %v2540
        %2849 = vmatprep.subr.bf16.mxu0 %v2545
        %2850 = vmatpush1.bf16.msra.mxu0 %v2544
        %2851 = vmatprep.subr.bf16.mxu0 %v2549
        %2852 = vmatpush1.bf16.msra.mxu0 %v2548
        %2853 = vmatprep.subr.bf16.mxu0 %v2553
        %2854 = vmatpush1.bf16.msra.mxu0 %v2552
        %2855 = vmatprep.subr.bf16.mxu0 %v2557
        %2856 = vmatpush1.bf16.msra.mxu0 %v2556
        %2857 = vmatprep.subr.bf16.mxu0 %v2561
        %2858 = vmatpush1.bf16.msra.mxu0 %v2560
        %2859 = vmatprep.subr.bf16.mxu0 %v2565
        %2860 = vmatpush1.bf16.msra.mxu0 %v2564
        %2861 = vmatprep.subr.bf16.mxu0 %v2569
        %2862 = vmatpush1.bf16.msra.mxu0 %v2568
        %2863 = vmatprep.subr.bf16.mxu0 %v2573
        %2864 = vmatpush1.bf16.msra.mxu0 %v2572
        %2865 = vmatprep.subr.bf16.mxu0 %v2577
        %2866 = vmatpush1.bf16.msra.mxu0 %v2576
        %2867 = vmatprep.subr.bf16.mxu0 %v2581
        %2868 = vmatpush1.bf16.msra.mxu0 %v2580
        %2869 = vmatprep.subr.bf16.mxu0 %v2585
        %2870 = vmatpush1.bf16.msra.mxu0 %v2584
        %2871 = vmatprep.subr.bf16.mxu0 %v2589
        %2872 = vmatpush1.bf16.msra.mxu0 %v2588
        %2873 = vmatprep.mubr.bf16.mxu0 %v1927
        %2874 = vmatmul.mubr.bf16.gmra.mrb[0].mxu0 %v1926
        %v2875 = vpop.f32.mrb[0].mxu0
        %v2876 = vadd.f32 %v2835, %v2875
        %v2877 = vpop.f32.mrb[0].mxu0
        %v2878 = vadd.f32 %v2837, %v2877
        %v2879 = vpop.f32.mrb[0].mxu0
        %v2880 = vpop.f32.mrb[0].mxu0
        %2881 = vdwg.mxu0
        %v2882 = vmax.f32 %v2794, 0.0
        %v2883 = vmax.f32 %v2796, 0.0
        %v2884 = vmax.f32 %v2876, 0.0
        %v2885 = vmax.f32 %v2878, 0.0
        %v2886 = vpack.c.bf16 %v2882, %v2882
        %v2887 = vpack.c.bf16 %v2883, %v2883
        %v2888 = vpack.c.bf16 %v2884, %v2884
        %v2889 = vpack.c.bf16 %v2885, %v2885
        %v2890 = vld [vmem:[#allocation7] sm:$0xff]
        %v2891 = vld [vmem:[#allocation7 + $0x8] sm:$0xff]
        %v2892 = vld [vmem:[#allocation7 + $0x10] sm:$0xff]
        %v2893 = vld [vmem:[#allocation7 + $0x18] sm:$0xff]
        %v2894 = vld [vmem:[#allocation7 + $0x20] sm:$0xff]
        %v2895 = vld [vmem:[#allocation7 + $0x28] sm:$0xff]
        %v2896 = vld [vmem:[#allocation7 + $0x30] sm:$0xff]
        %v2897 = vld [vmem:[#allocation7 + $0x38] sm:$0xff]
        %v2898 = vld [vmem:[#allocation7 + $0x40] sm:$0xff]
        %v2899 = vld [vmem:[#allocation7 + $0x48] sm:$0xff]
        %v2900 = vld [vmem:[#allocation7 + $0x50] sm:$0xff]
        %v2901 = vld [vmem:[#allocation7 + $0x58] sm:$0xff]
        %v2902 = vld [vmem:[#allocation7 + $0x60] sm:$0xff]
        %v2903 = vld [vmem:[#allocation7 + $0x68] sm:$0xff]
        %v2904 = vld [vmem:[#allocation7 + $0x70] sm:$0xff]
        %v2905 = vld [vmem:[#allocation7 + $0x78] sm:$0xff]
        %v2906 = vld [vmem:[#allocation7 + $0x80] sm:$0xff]
        %v2907 = vld [vmem:[#allocation7 + $0x88] sm:$0xff]
        %v2908 = vld [vmem:[#allocation7 + $0x90] sm:$0xff]
        %v2909 = vld [vmem:[#allocation7 + $0x98] sm:$0xff]
        %v2910 = vld [vmem:[#allocation7 + $0xa0] sm:$0xff]
        %v2911 = vld [vmem:[#allocation7 + $0xa8] sm:$0xff]
        %v2912 = vld [vmem:[#allocation7 + $0xb0] sm:$0xff]
        %v2913 = vld [vmem:[#allocation7 + $0xb8] sm:$0xff]
        %v2914 = vld [vmem:[#allocation7 + $0xc0] sm:$0xff]
        %v2915 = vld [vmem:[#allocation7 + $0xc8] sm:$0xff]
        %v2916 = vld [vmem:[#allocation7 + $0xd0] sm:$0xff]
        %v2917 = vld [vmem:[#allocation7 + $0xd8] sm:$0xff]
        %v2918 = vld [vmem:[#allocation7 + $0xe0] sm:$0xff]
        %v2919 = vld [vmem:[#allocation7 + $0xe8] sm:$0xff]
        %v2920 = vld [vmem:[#allocation7 + $0xf0] sm:$0xff]
        %v2921 = vld [vmem:[#allocation7 + $0xf8] sm:$0xff]
        %v2922 = vld [vmem:[#allocation7 + $0x100] sm:$0xff]
        %v2923 = vld [vmem:[#allocation7 + $0x108] sm:$0xff]
        %v2924 = vld [vmem:[#allocation7 + $0x110] sm:$0xff]
        %v2925 = vld [vmem:[#allocation7 + $0x118] sm:$0xff]
        %v2926 = vld [vmem:[#allocation7 + $0x120] sm:$0xff]
        %v2927 = vld [vmem:[#allocation7 + $0x128] sm:$0xff]
        %v2928 = vld [vmem:[#allocation7 + $0x130] sm:$0xff]
        %v2929 = vld [vmem:[#allocation7 + $0x138] sm:$0xff]
        %v2930 = vld [vmem:[#allocation7 + $0x140] sm:$0xff]
        %v2931 = vld [vmem:[#allocation7 + $0x148] sm:$0xff]
        %v2932 = vld [vmem:[#allocation7 + $0x150] sm:$0xff]
        %v2933 = vld [vmem:[#allocation7 + $0x158] sm:$0xff]
        %v2934 = vld [vmem:[#allocation7 + $0x160] sm:$0xff]
        %v2935 = vld [vmem:[#allocation7 + $0x168] sm:$0xff]
        %v2936 = vld [vmem:[#allocation7 + $0x170] sm:$0xff]
        %v2937 = vld [vmem:[#allocation7 + $0x178] sm:$0xff]
        %v2938 = vld [vmem:[#allocation7 + $0x180] sm:$0xff]
        %v2939 = vld [vmem:[#allocation7 + $0x188] sm:$0xff]
        %v2940 = vld [vmem:[#allocation7 + $0x190] sm:$0xff]
        %v2941 = vld [vmem:[#allocation7 + $0x198] sm:$0xff]
        %v2942 = vld [vmem:[#allocation7 + $0x1a0] sm:$0xff]
        %v2943 = vld [vmem:[#allocation7 + $0x1a8] sm:$0xff]
        %v2944 = vld [vmem:[#allocation7 + $0x1b0] sm:$0xff]
        %v2945 = vld [vmem:[#allocation7 + $0x1b8] sm:$0xff]
        %v2946 = vld [vmem:[#allocation7 + $0x1c0] sm:$0xff]
        %v2947 = vld [vmem:[#allocation7 + $0x1c8] sm:$0xff]
        %v2948 = vld [vmem:[#allocation7 + $0x1d0] sm:$0xff]
        %v2949 = vld [vmem:[#allocation7 + $0x1d8] sm:$0xff]
        %v2950 = vld [vmem:[#allocation7 + $0x1e0] sm:$0xff]
        %v2951 = vld [vmem:[#allocation7 + $0x1e8] sm:$0xff]
        %v2952 = vld [vmem:[#allocation7 + $0x1f0] sm:$0xff]
        %v2953 = vld [vmem:[#allocation7 + $0x1f8] sm:$0xff]
        %v2954 = vld [vmem:[#allocation7 + $0x200] sm:$0xff]
        %v2955 = vld [vmem:[#allocation7 + $0x208] sm:$0xff]
        %v2956 = vld [vmem:[#allocation7 + $0x210] sm:$0xff]
        %v2957 = vld [vmem:[#allocation7 + $0x218] sm:$0xff]
        %v2958 = vld [vmem:[#allocation7 + $0x220] sm:$0xff]
        %v2959 = vld [vmem:[#allocation7 + $0x228] sm:$0xff]
        %v2960 = vld [vmem:[#allocation7 + $0x230] sm:$0xff]
        %v2961 = vld [vmem:[#allocation7 + $0x238] sm:$0xff]
        %v2962 = vld [vmem:[#allocation7 + $0x240] sm:$0xff]
        %v2963 = vld [vmem:[#allocation7 + $0x248] sm:$0xff]
        %v2964 = vld [vmem:[#allocation7 + $0x250] sm:$0xff]
        %v2965 = vld [vmem:[#allocation7 + $0x258] sm:$0xff]
        %v2966 = vld [vmem:[#allocation7 + $0x260] sm:$0xff]
        %v2967 = vld [vmem:[#allocation7 + $0x268] sm:$0xff]
        %v2968 = vld [vmem:[#allocation7 + $0x270] sm:$0xff]
        %v2969 = vld [vmem:[#allocation7 + $0x278] sm:$0xff]
        %v2970 = vld [vmem:[#allocation7 + $0x280] sm:$0xff]
        %v2971 = vld [vmem:[#allocation7 + $0x288] sm:$0xff]
        %v2972 = vld [vmem:[#allocation7 + $0x290] sm:$0xff]
        %v2973 = vld [vmem:[#allocation7 + $0x298] sm:$0xff]
        %v2974 = vld [vmem:[#allocation7 + $0x2a0] sm:$0xff]
        %v2975 = vld [vmem:[#allocation7 + $0x2a8] sm:$0xff]
        %v2976 = vld [vmem:[#allocation7 + $0x2b0] sm:$0xff]
        %v2977 = vld [vmem:[#allocation7 + $0x2b8] sm:$0xff]
        %v2978 = vld [vmem:[#allocation7 + $0x2c0] sm:$0xff]
        %v2979 = vld [vmem:[#allocation7 + $0x2c8] sm:$0xff]
        %v2980 = vld [vmem:[#allocation7 + $0x2d0] sm:$0xff]
        %v2981 = vld [vmem:[#allocation7 + $0x2d8] sm:$0xff]
        %v2982 = vld [vmem:[#allocation7 + $0x2e0] sm:$0xff]
        %v2983 = vld [vmem:[#allocation7 + $0x2e8] sm:$0xff]
        %v2984 = vld [vmem:[#allocation7 + $0x2f0] sm:$0xff]
        %v2985 = vld [vmem:[#allocation7 + $0x2f8] sm:$0xff]
        %v2986 = vld [vmem:[#allocation7 + $0x300] sm:$0xff]
        %v2987 = vld [vmem:[#allocation7 + $0x308] sm:$0xff]
        %v2988 = vld [vmem:[#allocation7 + $0x310] sm:$0xff]
        %v2989 = vld [vmem:[#allocation7 + $0x318] sm:$0xff]
        %v2990 = vld [vmem:[#allocation7 + $0x320] sm:$0xff]
        %v2991 = vld [vmem:[#allocation7 + $0x328] sm:$0xff]
        %v2992 = vld [vmem:[#allocation7 + $0x330] sm:$0xff]
        %v2993 = vld [vmem:[#allocation7 + $0x338] sm:$0xff]
        %v2994 = vld [vmem:[#allocation7 + $0x340] sm:$0xff]
        %v2995 = vld [vmem:[#allocation7 + $0x348] sm:$0xff]
        %v2996 = vld [vmem:[#allocation7 + $0x350] sm:$0xff]
        %v2997 = vld [vmem:[#allocation7 + $0x358] sm:$0xff]
        %v2998 = vld [vmem:[#allocation7 + $0x360] sm:$0xff]
        %v2999 = vld [vmem:[#allocation7 + $0x368] sm:$0xff]
        %v3000 = vld [vmem:[#allocation7 + $0x370] sm:$0xff]
        %v3001 = vld [vmem:[#allocation7 + $0x378] sm:$0xff]
        %v3002 = vld [vmem:[#allocation7 + $0x380] sm:$0xff]
        %v3003 = vld [vmem:[#allocation7 + $0x388] sm:$0xff]
        %v3004 = vld [vmem:[#allocation7 + $0x390] sm:$0xff]
        %v3005 = vld [vmem:[#allocation7 + $0x398] sm:$0xff]
        %v3006 = vld [vmem:[#allocation7 + $0x3a0] sm:$0xff]
        %v3007 = vld [vmem:[#allocation7 + $0x3a8] sm:$0xff]
        %v3008 = vld [vmem:[#allocation7 + $0x3b0] sm:$0xff]
        %v3009 = vld [vmem:[#allocation7 + $0x3b8] sm:$0xff]
        %v3010 = vld [vmem:[#allocation7 + $0x3c0] sm:$0xff]
        %v3011 = vld [vmem:[#allocation7 + $0x3c8] sm:$0xff]
        %v3012 = vld [vmem:[#allocation7 + $0x3d0] sm:$0xff]
        %v3013 = vld [vmem:[#allocation7 + $0x3d8] sm:$0xff]
        %v3014 = vld [vmem:[#allocation7 + $0x3e0] sm:$0xff]
        %v3015 = vld [vmem:[#allocation7 + $0x3e8] sm:$0xff]
        %v3016 = vld [vmem:[#allocation7 + $0x3f0] sm:$0xff]
        %v3017 = vld [vmem:[#allocation7 + $0x3f8] sm:$0xff]
        %v3018 = vld [vmem:[%s6] sm:$0xf]
        %v3020 = vlaneseq
        %v3021 = vshrl.u32 %v3020, 7
        %v3022 = vsub.s32 0, %v3021
        %v3023 = vrot.slane %v3018, %v3022
        %v3024 = vlaneseq
        %v3025 = vshrl.u32 %v3024, 7
        %v3026 = vsub.s32 1, %v3025
        %v3027 = vrot.slane %v3018, %v3026
        %v3028 = vlaneseq
        %v3029 = vshrl.u32 %v3028, 7
        %v3030 = vsub.s32 2, %v3029
        %v3031 = vrot.slane %v3018, %v3030
        %v3032 = vlaneseq
        %v3033 = vshrl.u32 %v3032, 7
        %v3034 = vsub.s32 3, %v3033
        %v3035 = vrot.slane %v3018, %v3034
        %v3168 = vunpack.c.l.b16 %v2890
        %v3169 = vunpack.c.h.b16 %v2890
        %v3170 = vunpack.c.l.b16 %v2891
        %v3171 = vunpack.c.h.b16 %v2891
        %v3172 = vunpack.c.l.b16 %v2892
        %v3173 = vunpack.c.h.b16 %v2892
        %v3174 = vunpack.c.l.b16 %v2893
        %v3175 = vunpack.c.h.b16 %v2893
        %v3176 = vunpack.c.l.b16 %v2894
        %v3177 = vunpack.c.h.b16 %v2894
        %v3178 = vunpack.c.l.b16 %v2895
        %v3179 = vunpack.c.h.b16 %v2895
        %v3180 = vunpack.c.l.b16 %v2896
        %v3181 = vunpack.c.h.b16 %v2896
        %v3182 = vunpack.c.l.b16 %v2897
        %v3183 = vunpack.c.h.b16 %v2897
        %v3184 = vunpack.c.l.b16 %v2898
        %v3185 = vunpack.c.h.b16 %v2898
        %v3186 = vunpack.c.l.b16 %v2899
        %v3187 = vunpack.c.h.b16 %v2899
        %v3188 = vunpack.c.l.b16 %v2900
        %v3189 = vunpack.c.h.b16 %v2900
        %v3190 = vunpack.c.l.b16 %v2901
        %v3191 = vunpack.c.h.b16 %v2901
        %v3192 = vunpack.c.l.b16 %v2902
        %v3193 = vunpack.c.h.b16 %v2902
        %v3194 = vunpack.c.l.b16 %v2903
        %v3195 = vunpack.c.h.b16 %v2903
        %v3196 = vunpack.c.l.b16 %v2904
        %v3197 = vunpack.c.h.b16 %v2904
        %v3198 = vunpack.c.l.b16 %v2905
        %v3199 = vunpack.c.h.b16 %v2905
        %v3200 = vunpack.c.l.b16 %v2906
        %v3201 = vunpack.c.h.b16 %v2906
        %v3202 = vunpack.c.l.b16 %v2907
        %v3203 = vunpack.c.h.b16 %v2907
        %v3204 = vunpack.c.l.b16 %v2908
        %v3205 = vunpack.c.h.b16 %v2908
        %v3206 = vunpack.c.l.b16 %v2909
        %v3207 = vunpack.c.h.b16 %v2909
        %v3208 = vunpack.c.l.b16 %v2910
        %v3209 = vunpack.c.h.b16 %v2910
        %v3210 = vunpack.c.l.b16 %v2911
        %v3211 = vunpack.c.h.b16 %v2911
        %v3212 = vunpack.c.l.b16 %v2912
        %v3213 = vunpack.c.h.b16 %v2912
        %v3214 = vunpack.c.l.b16 %v2913
        %v3215 = vunpack.c.h.b16 %v2913
        %v3216 = vunpack.c.l.b16 %v2914
        %v3217 = vunpack.c.h.b16 %v2914
        %v3218 = vunpack.c.l.b16 %v2915
        %v3219 = vunpack.c.h.b16 %v2915
        %v3220 = vunpack.c.l.b16 %v2916
        %v3221 = vunpack.c.h.b16 %v2916
        %v3222 = vunpack.c.l.b16 %v2917
        %v3223 = vunpack.c.h.b16 %v2917
        %v3224 = vunpack.c.l.b16 %v2918
        %v3225 = vunpack.c.h.b16 %v2918
        %v3226 = vunpack.c.l.b16 %v2919
        %v3227 = vunpack.c.h.b16 %v2919
        %v3228 = vunpack.c.l.b16 %v2920
        %v3229 = vunpack.c.h.b16 %v2920
        %v3230 = vunpack.c.l.b16 %v2921
        %v3231 = vunpack.c.h.b16 %v2921
        %v3232 = vunpack.c.l.b16 %v2922
        %v3233 = vunpack.c.h.b16 %v2922
        %v3234 = vunpack.c.l.b16 %v2923
        %v3235 = vunpack.c.h.b16 %v2923
        %v3236 = vunpack.c.l.b16 %v2924
        %v3237 = vunpack.c.h.b16 %v2924
        %v3238 = vunpack.c.l.b16 %v2925
        %v3239 = vunpack.c.h.b16 %v2925
        %v3240 = vunpack.c.l.b16 %v2926
        %v3241 = vunpack.c.h.b16 %v2926
        %v3242 = vunpack.c.l.b16 %v2927
        %v3243 = vunpack.c.h.b16 %v2927
        %v3244 = vunpack.c.l.b16 %v2928
        %v3245 = vunpack.c.h.b16 %v2928
        %v3246 = vunpack.c.l.b16 %v2929
        %v3247 = vunpack.c.h.b16 %v2929
        %v3248 = vunpack.c.l.b16 %v2930
        %v3249 = vunpack.c.h.b16 %v2930
        %v3250 = vunpack.c.l.b16 %v2931
        %v3251 = vunpack.c.h.b16 %v2931
        %v3252 = vunpack.c.l.b16 %v2932
        %v3253 = vunpack.c.h.b16 %v2932
        %v3254 = vunpack.c.l.b16 %v2933
        %v3255 = vunpack.c.h.b16 %v2933
        %v3256 = vunpack.c.l.b16 %v2934
        %v3257 = vunpack.c.h.b16 %v2934
        %v3258 = vunpack.c.l.b16 %v2935
        %v3259 = vunpack.c.h.b16 %v2935
        %v3260 = vunpack.c.l.b16 %v2936
        %v3261 = vunpack.c.h.b16 %v2936
        %v3262 = vunpack.c.l.b16 %v2937
        %v3263 = vunpack.c.h.b16 %v2937
        %v3264 = vunpack.c.l.b16 %v2938
        %v3265 = vunpack.c.h.b16 %v2938
        %v3266 = vunpack.c.l.b16 %v2939
        %v3267 = vunpack.c.h.b16 %v2939
        %v3268 = vunpack.c.l.b16 %v2940
        %v3269 = vunpack.c.h.b16 %v2940
        %v3270 = vunpack.c.l.b16 %v2941
        %v3271 = vunpack.c.h.b16 %v2941
        %v3272 = vunpack.c.l.b16 %v2942
        %v3273 = vunpack.c.h.b16 %v2942
        %v3274 = vunpack.c.l.b16 %v2943
        %v3275 = vunpack.c.h.b16 %v2943
        %v3276 = vunpack.c.l.b16 %v2944
        %v3277 = vunpack.c.h.b16 %v2944
        %v3278 = vunpack.c.l.b16 %v2945
        %v3279 = vunpack.c.h.b16 %v2945
        %v3280 = vunpack.c.l.b16 %v2946
        %v3281 = vunpack.c.h.b16 %v2946
        %v3282 = vunpack.c.l.b16 %v2947
        %v3283 = vunpack.c.h.b16 %v2947
        %v3284 = vunpack.c.l.b16 %v2948
        %v3285 = vunpack.c.h.b16 %v2948
        %v3286 = vunpack.c.l.b16 %v2949
        %v3287 = vunpack.c.h.b16 %v2949
        %v3288 = vunpack.c.l.b16 %v2950
        %v3289 = vunpack.c.h.b16 %v2950
        %v3290 = vunpack.c.l.b16 %v2951
        %v3291 = vunpack.c.h.b16 %v2951
        %v3292 = vunpack.c.l.b16 %v2952
        %v3293 = vunpack.c.h.b16 %v2952
        %v3294 = vunpack.c.l.b16 %v2953
        %v3295 = vunpack.c.h.b16 %v2953
        %v3296 = vunpack.c.l.b16 %v2954
        %v3297 = vunpack.c.h.b16 %v2954
        %v3298 = vunpack.c.l.b16 %v2955
        %v3299 = vunpack.c.h.b16 %v2955
        %v3300 = vunpack.c.l.b16 %v2956
        %v3301 = vunpack.c.h.b16 %v2956
        %v3302 = vunpack.c.l.b16 %v2957
        %v3303 = vunpack.c.h.b16 %v2957
        %v3304 = vunpack.c.l.b16 %v2958
        %v3305 = vunpack.c.h.b16 %v2958
        %v3306 = vunpack.c.l.b16 %v2959
        %v3307 = vunpack.c.h.b16 %v2959
        %v3308 = vunpack.c.l.b16 %v2960
        %v3309 = vunpack.c.h.b16 %v2960
        %v3310 = vunpack.c.l.b16 %v2961
        %v3311 = vunpack.c.h.b16 %v2961
        %v3312 = vunpack.c.l.b16 %v2962
        %v3313 = vunpack.c.h.b16 %v2962
        %v3314 = vunpack.c.l.b16 %v2963
        %v3315 = vunpack.c.h.b16 %v2963
        %v3316 = vunpack.c.l.b16 %v2964
        %v3317 = vunpack.c.h.b16 %v2964
        %v3318 = vunpack.c.l.b16 %v2965
        %v3319 = vunpack.c.h.b16 %v2965
        %v3320 = vunpack.c.l.b16 %v2966
        %v3321 = vunpack.c.h.b16 %v2966
        %v3322 = vunpack.c.l.b16 %v2967
        %v3323 = vunpack.c.h.b16 %v2967
        %v3324 = vunpack.c.l.b16 %v2968
        %v3325 = vunpack.c.h.b16 %v2968
        %v3326 = vunpack.c.l.b16 %v2969
        %v3327 = vunpack.c.h.b16 %v2969
        %v3328 = vunpack.c.l.b16 %v2970
        %v3329 = vunpack.c.h.b16 %v2970
        %v3330 = vunpack.c.l.b16 %v2971
        %v3331 = vunpack.c.h.b16 %v2971
        %v3332 = vunpack.c.l.b16 %v2972
        %v3333 = vunpack.c.h.b16 %v2972
        %v3334 = vunpack.c.l.b16 %v2973
        %v3335 = vunpack.c.h.b16 %v2973
        %v3336 = vunpack.c.l.b16 %v2974
        %v3337 = vunpack.c.h.b16 %v2974
        %v3338 = vunpack.c.l.b16 %v2975
        %v3339 = vunpack.c.h.b16 %v2975
        %v3340 = vunpack.c.l.b16 %v2976
        %v3341 = vunpack.c.h.b16 %v2976
        %v3342 = vunpack.c.l.b16 %v2977
        %v3343 = vunpack.c.h.b16 %v2977
        %v3344 = vunpack.c.l.b16 %v2978
        %v3345 = vunpack.c.h.b16 %v2978
        %v3346 = vunpack.c.l.b16 %v2979
        %v3347 = vunpack.c.h.b16 %v2979
        %v3348 = vunpack.c.l.b16 %v2980
        %v3349 = vunpack.c.h.b16 %v2980
        %v3350 = vunpack.c.l.b16 %v2981
        %v3351 = vunpack.c.h.b16 %v2981
        %v3352 = vunpack.c.l.b16 %v2982
        %v3353 = vunpack.c.h.b16 %v2982
        %v3354 = vunpack.c.l.b16 %v2983
        %v3355 = vunpack.c.h.b16 %v2983
        %v3356 = vunpack.c.l.b16 %v2984
        %v3357 = vunpack.c.h.b16 %v2984
        %v3358 = vunpack.c.l.b16 %v2985
        %v3359 = vunpack.c.h.b16 %v2985
        %v3360 = vunpack.c.l.b16 %v2986
        %v3361 = vunpack.c.h.b16 %v2986
        %v3362 = vunpack.c.l.b16 %v2987
        %v3363 = vunpack.c.h.b16 %v2987
        %v3364 = vunpack.c.l.b16 %v2988
        %v3365 = vunpack.c.h.b16 %v2988
        %v3366 = vunpack.c.l.b16 %v2989
        %v3367 = vunpack.c.h.b16 %v2989
        %v3368 = vunpack.c.l.b16 %v2990
        %v3369 = vunpack.c.h.b16 %v2990
        %v3370 = vunpack.c.l.b16 %v2991
        %v3371 = vunpack.c.h.b16 %v2991
        %v3372 = vunpack.c.l.b16 %v2992
        %v3373 = vunpack.c.h.b16 %v2992
        %v3374 = vunpack.c.l.b16 %v2993
        %v3375 = vunpack.c.h.b16 %v2993
        %v3376 = vunpack.c.l.b16 %v2994
        %v3377 = vunpack.c.h.b16 %v2994
        %v3378 = vunpack.c.l.b16 %v2995
        %v3379 = vunpack.c.h.b16 %v2995
        %v3380 = vunpack.c.l.b16 %v2996
        %v3381 = vunpack.c.h.b16 %v2996
        %v3382 = vunpack.c.l.b16 %v2997
        %v3383 = vunpack.c.h.b16 %v2997
        %v3384 = vunpack.c.l.b16 %v2998
        %v3385 = vunpack.c.h.b16 %v2998
        %v3386 = vunpack.c.l.b16 %v2999
        %v3387 = vunpack.c.h.b16 %v2999
        %v3388 = vunpack.c.l.b16 %v3000
        %v3389 = vunpack.c.h.b16 %v3000
        %v3390 = vunpack.c.l.b16 %v3001
        %v3391 = vunpack.c.h.b16 %v3001
        %v3392 = vunpack.c.l.b16 %v3002
        %v3393 = vunpack.c.h.b16 %v3002
        %v3394 = vunpack.c.l.b16 %v3003
        %v3395 = vunpack.c.h.b16 %v3003
        %v3396 = vunpack.c.l.b16 %v3004
        %v3397 = vunpack.c.h.b16 %v3004
        %v3398 = vunpack.c.l.b16 %v3005
        %v3399 = vunpack.c.h.b16 %v3005
        %v3400 = vunpack.c.l.b16 %v3006
        %v3401 = vunpack.c.h.b16 %v3006
        %v3402 = vunpack.c.l.b16 %v3007
        %v3403 = vunpack.c.h.b16 %v3007
        %v3404 = vunpack.c.l.b16 %v3008
        %v3405 = vunpack.c.h.b16 %v3008
        %v3406 = vunpack.c.l.b16 %v3009
        %v3407 = vunpack.c.h.b16 %v3009
        %v3408 = vunpack.c.l.b16 %v3010
        %v3409 = vunpack.c.h.b16 %v3010
        %v3410 = vunpack.c.l.b16 %v3011
        %v3411 = vunpack.c.h.b16 %v3011
        %v3412 = vunpack.c.l.b16 %v3012
        %v3413 = vunpack.c.h.b16 %v3012
        %v3414 = vunpack.c.l.b16 %v3013
        %v3415 = vunpack.c.h.b16 %v3013
        %v3416 = vunpack.c.l.b16 %v3014
        %v3417 = vunpack.c.h.b16 %v3014
        %v3418 = vunpack.c.l.b16 %v3015
        %v3419 = vunpack.c.h.b16 %v3015
        %v3420 = vunpack.c.l.b16 %v3016
        %v3421 = vunpack.c.h.b16 %v3016
        %v3422 = vunpack.c.l.b16 %v3017
        %v3423 = vunpack.c.h.b16 %v3017
        %v3424 = vpack.c.b16 %v3172, %v3168
        %v3425 = vpack.c.b16 %v3173, %v3169
        %v3426 = vpack.c.b16 %v3174, %v3170
        %v3427 = vpack.c.b16 %v3175, %v3171
        %v3428 = vpack.c.b16 %v3180, %v3176
        %v3429 = vpack.c.b16 %v3181, %v3177
        %v3430 = vpack.c.b16 %v3182, %v3178
        %v3431 = vpack.c.b16 %v3183, %v3179
        %v3432 = vpack.c.b16 %v3188, %v3184
        %v3433 = vpack.c.b16 %v3189, %v3185
        %v3434 = vpack.c.b16 %v3190, %v3186
        %v3435 = vpack.c.b16 %v3191, %v3187
        %v3436 = vpack.c.b16 %v3196, %v3192
        %v3437 = vpack.c.b16 %v3197, %v3193
        %v3438 = vpack.c.b16 %v3198, %v3194
        %v3439 = vpack.c.b16 %v3199, %v3195
        %v3440 = vpack.c.b16 %v3204, %v3200
        %v3441 = vpack.c.b16 %v3205, %v3201
        %v3442 = vpack.c.b16 %v3206, %v3202
        %v3443 = vpack.c.b16 %v3207, %v3203
        %v3444 = vpack.c.b16 %v3212, %v3208
        %v3445 = vpack.c.b16 %v3213, %v3209
        %v3446 = vpack.c.b16 %v3214, %v3210
        %v3447 = vpack.c.b16 %v3215, %v3211
        %v3448 = vpack.c.b16 %v3220, %v3216
        %v3449 = vpack.c.b16 %v3221, %v3217
        %v3450 = vpack.c.b16 %v3222, %v3218
        %v3451 = vpack.c.b16 %v3223, %v3219
        %v3452 = vpack.c.b16 %v3228, %v3224
        %v3453 = vpack.c.b16 %v3229, %v3225
        %v3454 = vpack.c.b16 %v3230, %v3226
        %v3455 = vpack.c.b16 %v3231, %v3227
        %v3456 = vpack.c.b16 %v3236, %v3232
        %v3457 = vpack.c.b16 %v3237, %v3233
        %v3458 = vpack.c.b16 %v3238, %v3234
        %v3459 = vpack.c.b16 %v3239, %v3235
        %v3460 = vpack.c.b16 %v3244, %v3240
        %v3461 = vpack.c.b16 %v3245, %v3241
        %v3462 = vpack.c.b16 %v3246, %v3242
        %v3463 = vpack.c.b16 %v3247, %v3243
        %v3464 = vpack.c.b16 %v3252, %v3248
        %v3465 = vpack.c.b16 %v3253, %v3249
        %v3466 = vpack.c.b16 %v3254, %v3250
        %v3467 = vpack.c.b16 %v3255, %v3251
        %v3468 = vpack.c.b16 %v3260, %v3256
        %v3469 = vpack.c.b16 %v3261, %v3257
        %v3470 = vpack.c.b16 %v3262, %v3258
        %v3471 = vpack.c.b16 %v3263, %v3259
        %v3472 = vpack.c.b16 %v3268, %v3264
        %v3473 = vpack.c.b16 %v3269, %v3265
        %v3474 = vpack.c.b16 %v3270, %v3266
        %v3475 = vpack.c.b16 %v3271, %v3267
        %v3476 = vpack.c.b16 %v3276, %v3272
        %v3477 = vpack.c.b16 %v3277, %v3273
        %v3478 = vpack.c.b16 %v3278, %v3274
        %v3479 = vpack.c.b16 %v3279, %v3275
        %v3480 = vpack.c.b16 %v3284, %v3280
        %v3481 = vpack.c.b16 %v3285, %v3281
        %v3482 = vpack.c.b16 %v3286, %v3282
        %v3483 = vpack.c.b16 %v3287, %v3283
        %v3484 = vpack.c.b16 %v3292, %v3288
        %v3485 = vpack.c.b16 %v3293, %v3289
        %v3486 = vpack.c.b16 %v3294, %v3290
        %v3487 = vpack.c.b16 %v3295, %v3291
        %v3488 = vpack.c.b16 %v3300, %v3296
        %v3489 = vpack.c.b16 %v3301, %v3297
        %v3490 = vpack.c.b16 %v3302, %v3298
        %v3491 = vpack.c.b16 %v3303, %v3299
        %v3492 = vpack.c.b16 %v3308, %v3304
        %v3493 = vpack.c.b16 %v3309, %v3305
        %v3494 = vpack.c.b16 %v3310, %v3306
        %v3495 = vpack.c.b16 %v3311, %v3307
        %v3496 = vpack.c.b16 %v3316, %v3312
        %v3497 = vpack.c.b16 %v3317, %v3313
        %v3498 = vpack.c.b16 %v3318, %v3314
        %v3499 = vpack.c.b16 %v3319, %v3315
        %v3500 = vpack.c.b16 %v3324, %v3320
        %v3501 = vpack.c.b16 %v3325, %v3321
        %v3502 = vpack.c.b16 %v3326, %v3322
        %v3503 = vpack.c.b16 %v3327, %v3323
        %v3504 = vpack.c.b16 %v3332, %v3328
        %v3505 = vpack.c.b16 %v3333, %v3329
        %v3506 = vpack.c.b16 %v3334, %v3330
        %v3507 = vpack.c.b16 %v3335, %v3331
        %v3508 = vpack.c.b16 %v3340, %v3336
        %v3509 = vpack.c.b16 %v3341, %v3337
        %v3510 = vpack.c.b16 %v3342, %v3338
        %v3511 = vpack.c.b16 %v3343, %v3339
        %v3512 = vpack.c.b16 %v3348, %v3344
        %v3513 = vpack.c.b16 %v3349, %v3345
        %v3514 = vpack.c.b16 %v3350, %v3346
        %v3515 = vpack.c.b16 %v3351, %v3347
        %v3516 = vpack.c.b16 %v3356, %v3352
        %v3517 = vpack.c.b16 %v3357, %v3353
        %v3518 = vpack.c.b16 %v3358, %v3354
        %v3519 = vpack.c.b16 %v3359, %v3355
        %v3520 = vpack.c.b16 %v3364, %v3360
        %v3521 = vpack.c.b16 %v3365, %v3361
        %v3522 = vpack.c.b16 %v3366, %v3362
        %v3523 = vpack.c.b16 %v3367, %v3363
        %v3524 = vpack.c.b16 %v3372, %v3368
        %v3525 = vpack.c.b16 %v3373, %v3369
        %v3526 = vpack.c.b16 %v3374, %v3370
        %v3527 = vpack.c.b16 %v3375, %v3371
        %v3528 = vpack.c.b16 %v3380, %v3376
        %v3529 = vpack.c.b16 %v3381, %v3377
        %v3530 = vpack.c.b16 %v3382, %v3378
        %v3531 = vpack.c.b16 %v3383, %v3379
        %v3532 = vpack.c.b16 %v3388, %v3384
        %v3533 = vpack.c.b16 %v3389, %v3385
        %v3534 = vpack.c.b16 %v3390, %v3386
        %v3535 = vpack.c.b16 %v3391, %v3387
        %v3536 = vpack.c.b16 %v3396, %v3392
        %v3537 = vpack.c.b16 %v3397, %v3393
        %v3538 = vpack.c.b16 %v3398, %v3394
        %v3539 = vpack.c.b16 %v3399, %v3395
        %v3540 = vpack.c.b16 %v3404, %v3400
        %v3541 = vpack.c.b16 %v3405, %v3401
        %v3542 = vpack.c.b16 %v3406, %v3402
        %v3543 = vpack.c.b16 %v3407, %v3403
        %v3544 = vpack.c.b16 %v3412, %v3408
        %v3545 = vpack.c.b16 %v3413, %v3409
        %v3546 = vpack.c.b16 %v3414, %v3410
        %v3547 = vpack.c.b16 %v3415, %v3411
        %v3548 = vpack.c.b16 %v3420, %v3416
        %v3549 = vpack.c.b16 %v3421, %v3417
        %v3550 = vpack.c.b16 %v3422, %v3418
        %v3551 = vpack.c.b16 %v3423, %v3419
        %3680 = vmatprep.subr.bf16.mxu0 %v3425
        %3681 = vmatpush1.bf16.msra.mxu0 %v3424
        %3682 = vmatprep.subr.bf16.mxu0 %v3429
        %3683 = vmatpush1.bf16.msra.mxu0 %v3428
        %3684 = vmatprep.subr.bf16.mxu0 %v3433
        %3685 = vmatpush1.bf16.msra.mxu0 %v3432
        %3686 = vmatprep.subr.bf16.mxu0 %v3437
        %3687 = vmatpush1.bf16.msra.mxu0 %v3436
        %3688 = vmatprep.subr.bf16.mxu0 %v3441
        %3689 = vmatpush1.bf16.msra.mxu0 %v3440
        %3690 = vmatprep.subr.bf16.mxu0 %v3445
        %3691 = vmatpush1.bf16.msra.mxu0 %v3444
        %3692 = vmatprep.subr.bf16.mxu0 %v3449
        %3693 = vmatpush1.bf16.msra.mxu0 %v3448
        %3694 = vmatprep.subr.bf16.mxu0 %v3453
        %3695 = vmatpush1.bf16.msra.mxu0 %v3452
        %3696 = vmatprep.subr.bf16.mxu0 %v3457
        %3697 = vmatpush1.bf16.msra.mxu0 %v3456
        %3698 = vmatprep.subr.bf16.mxu0 %v3461
        %3699 = vmatpush1.bf16.msra.mxu0 %v3460
        %3700 = vmatprep.subr.bf16.mxu0 %v3465
        %3701 = vmatpush1.bf16.msra.mxu0 %v3464
        %3702 = vmatprep.subr.bf16.mxu0 %v3469
        %3703 = vmatpush1.bf16.msra.mxu0 %v3468
        %3704 = vmatprep.subr.bf16.mxu0 %v3473
        %3705 = vmatpush1.bf16.msra.mxu0 %v3472
        %3706 = vmatprep.subr.bf16.mxu0 %v3477
        %3707 = vmatpush1.bf16.msra.mxu0 %v3476
        %3708 = vmatprep.subr.bf16.mxu0 %v3481
        %3709 = vmatpush1.bf16.msra.mxu0 %v3480
        %3710 = vmatprep.subr.bf16.mxu0 %v3485
        %3711 = vmatpush1.bf16.msra.mxu0 %v3484
        %3712 = vmatprep.mubr.bf16.mxu0 %v2887
        %3713 = vmatmul.mubr.bf16.gmra.mrb[0].mxu0 %v2886
        %v3714 = vpop.f32.mrb[0].mxu0
        %v3715 = vadd.f32 %v3023, %v3714
        %v3716 = vpop.f32.mrb[0].mxu0
        %v3717 = vadd.f32 %v3027, %v3716
        %v3718 = vpop.f32.mrb[0].mxu0
        %v3719 = vpop.f32.mrb[0].mxu0
        %3720 = vdwg.mxu0
        %3721 = vmatprep.subr.bf16.mxu0 %v3489
        %3722 = vmatpush1.bf16.msra.mxu0 %v3488
        %3723 = vmatprep.subr.bf16.mxu0 %v3493
        %3724 = vmatpush1.bf16.msra.mxu0 %v3492
        %3725 = vmatprep.subr.bf16.mxu0 %v3497
        %3726 = vmatpush1.bf16.msra.mxu0 %v3496
        %3727 = vmatprep.subr.bf16.mxu0 %v3501
        %3728 = vmatpush1.bf16.msra.mxu0 %v3500
        %3729 = vmatprep.subr.bf16.mxu0 %v3505
        %3730 = vmatpush1.bf16.msra.mxu0 %v3504
        %3731 = vmatprep.subr.bf16.mxu0 %v3509
        %3732 = vmatpush1.bf16.msra.mxu0 %v3508
        %3733 = vmatprep.subr.bf16.mxu0 %v3513
        %3734 = vmatpush1.bf16.msra.mxu0 %v3512
        %3735 = vmatprep.subr.bf16.mxu0 %v3517
        %3736 = vmatpush1.bf16.msra.mxu0 %v3516
        %3737 = vmatprep.subr.bf16.mxu0 %v3521
        %3738 = vmatpush1.bf16.msra.mxu0 %v3520
        %3739 = vmatprep.subr.bf16.mxu0 %v3525
        %3740 = vmatpush1.bf16.msra.mxu0 %v3524
        %3741 = vmatprep.subr.bf16.mxu0 %v3529
        %3742 = vmatpush1.bf16.msra.mxu0 %v3528
        %3743 = vmatprep.subr.bf16.mxu0 %v3533
        %3744 = vmatpush1.bf16.msra.mxu0 %v3532
        %3745 = vmatprep.subr.bf16.mxu0 %v3537
        %3746 = vmatpush1.bf16.msra.mxu0 %v3536
        %3747 = vmatprep.subr.bf16.mxu0 %v3541
        %3748 = vmatpush1.bf16.msra.mxu0 %v3540
        %3749 = vmatprep.subr.bf16.mxu0 %v3545
        %3750 = vmatpush1.bf16.msra.mxu0 %v3544
        %3751 = vmatprep.subr.bf16.mxu0 %v3549
        %3752 = vmatpush1.bf16.msra.mxu0 %v3548
        %3753 = vmatprep.mubr.bf16.mxu0 %v2889
        %3754 = vmatmul.mubr.bf16.gmra.mrb[0].mxu0 %v2888
        %v3755 = vpop.f32.mrb[0].mxu0
        %v3756 = vadd.f32 %v3715, %v3755
        %v3757 = vpop.f32.mrb[0].mxu0
        %v3758 = vadd.f32 %v3717, %v3757
        %v3759 = vpop.f32.mrb[0].mxu0
        %v3760 = vpop.f32.mrb[0].mxu0
        %3761 = vdwg.mxu0
        %3762 = vmatprep.subr.bf16.mxu0 %v3427
        %3763 = vmatpush1.bf16.msra.mxu0 %v3426
        %3764 = vmatprep.subr.bf16.mxu0 %v3431
        %3765 = vmatpush1.bf16.msra.mxu0 %v3430
        %3766 = vmatprep.subr.bf16.mxu0 %v3435
        %3767 = vmatpush1.bf16.msra.mxu0 %v3434
        %3768 = vmatprep.subr.bf16.mxu0 %v3439
        %3769 = vmatpush1.bf16.msra.mxu0 %v3438
        %3770 = vmatprep.subr.bf16.mxu0 %v3443
        %3771 = vmatpush1.bf16.msra.mxu0 %v3442
        %3772 = vmatprep.subr.bf16.mxu0 %v3447
        %3773 = vmatpush1.bf16.msra.mxu0 %v3446
        %3774 = vmatprep.subr.bf16.mxu0 %v3451
        %3775 = vmatpush1.bf16.msra.mxu0 %v3450
        %3776 = vmatprep.subr.bf16.mxu0 %v3455
        %3777 = vmatpush1.bf16.msra.mxu0 %v3454
        %3778 = vmatprep.subr.bf16.mxu0 %v3459
        %3779 = vmatpush1.bf16.msra.mxu0 %v3458
        %3780 = vmatprep.subr.bf16.mxu0 %v3463
        %3781 = vmatpush1.bf16.msra.mxu0 %v3462
        %3782 = vmatprep.subr.bf16.mxu0 %v3467
        %3783 = vmatpush1.bf16.msra.mxu0 %v3466
        %3784 = vmatprep.subr.bf16.mxu0 %v3471
        %3785 = vmatpush1.bf16.msra.mxu0 %v3470
        %3786 = vmatprep.subr.bf16.mxu0 %v3475
        %3787 = vmatpush1.bf16.msra.mxu0 %v3474
        %3788 = vmatprep.subr.bf16.mxu0 %v3479
        %3789 = vmatpush1.bf16.msra.mxu0 %v3478
        %3790 = vmatprep.subr.bf16.mxu0 %v3483
        %3791 = vmatpush1.bf16.msra.mxu0 %v3482
        %3792 = vmatprep.subr.bf16.mxu0 %v3487
        %3793 = vmatpush1.bf16.msra.mxu0 %v3486
        %3794 = vmatprep.mubr.bf16.mxu0 %v2887
        %3795 = vmatmul.mubr.bf16.gmra.mrb[0].mxu0 %v2886
        %v3796 = vpop.f32.mrb[0].mxu0
        %v3797 = vadd.f32 %v3031, %v3796
        %v3798 = vpop.f32.mrb[0].mxu0
        %v3799 = vadd.f32 %v3035, %v3798
        %v3800 = vpop.f32.mrb[0].mxu0
        %v3801 = vpop.f32.mrb[0].mxu0
        %3802 = vdwg.mxu0
        %3803 = vmatprep.subr.bf16.mxu0 %v3491
        %3804 = vmatpush1.bf16.msra.mxu0 %v3490
        %3805 = vmatprep.subr.bf16.mxu0 %v3495
        %3806 = vmatpush1.bf16.msra.mxu0 %v3494
        %3807 = vmatprep.subr.bf16.mxu0 %v3499
        %3808 = vmatpush1.bf16.msra.mxu0 %v3498
        %3809 = vmatprep.subr.bf16.mxu0 %v3503
        %3810 = vmatpush1.bf16.msra.mxu0 %v3502
        %3811 = vmatprep.subr.bf16.mxu0 %v3507
        %3812 = vmatpush1.bf16.msra.mxu0 %v3506
        %3813 = vmatprep.subr.bf16.mxu0 %v3511
        %3814 = vmatpush1.bf16.msra.mxu0 %v3510
        %3815 = vmatprep.subr.bf16.mxu0 %v3515
        %3816 = vmatpush1.bf16.msra.mxu0 %v3514
        %3817 = vmatprep.subr.bf16.mxu0 %v3519
        %3818 = vmatpush1.bf16.msra.mxu0 %v3518
        %3819 = vmatprep.subr.bf16.mxu0 %v3523
        %3820 = vmatpush1.bf16.msra.mxu0 %v3522
        %3821 = vmatprep.subr.bf16.mxu0 %v3527
        %3822 = vmatpush1.bf16.msra.mxu0 %v3526
        %3823 = vmatprep.subr.bf16.mxu0 %v3531
        %3824 = vmatpush1.bf16.msra.mxu0 %v3530
        %3825 = vmatprep.subr.bf16.mxu0 %v3535
        %3826 = vmatpush1.bf16.msra.mxu0 %v3534
        %3827 = vmatprep.subr.bf16.mxu0 %v3539
        %3828 = vmatpush1.bf16.msra.mxu0 %v3538
        %3829 = vmatprep.subr.bf16.mxu0 %v3543
        %3830 = vmatpush1.bf16.msra.mxu0 %v3542
        %3831 = vmatprep.subr.bf16.mxu0 %v3547
        %3832 = vmatpush1.bf16.msra.mxu0 %v3546
        %3833 = vmatprep.subr.bf16.mxu0 %v3551
        %3834 = vmatpush1.bf16.msra.mxu0 %v3550
        %3835 = vmatprep.mubr.bf16.mxu0 %v2889
        %3836 = vmatmul.mubr.bf16.gmra.mrb[0].mxu0 %v2888
        %v3837 = vpop.f32.mrb[0].mxu0
        %v3838 = vadd.f32 %v3797, %v3837
        %v3839 = vpop.f32.mrb[0].mxu0
        %v3840 = vadd.f32 %v3799, %v3839
        %v3841 = vpop.f32.mrb[0].mxu0
        %v3842 = vpop.f32.mrb[0].mxu0
        %3843 = vdwg.mxu0
        %v3844 = vmax.f32 %v3756, 0.0
        %v3845 = vmax.f32 %v3758, 0.0
        %v3846 = vmax.f32 %v3838, 0.0
        %v3847 = vmax.f32 %v3840, 0.0
        %v3848 = vpack.c.bf16 %v3844, %v3844
        %v3849 = vpack.c.bf16 %v3845, %v3845
        %v3850 = vpack.c.bf16 %v3846, %v3846
        %v3851 = vpack.c.bf16 %v3847, %v3847
        %v3852 = vld [vmem:[%s7] sm:$0xf]
        %v3853 = vld [vmem:[%s7 + $0x4] sm:$0xf]
        %v3854 = vld [vmem:[%s7 + $0x8] sm:$0xf]
        %v3855 = vld [vmem:[%s7 + $0xc] sm:$0xf]
        %v3856 = vld [vmem:[%s7 + $0x10] sm:$0xf]
        %v3857 = vld [vmem:[%s7 + $0x14] sm:$0xf]
        %v3858 = vld [vmem:[%s7 + $0x18] sm:$0xf]
        %v3859 = vld [vmem:[%s7 + $0x1c] sm:$0xf]
        %v3860 = vld [vmem:[%s7 + $0x20] sm:$0xf]
        %v3861 = vld [vmem:[%s7 + $0x24] sm:$0xf]
        %v3862 = vld [vmem:[%s7 + $0x28] sm:$0xf]
        %v3863 = vld [vmem:[%s7 + $0x2c] sm:$0xf]
        %v3864 = vld [vmem:[%s7 + $0x30] sm:$0xf]
        %v3865 = vld [vmem:[%s7 + $0x34] sm:$0xf]
        %v3866 = vld [vmem:[%s7 + $0x38] sm:$0xf]
        %v3867 = vld [vmem:[%s7 + $0x3c] sm:$0xf]
        %v3868 = vld [vmem:[%s7 + $0x40] sm:$0xf]
        %v3869 = vld [vmem:[%s7 + $0x44] sm:$0xf]
        %v3870 = vld [vmem:[%s7 + $0x48] sm:$0xf]
        %v3871 = vld [vmem:[%s7 + $0x4c] sm:$0xf]
        %v3872 = vld [vmem:[%s7 + $0x50] sm:$0xf]
        %v3873 = vld [vmem:[%s7 + $0x54] sm:$0xf]
        %v3874 = vld [vmem:[%s7 + $0x58] sm:$0xf]
        %v3875 = vld [vmem:[%s7 + $0x5c] sm:$0xf]
        %v3876 = vld [vmem:[%s7 + $0x60] sm:$0xf]
        %v3877 = vld [vmem:[%s7 + $0x64] sm:$0xf]
        %v3878 = vld [vmem:[%s7 + $0x68] sm:$0xf]
        %v3879 = vld [vmem:[%s7 + $0x6c] sm:$0xf]
        %v3880 = vld [vmem:[%s7 + $0x70] sm:$0xf]
        %v3881 = vld [vmem:[%s7 + $0x74] sm:$0xf]
        %v3882 = vld [vmem:[%s7 + $0x78] sm:$0xf]
        %v3883 = vld [vmem:[%s7 + $0x7c] sm:$0xf]
        %v3884 = vld [vmem:[%s7 + $0x80] sm:$0xf]
        %v3885 = vld [vmem:[%s7 + $0x84] sm:$0xf]
        %v3886 = vld [vmem:[%s7 + $0x88] sm:$0xf]
        %v3887 = vld [vmem:[%s7 + $0x8c] sm:$0xf]
        %v3888 = vld [vmem:[%s7 + $0x90] sm:$0xf]
        %v3889 = vld [vmem:[%s7 + $0x94] sm:$0xf]
        %v3890 = vld [vmem:[%s7 + $0x98] sm:$0xf]
        %v3891 = vld [vmem:[%s7 + $0x9c] sm:$0xf]
        %v3892 = vld [vmem:[%s7 + $0xa0] sm:$0xf]
        %v3893 = vld [vmem:[%s7 + $0xa4] sm:$0xf]
        %v3894 = vld [vmem:[%s7 + $0xa8] sm:$0xf]
        %v3895 = vld [vmem:[%s7 + $0xac] sm:$0xf]
        %v3896 = vld [vmem:[%s7 + $0xb0] sm:$0xf]
        %v3897 = vld [vmem:[%s7 + $0xb4] sm:$0xf]
        %v3898 = vld [vmem:[%s7 + $0xb8] sm:$0xf]
        %v3899 = vld [vmem:[%s7 + $0xbc] sm:$0xf]
        %v3900 = vld [vmem:[%s7 + $0xc0] sm:$0xf]
        %v3901 = vld [vmem:[%s7 + $0xc4] sm:$0xf]
        %v3902 = vld [vmem:[%s7 + $0xc8] sm:$0xf]
        %v3903 = vld [vmem:[%s7 + $0xcc] sm:$0xf]
        %v3904 = vld [vmem:[%s7 + $0xd0] sm:$0xf]
        %v3905 = vld [vmem:[%s7 + $0xd4] sm:$0xf]
        %v3906 = vld [vmem:[%s7 + $0xd8] sm:$0xf]
        %v3907 = vld [vmem:[%s7 + $0xdc] sm:$0xf]
        %v3908 = vld [vmem:[%s7 + $0xe0] sm:$0xf]
        %v3909 = vld [vmem:[%s7 + $0xe4] sm:$0xf]
        %v3910 = vld [vmem:[%s7 + $0xe8] sm:$0xf]
        %v3911 = vld [vmem:[%s7 + $0xec] sm:$0xf]
        %v3912 = vld [vmem:[%s7 + $0xf0] sm:$0xf]
        %v3913 = vld [vmem:[%s7 + $0xf4] sm:$0xf]
        %v3914 = vld [vmem:[%s7 + $0xf8] sm:$0xf]
        %v3915 = vld [vmem:[%s7 + $0xfc] sm:$0xf]
        %v3916 = vld [vmem:[%s8] sm:$0x1]
        %v3918 = vlaneseq
        %v3919 = vshrl.u32 %v3918, 7
        %v3920 = vsub.s32 0, %v3919
        %v3921 = vrot.slane %v3916, %v3920
        %v3987 = vunpack.c.l.b16 %v3852
        %v3988 = vunpack.c.l.b16 %v3853
        %v3989 = vunpack.c.l.b16 %v3854
        %v3990 = vunpack.c.l.b16 %v3855
        %v3991 = vunpack.c.l.b16 %v3856
        %v3992 = vunpack.c.l.b16 %v3857
        %v3993 = vunpack.c.l.b16 %v3858
        %v3994 = vunpack.c.l.b16 %v3859
        %v3995 = vunpack.c.l.b16 %v3860
        %v3996 = vunpack.c.l.b16 %v3861
        %v3997 = vunpack.c.l.b16 %v3862
        %v3998 = vunpack.c.l.b16 %v3863
        %v3999 = vunpack.c.l.b16 %v3864
        %v4000 = vunpack.c.l.b16 %v3865
        %v4001 = vunpack.c.l.b16 %v3866
        %v4002 = vunpack.c.l.b16 %v3867
        %v4003 = vunpack.c.l.b16 %v3868
        %v4004 = vunpack.c.l.b16 %v3869
        %v4005 = vunpack.c.l.b16 %v3870
        %v4006 = vunpack.c.l.b16 %v3871
        %v4007 = vunpack.c.l.b16 %v3872
        %v4008 = vunpack.c.l.b16 %v3873
        %v4009 = vunpack.c.l.b16 %v3874
        %v4010 = vunpack.c.l.b16 %v3875
        %v4011 = vunpack.c.l.b16 %v3876
        %v4012 = vunpack.c.l.b16 %v3877
        %v4013 = vunpack.c.l.b16 %v3878
        %v4014 = vunpack.c.l.b16 %v3879
        %v4015 = vunpack.c.l.b16 %v3880
        %v4016 = vunpack.c.l.b16 %v3881
        %v4017 = vunpack.c.l.b16 %v3882
        %v4018 = vunpack.c.l.b16 %v3883
        %v4019 = vunpack.c.l.b16 %v3884
        %v4020 = vunpack.c.l.b16 %v3885
        %v4021 = vunpack.c.l.b16 %v3886
        %v4022 = vunpack.c.l.b16 %v3887
        %v4023 = vunpack.c.l.b16 %v3888
        %v4024 = vunpack.c.l.b16 %v3889
        %v4025 = vunpack.c.l.b16 %v3890
        %v4026 = vunpack.c.l.b16 %v3891
        %v4027 = vunpack.c.l.b16 %v3892
        %v4028 = vunpack.c.l.b16 %v3893
        %v4029 = vunpack.c.l.b16 %v3894
        %v4030 = vunpack.c.l.b16 %v3895
        %v4031 = vunpack.c.l.b16 %v3896
        %v4032 = vunpack.c.l.b16 %v3897
        %v4033 = vunpack.c.l.b16 %v3898
        %v4034 = vunpack.c.l.b16 %v3899
        %v4035 = vunpack.c.l.b16 %v3900
        %v4036 = vunpack.c.l.b16 %v3901
        %v4037 = vunpack.c.l.b16 %v3902
        %v4038 = vunpack.c.l.b16 %v3903
        %v4039 = vunpack.c.l.b16 %v3904
        %v4040 = vunpack.c.l.b16 %v3905
        %v4041 = vunpack.c.l.b16 %v3906
        %v4042 = vunpack.c.l.b16 %v3907
        %v4043 = vunpack.c.l.b16 %v3908
        %v4044 = vunpack.c.l.b16 %v3909
        %v4045 = vunpack.c.l.b16 %v3910
        %v4046 = vunpack.c.l.b16 %v3911
        %v4047 = vunpack.c.l.b16 %v3912
        %v4048 = vunpack.c.l.b16 %v3913
        %v4049 = vunpack.c.l.b16 %v3914
        %v4050 = vunpack.c.l.b16 %v3915
        %v4051 = vpack.c.b16 %v3988, %v3987
        %v4052 = vpack.c.b16 %v3990, %v3989
        %v4053 = vpack.c.b16 %v3992, %v3991
        %v4054 = vpack.c.b16 %v3994, %v3993
        %v4055 = vpack.c.b16 %v3996, %v3995
        %v4056 = vpack.c.b16 %v3998, %v3997
        %v4057 = vpack.c.b16 %v4000, %v3999
        %v4058 = vpack.c.b16 %v4002, %v4001
        %v4059 = vpack.c.b16 %v4004, %v4003
        %v4060 = vpack.c.b16 %v4006, %v4005
        %v4061 = vpack.c.b16 %v4008, %v4007
        %v4062 = vpack.c.b16 %v4010, %v4009
        %v4063 = vpack.c.b16 %v4012, %v4011
        %v4064 = vpack.c.b16 %v4014, %v4013
        %v4065 = vpack.c.b16 %v4016, %v4015
        %v4066 = vpack.c.b16 %v4018, %v4017
        %v4067 = vpack.c.b16 %v4020, %v4019
        %v4068 = vpack.c.b16 %v4022, %v4021
        %v4069 = vpack.c.b16 %v4024, %v4023
        %v4070 = vpack.c.b16 %v4026, %v4025
        %v4071 = vpack.c.b16 %v4028, %v4027
        %v4072 = vpack.c.b16 %v4030, %v4029
        %v4073 = vpack.c.b16 %v4032, %v4031
        %v4074 = vpack.c.b16 %v4034, %v4033
        %v4075 = vpack.c.b16 %v4036, %v4035
        %v4076 = vpack.c.b16 %v4038, %v4037
        %v4077 = vpack.c.b16 %v4040, %v4039
        %v4078 = vpack.c.b16 %v4042, %v4041
        %v4079 = vpack.c.b16 %v4044, %v4043
        %v4080 = vpack.c.b16 %v4046, %v4045
        %v4081 = vpack.c.b16 %v4048, %v4047
        %v4082 = vpack.c.b16 %v4050, %v4049
        %4115 = vmatprep.subr.bf16.mxu0 0
        %4116 = vmatpush1.bf16.msra.mxu0 %v4051
        %4117 = vmatprep.subr.bf16.mxu0 0
        %4118 = vmatpush1.bf16.msra.mxu0 %v4052
        %4119 = vmatprep.subr.bf16.mxu0 0
        %4120 = vmatpush1.bf16.msra.mxu0 %v4053
        %4121 = vmatprep.subr.bf16.mxu0 0
        %4122 = vmatpush1.bf16.msra.mxu0 %v4054
        %4123 = vmatprep.subr.bf16.mxu0 0
        %4124 = vmatpush1.bf16.msra.mxu0 %v4055
        %4125 = vmatprep.subr.bf16.mxu0 0
        %4126 = vmatpush1.bf16.msra.mxu0 %v4056
        %4127 = vmatprep.subr.bf16.mxu0 0
        %4128 = vmatpush1.bf16.msra.mxu0 %v4057
        %4129 = vmatprep.subr.bf16.mxu0 0
        %4130 = vmatpush1.bf16.msra.mxu0 %v4058
        %4131 = vmatprep.subr.bf16.mxu0 0
        %4132 = vmatpush1.bf16.msra.mxu0 %v4059
        %4133 = vmatprep.subr.bf16.mxu0 0
        %4134 = vmatpush1.bf16.msra.mxu0 %v4060
        %4135 = vmatprep.subr.bf16.mxu0 0
        %4136 = vmatpush1.bf16.msra.mxu0 %v4061
        %4137 = vmatprep.subr.bf16.mxu0 0
        %4138 = vmatpush1.bf16.msra.mxu0 %v4062
        %4139 = vmatprep.subr.bf16.mxu0 0
        %4140 = vmatpush1.bf16.msra.mxu0 %v4063
        %4141 = vmatprep.subr.bf16.mxu0 0
        %4142 = vmatpush1.bf16.msra.mxu0 %v4064
        %4143 = vmatprep.subr.bf16.mxu0 0
        %4144 = vmatpush1.bf16.msra.mxu0 %v4065
        %4145 = vmatprep.subr.bf16.mxu0 0
        %4146 = vmatpush1.bf16.msra.mxu0 %v4066
        %4147 = vmatprep.mubr.bf16.mxu0 %v3849
        %4148 = vmatmul.mubr.bf16.gmra.mrb[0].mxu0 %v3848
        %v4149 = vpop.f32.mrb[0].mxu0
        %v4150 = vadd.f32 %v3921, %v4149
        %v4151 = vpop.f32.mrb[0].mxu0
        %v4152 = vpop.f32.mrb[0].mxu0
        %v4153 = vpop.f32.mrb[0].mxu0
        %4154 = vdwg.mxu0
        %4155 = vmatprep.subr.bf16.mxu0 0
        %4156 = vmatpush1.bf16.msra.mxu0 %v4067
        %4157 = vmatprep.subr.bf16.mxu0 0
        %4158 = vmatpush1.bf16.msra.mxu0 %v4068
        %4159 = vmatprep.subr.bf16.mxu0 0
        %4160 = vmatpush1.bf16.msra.mxu0 %v4069
        %4161 = vmatprep.subr.bf16.mxu0 0
        %4162 = vmatpush1.bf16.msra.mxu0 %v4070
        %4163 = vmatprep.subr.bf16.mxu0 0
        %4164 = vmatpush1.bf16.msra.mxu0 %v4071
        %4165 = vmatprep.subr.bf16.mxu0 0
        %4166 = vmatpush1.bf16.msra.mxu0 %v4072
        %4167 = vmatprep.subr.bf16.mxu0 0
        %4168 = vmatpush1.bf16.msra.mxu0 %v4073
        %4169 = vmatprep.subr.bf16.mxu0 0
        %4170 = vmatpush1.bf16.msra.mxu0 %v4074
        %4171 = vmatprep.subr.bf16.mxu0 0
        %4172 = vmatpush1.bf16.msra.mxu0 %v4075
        %4173 = vmatprep.subr.bf16.mxu0 0
        %4174 = vmatpush1.bf16.msra.mxu0 %v4076
        %4175 = vmatprep.subr.bf16.mxu0 0
        %4176 = vmatpush1.bf16.msra.mxu0 %v4077
        %4177 = vmatprep.subr.bf16.mxu0 0
        %4178 = vmatpush1.bf16.msra.mxu0 %v4078
        %4179 = vmatprep.subr.bf16.mxu0 0
        %4180 = vmatpush1.bf16.msra.mxu0 %v4079
        %4181 = vmatprep.subr.bf16.mxu0 0
        %4182 = vmatpush1.bf16.msra.mxu0 %v4080
        %4183 = vmatprep.subr.bf16.mxu0 0
        %4184 = vmatpush1.bf16.msra.mxu0 %v4081
        %4185 = vmatprep.subr.bf16.mxu0 0
        %4186 = vmatpush1.bf16.msra.mxu0 %v4082
        %4187 = vmatprep.mubr.bf16.mxu0 %v3851
        %4188 = vmatmul.mubr.bf16.gmra.mrb[0].mxu0 %v3850
        %v4189 = vpop.f32.mrb[0].mxu0
        %v4190 = vadd.f32 %v4150, %v4189
        %v4191 = vpop.f32.mrb[0].mxu0
        %v4192 = vpop.f32.mrb[0].mxu0
        %v4193 = vpop.f32.mrb[0].mxu0
        %4194 = vdwg.mxu0
        %vm4195 = vcmask 80896
        %v4196 = vsel %vm4195, %v4190, -inf
        %4197 = vmax.xlane.f32.xlu0 %v4196
        %v4198 = vpop.xlane.xlu0 %4197
        %v4199 = vsub.f32 %v4190, %v4198
        %v4200 = vmul.f32 %v4199, 1.442695
        %v4201 = vpow.pop %v4200
        %v4202 = vsel %vm4195, %v4201, 0.0
        %4203 = vadd.xlane.f32.xlu0 %v4202
        %v4204 = vpop.xlane.xlu0 %4203
        %v4205 = vlog2.pop %v4204
        %v4206 = vmul.f32 %v4205, 0.6931472
        %v4207 = vsub.f32 %v4199, %v4206
        %4208 = vst.msk [vmem:[%s369] sm:$0xff] %vm4195, %v4207
        %s4209 = sand.u32 %s227, 1
        %s4210 = scalar_lea.sflag [#allocation4], %s4209
        %s4211 = sand.u32 %s227, 1
        %s4212 = smul.addr %s4211, 8
        %s4213 = scalar_lea.vmem [#allocation8], %s4212
        // Predicated region
        $region69: #{tpu_custom_call.1} parent=55 // pred_check
          %p4214 = pneg %p237
        $region70: #{tpu_custom_call.1} parent=55 // pred_check_branch
          %4216 = sbr.rel (%p4214) target = $region72
        $region71: #{tpu_custom_call.1} parent=55 // pred_region
          %s4218 = ssub.s32 128, 128
          %4219 = vsyncadd %s4210, %s4218
          %s4220 = smul.addr %s25, 128
          %s4221 = scalar_lea.hbm %s9, %s4220
          %s4223 = sshll.u32 %s4213, 4
          %s4224 = int_to_ptr.vmem [resolvable:$true] %s4223
          %4226 = dma.vmem_to_hbm [thread:$0]  %s4224, 128, %s4221, %s4210
        $region72: #{tpu_custom_call.1} parent=55 // pred_fallthru
          _
      $region56: #{tpu_custom_call.1} parent=5 // pred_fallthru
        _
      %p4227 = scmp.le.s32.totalorder 2, %s20
      // Predicated region
      $region73: #{tpu_custom_call.1} parent=5 // pred_check
        %p4228 = pneg %p4227
      $region74: #{tpu_custom_call.1} parent=5 // pred_check_branch
        %4230 = sbr.rel (%p4228) target = $region76
      $region75: #{tpu_custom_call.1} parent=5 // pred_region
        %s4231 = ssub.s32 %s20, 2
        // Predicated region
        $region77: #{tpu_custom_call.1} parent=75 // pred_check
          %p4232 = pneg %p243
        $region78: #{tpu_custom_call.1} parent=75 // pred_check_branch
          %4234 = sbr.rel (%p4232) target = $region80
        $region79: #{tpu_custom_call.1} parent=75 // pred_region
          %s4235 = sand.u32 %s228, 1
          %s4236 = scalar_lea.sflag [#allocation4], %s4235
          %s4237 = sand.u32 %s228, 1
          %s4238 = smul.addr %s4237, 8
          %s4239 = scalar_lea.vmem [#allocation8], %s4238
          %4240 = dma.done %s4236, 128
        $region80: #{tpu_custom_call.1} parent=75 // pred_fallthru
          _
      $region76: #{tpu_custom_call.1} parent=5 // pred_fallthru
        _
    $region6: #{tpu_custom_call.1} parent=1 // loop_footer
      %s24 = sadd.s32 1, %s20
    $region7: #{tpu_custom_call.1} parent=1 // loop_footer_branch
      %19 = sbr.rel target = $region3
    $region8: #{tpu_custom_call.1} parent=1 // loop_exit
      _
    %4241 = vsyncpa [#allocation3], 1
    %s4242 = scalar_lea.sflag [#allocation3], 1
    %4243 = vsyncpa %s4242, 1
    %4244 = vsyncpa [#allocation6], 1
    %4245 = vsyncpa [#allocation4], 1
    %s4246 = scalar_lea.sflag [#allocation4], 1
    %4247 = vsyncpa %s4246, 1

</llo_original>
